<compile_context>
chip_gen: v5e
topology: v5e:2x2
jax: 0.10.0
libtpu: 0.0.40
codegen_flags: <defaults>
</compile_context>

<pallas_src>
import jax
import jax.numpy as jnp
from jax.experimental import pallas as pl
from jax.experimental.pallas import tpu as pltpu


# ---------------------------------------------------------------------------
# Pallas kernel + wrapper
# ---------------------------------------------------------------------------
def pointnet_encoder_pallas(x_bcn, params, *, tile_n=None, n_splits=1,
                            f2_dtype=jnp.float32, f3_dtype=jnp.bfloat16):
    """x_bcn: (B, C0, N) float32, channels-first like the PyTorch module.

    Returns (feats, global_feats) with feats[i]: (B, C_i, N) and
    global_feats: (B, C_last) f32, matching PointNetEncoder.forward.
    f3 is stored in `f3_dtype` (bf16 by default) to cut HBM writeback traffic.
    """
    (w1, b1), (w2, b2), (w3, b3) = params          # w_i: (Cin, Cout) f32, b_i: (1, Cout) f32
    B, C0, N = x_bcn.shape
    C1, C2, C3 = w1.shape[1], w2.shape[1], w3.shape[1]

    # --- point-dim tiling (opt #2 / #3) ------------------------------------
    if tile_n is None:
        tile_n = 1024 if N >= 4096 else 512        # multiple of 128 (v5e) / 256 (v6e, v7x MXU)
    tn = min(tile_n, N)
    n_tiles = pl.cdiv(N, tn)

    # Optional split of the N-tile axis across TensorCores (v7x, small B).  Only
    # used when it divides evenly; otherwise fall back to a single reduction chain.
    if n_splits > 1 and (n_tiles % n_splits != 0):
        n_splits = 1
    tiles_per_split = n_tiles // n_splits

    # Lane-dense max-accumulator width (opt #4).
    aw = min(128, tn)

    # Channels-first weights; bf16 for the big MXU layers (f32 accumulation in-kernel).
    w1_t = jnp.asarray(w1.T, jnp.float32)                 # (C1, C0)  K=3 -> VPU layer
    b1_c = jnp.asarray(b1.reshape(C1, 1), jnp.float32)
    w2_t = jnp.asarray(w2.T, jnp.bfloat16)                # (C2, C1)
    b2_c = jnp.asarray(b2.reshape(C2, 1), jnp.float32)
    w3_t = jnp.asarray(w3.T, jnp.bfloat16)                # (C3, C2)
    b3_c = jnp.asarray(b3.reshape(C3, 1), jnp.float32)

    def kernel(x_ref, w1_ref, b1_ref, w2_ref, b2_ref, w3_ref, b3_ref,
               f1_ref, f2_ref, f3_ref, g_ref, acc_ref):
        s = pl.program_id(1)                                         # N-axis split index
        j = pl.program_id(2)                                         # tile index within split

        @pl.when(j == 0)
        def _():                                                     # reset per (b, s) chain
            acc_ref[...] = jnp.full(acc_ref.shape, -jnp.inf, acc_ref.dtype)

        x = x_ref[0]                                                 # (C0, tn) f32

        # ---- layer 1: K=3 contraction on the VPU (+ folded BN) + ReLU --------------
        w1v = w1_ref[...]                                            # (C1, C0)
        h1 = b1_ref[...]                                             # (C1, 1) -> broadcast
        for c in range(C0):                                          # static unroll (C0=3)
            h1 = h1 + w1v[:, c:c + 1] * x[c:c + 1, :]                # outer product, VPU
        h1 = jnp.maximum(h1, 0.0)                                    # (C1, tn) f32
        f1_ref[0] = h1.astype(f1_ref.dtype)

        # ---- layer 2: MXU, bf16 operands, f32 accumulate, + ReLU -------------------
        # TODO(synk): once HBM writes are no longer the bottleneck, fold b2/b3 into the
        # matmul as an augmented row instead of the broadcast adds.
        h2 = jnp.dot(w2_ref[...], h1.astype(jnp.bfloat16),
                     preferred_element_type=jnp.float32) + b2_ref[...]
        h2 = jnp.maximum(h2, 0.0)                                    # (C2, tn) f32
        f2_ref[0] = h2.astype(f2_ref.dtype)

        # ---- layer 3: MXU, bf16 operands, f32 accumulate, NO activation ------------
        h3 = jnp.dot(w3_ref[...], h2.astype(jnp.bfloat16),
                     preferred_element_type=jnp.float32) + b3_ref[...]
        f3_ref[0] = h3.astype(f3_ref.dtype)                          # bf16 store: cuts HBM bytes

        # ---- global max pool: lane-dense VPU accumulation into resident scratch ----
        h3m = h3
        if N % tn != 0:        # static check: mask padded columns of the ragged last tile
            lane = jax.lax.broadcasted_iota(jnp.int32, (1, tn), 1)
            col0 = (s * tiles_per_split + j) * tn
            h3m = jnp.where(col0 + lane < N, h3, -jnp.inf)

        m = h3m[:, 0:aw]                                             # (C3, aw)
        for c in range(1, tn // aw):                                 # VPU elementwise max
            m = jnp.maximum(m, h3m[:, c * aw:(c + 1) * aw])
        if tn % aw != 0:                                             # overlapping tail chunk
            m = jnp.maximum(m, h3m[:, tn - aw:tn])                   # (max is idempotent)
        acc_ref[...] = jnp.maximum(acc_ref[...], m)

        @pl.when(j == tiles_per_split - 1)
        def _():                                                     # one XLU reduce per chain
            g_ref[0, 0] = jnp.max(acc_ref[...], axis=1, keepdims=True)

    const = lambda shape: pl.BlockSpec(shape, lambda b, s, j: (0,) * len(shape))
    # TODO(synk): on v7x, consider pipeline_mode=pl.Buffered(1) on the constant weight/bias
    # specs so they are not double-buffered (saves ~0.5 MiB under the 64 MiB VMEM budget).

    col = lambda b, s, j: (b, 0, s * tiles_per_split + j)            # point-tile index map

    f2_bytes = jnp.dtype(f2_dtype).itemsize
    f3_bytes = jnp.dtype(f3_dtype).itemsize
    cost = pl.CostEstimate(
        flops=int(2 * (C0 * C1 + C1 * C2 + C2 * C3) * B * N),
        transcendentals=0,
        bytes_accessed=int(B * N * (C0 * 4 + C1 * 4 + C2 * f2_bytes + C3 * f3_bytes)
                           + B * n_splits * C3 * 4
                           + (C0 * C1 + C1) * 4 + (C1 * C2 + C2) * 2 + (C2 * C3 + C3) * 2),
    )

    f1, f2, f3, g3 = pl.pallas_call(
        kernel,
        out_shape=(
            jax.ShapeDtypeStruct((B, C1, N), jnp.float32),
            jax.ShapeDtypeStruct((B, C2, N), f2_dtype),
            jax.ShapeDtypeStruct((B, C3, N), f3_dtype),
            jax.ShapeDtypeStruct((B, n_splits, C3, 1), jnp.float32),
        ),
        grid_spec=pltpu.PrefetchScalarGridSpec(
            num_scalar_prefetch=0,
            grid=(B, n_splits, tiles_per_split),
            in_specs=[
                pl.BlockSpec((1, C0, tn), col),
                const((C1, C0)), const((C1, 1)),
                const((C2, C1)), const((C2, 1)),
                const((C3, C2)), const((C3, 1)),
            ],
            out_specs=[
                pl.BlockSpec((1, C1, tn), col),
                pl.BlockSpec((1, C2, tn), col),
                pl.BlockSpec((1, C3, tn), col),
                # one partial-max row per (batch, split); written once at the last tile
                pl.BlockSpec((1, 1, C3, 1), lambda b, s, j: (b, s, 0, 0)),
            ],
            scratch_shapes=[pltpu.VMEM((C3, aw), jnp.float32)],      # lane-dense max accum
        ),
        compiler_params=pltpu.CompilerParams(
            # B and the split axis are independent (megacore-parallel); the tile axis
            # carries the running max.
            dimension_semantics=("parallel", "parallel", "arbitrary"),
            # Sized for tn <= 1024: double-buffered (x, f1, f2, f3, g) blocks + weights
            # + intermediates fit comfortably on v5e / v6e / v7x (64 MiB physical).
            vmem_limit_bytes=32 * 1024 * 1024,
        ),
        cost_estimate=cost,
    )(x_bcn, w1_t, b1_c, w2_t, b2_c, w3_t, b3_c)

    feats = [f1, f2, f3]                          # already (B, C, N): no post-kernel transposes
    global_feats = jnp.max(g3, axis=1)[..., 0]    # combine per-split partial maxes -> (B, C3)
    return feats, global_feats


# ---------------------------------------------------------------------------
# Deterministic parameter construction (Conv1d(k=1) weight/bias + folded BN)
# ---------------------------------------------------------------------------
def make_params(key, channels):
    params = []
    eps = 1e-5
    for i in range(len(channels) - 1):
        cin, cout = channels[i], channels[i + 1]
        key, kw, kb, kg, kbe, km, kv = jax.random.split(key, 7)
        # Conv1d(cin, cout, 1) weight (cout, cin, 1) -> used as (cin, cout) for x@W
        w = jax.random.normal(kw, (cin, cout), jnp.float32) * 0.1
        b = jax.random.normal(kb, (cout,), jnp.float32) * 0.1
        # BatchNorm1d params / running stats (inference form)
        gamma = 1.0 + 0.1 * jax.random.normal(kg, (cout,), jnp.float32)
        beta = 0.1 * jax.random.normal(kbe, (cout,), jnp.float32)
        rmean = 0.1 * jax.random.normal(km, (cout,), jnp.float32)
        rvar = jnp.abs(jax.random.normal(kv, (cout,), jnp.float32)) + 0.5
        # fold BN into conv:  y = gamma*(Wx+b - mean)/sqrt(var+eps) + beta
        scale = gamma / jnp.sqrt(rvar + eps)
        w_f = w * scale[None, :]
        b_f = (b - rmean) * scale + beta
        params.append((w_f, b_f.reshape(1, cout)))
    return params


def reference_forward(x_bcn, params):
    """Pure-JAX f32 reference mirroring the PyTorch forward (channels-first)."""
    x = jnp.transpose(x_bcn, (0, 2, 1))
    feats = []
    for i, (w, b) in enumerate(params):
        x = x @ w + b
        if i != len(params) - 1:
            x = jnp.maximum(x, 0.0)
        feats.append(jnp.transpose(x, (0, 2, 1)))
    g = jnp.max(feats[-1], axis=2)
    return feats, g


def _check(feats, gfeat, feats_ref, gfeat_ref, tol=2e-2):
    # layers 2/3 run with bf16 MXU operands and f3 is stored bf16 -> loose tolerance
    for a, r in zip(feats, feats_ref):
        a = a.astype(jnp.float32)
        assert jnp.allclose(a, r, atol=tol, rtol=tol), float(jnp.max(jnp.abs(a - r)))
    assert jnp.allclose(gfeat, gfeat_ref, atol=tol, rtol=tol), float(
        jnp.max(jnp.abs(gfeat - gfeat_ref)))


if __name__ == "__main__":
    channels = [3, 64, 128, 1024]
    key = jax.random.PRNGKey(0)
    key, kx1, kx2 = jax.random.split(key, 3)
    params = make_params(key, channels)

    # 1) main config: B=2, N=512, single reduction chain (batch axis feeds megacore)
    B, N = 2, 512
    x = jax.random.normal(kx1, (B, channels[0], N), jnp.float32)     # (B, C, N)
    feats, gfeat = pointnet_encoder_pallas(x, params)
    jax.block_until_ready(gfeat)
    feats_ref, gfeat_ref = reference_forward(x, params)
    _check(feats, gfeat, feats_ref, gfeat_ref)

    # 2) regression config: ragged N (not a multiple of the tile) + N-axis split across
    #    2 reduction chains (the v7x small-batch path)
    B2, N2 = 1, 700
    x2 = jax.random.normal(kx2, (B2, channels[0], N2), jnp.float32)
    feats2, gfeat2 = pointnet_encoder_pallas(x2, params, tile_n=128, n_splits=2)
    jax.block_until_ready(gfeat2)
    feats2_ref, gfeat2_ref = reference_forward(x2, params)
    _check(feats2, gfeat2, feats2_ref, gfeat2_ref)

    print("KERNEL_OK")
</pallas_src>

<mosaic_0001>
module attributes {stable_mosaic.version = 11 : i64} {
  func.func @kernel(%arg0: i32, %arg1: i32, %arg2: i32, %arg3: memref<1x3x512xf32, #tpu.memory_space<vmem>>, %arg4: memref<64x3xf32, #tpu.memory_space<vmem>>, %arg5: memref<64x1xf32, #tpu.memory_space<vmem>>, %arg6: memref<128x64xbf16, #tpu.memory_space<vmem>>, %arg7: memref<128x1xf32, #tpu.memory_space<vmem>>, %arg8: memref<1024x128xbf16, #tpu.memory_space<vmem>>, %arg9: memref<1024x1xf32, #tpu.memory_space<vmem>>, %arg10: memref<1x64x512xf32, #tpu.memory_space<vmem>>, %arg11: memref<1x128x512xf32, #tpu.memory_space<vmem>>, %arg12: memref<1x1024x512xbf16, #tpu.memory_space<vmem>>, %arg13: memref<1x1x1024x1xf32, #tpu.memory_space<vmem>>, %arg14: memref<1024x128xf32, #tpu.memory_space<vmem>>) attributes {dimension_semantics = [#tpu.dimension_semantics<parallel>, #tpu.dimension_semantics<parallel>, #tpu.dimension_semantics<arbitrary>], iteration_bounds = array<i64: 2, 1, 1>, scalar_prefetch = 0 : i64, scratch_operands = 1 : i64, tpu.core_type = #tpu.core_type<tc>, window_params = [{transform_indices = @transform_0, window_bounds = array<i64: 1, 3, 512>}, {pipeline_mode = #tpu.pipeline_mode<synchronous>, transform_indices = @transform_1, window_bounds = array<i64: 64, 3>}, {pipeline_mode = #tpu.pipeline_mode<synchronous>, transform_indices = @transform_2, window_bounds = array<i64: 64, 1>}, {pipeline_mode = #tpu.pipeline_mode<synchronous>, transform_indices = @transform_3, window_bounds = array<i64: 128, 64>}, {pipeline_mode = #tpu.pipeline_mode<synchronous>, transform_indices = @transform_4, window_bounds = array<i64: 128, 1>}, {pipeline_mode = #tpu.pipeline_mode<synchronous>, transform_indices = @transform_5, window_bounds = array<i64: 1024, 128>}, {pipeline_mode = #tpu.pipeline_mode<synchronous>, transform_indices = @transform_6, window_bounds = array<i64: 1024, 1>}, {transform_indices = @transform_7, window_bounds = array<i64: 1, 64, 512>}, {transform_indices = @transform_8, window_bounds = array<i64: 1, 128, 512>}, {transform_indices = @transform_9, window_bounds = array<i64: 1, 1024, 512>}, {transform_indices = @transform_10, window_bounds = array<i64: 1, 1, 1024, 1>}]} {
    %c0_i32 = arith.constant 0 : i32
    %0 = arith.cmpi eq, %arg2, %c0_i32 : i32
    %1 = arith.extui %0 : i1 to i32
    %c0_i32_0 = arith.constant 0 : i32
    %2 = arith.cmpi ne, %1, %c0_i32_0 : i32
    scf.if %2 {
      %cst_33 = arith.constant 0xFF800000 : f32
      %65 = vector.broadcast %cst_33 : f32 to vector<1024x128xf32>
      %c0_34 = arith.constant 0 : index
      %c0_35 = arith.constant 0 : index
      %66 = vector.load %arg14[%c0_34, %c0_35] : memref<1024x128xf32, #tpu.memory_space<vmem>>, vector<1024x128xf32>
      tpu.vector_store %arg14[%c0_34, %c0_35], %65 {strides = array<i32>} : memref<1024x128xf32, #tpu.memory_space<vmem>>, vector<1024x128xf32>,
    } else {
    }
    %c0 = arith.constant 0 : index
    %c0_1 = arith.constant 0 : index
    %c0_2 = arith.constant 0 : index
    %3 = vector.load %arg3[%c0, %c0_1, %c0_2] : memref<1x3x512xf32, #tpu.memory_space<vmem>>, vector<1x3x512xf32>
    %4 = vector.shape_cast %3 : vector<1x3x512xf32> to vector<3x512xf32>
    %c0_3 = arith.constant 0 : index
    %c0_4 = arith.constant 0 : index
    %5 = vector.load %arg4[%c0_3, %c0_4] : memref<64x3xf32, #tpu.memory_space<vmem>>, vector<64x3xf32>
    %c0_5 = arith.constant 0 : index
    %c0_6 = arith.constant 0 : index
    %6 = vector.load %arg5[%c0_5, %c0_6] : memref<64x1xf32, #tpu.memory_space<vmem>>, vector<64x1xf32>
    %7 = vector.extract_strided_slice %5 {offsets = [0, 0], sizes = [64, 1], strides = [1, 1]} : vector<64x3xf32> to vector<64x1xf32>
    %8 = vector.extract_strided_slice %4 {offsets = [0, 0], sizes = [1, 512], strides = [1, 1]} : vector<3x512xf32> to vector<1x512xf32>
    %9 = vector.broadcast %7 : vector<64x1xf32> to vector<64x512xf32>
    %10 = vector.broadcast %8 : vector<1x512xf32> to vector<64x512xf32>
    %11 = arith.mulf %9, %10 : vector<64x512xf32>
    %12 = vector.broadcast %6 : vector<64x1xf32> to vector<64x512xf32>
    %13 = arith.addf %12, %11 : vector<64x512xf32>
    %14 = vector.extract_strided_slice %5 {offsets = [0, 1], sizes = [64, 1], strides = [1, 1]} : vector<64x3xf32> to vector<64x1xf32>
    %15 = vector.extract_strided_slice %4 {offsets = [1, 0], sizes = [1, 512], strides = [1, 1]} : vector<3x512xf32> to vector<1x512xf32>
    %16 = vector.broadcast %14 : vector<64x1xf32> to vector<64x512xf32>
    %17 = vector.broadcast %15 : vector<1x512xf32> to vector<64x512xf32>
    %18 = arith.mulf %16, %17 : vector<64x512xf32>
    %19 = arith.addf %13, %18 : vector<64x512xf32>
    %20 = vector.extract_strided_slice %5 {offsets = [0, 2], sizes = [64, 1], strides = [1, 1]} : vector<64x3xf32> to vector<64x1xf32>
    %21 = vector.extract_strided_slice %4 {offsets = [2, 0], sizes = [1, 512], strides = [1, 1]} : vector<3x512xf32> to vector<1x512xf32>
    %22 = vector.broadcast %20 : vector<64x1xf32> to vector<64x512xf32>
    %23 = vector.broadcast %21 : vector<1x512xf32> to vector<64x512xf32>
    %24 = arith.mulf %22, %23 : vector<64x512xf32>
    %25 = arith.addf %19, %24 : vector<64x512xf32>
    %cst = arith.constant 0.000000e+00 : f32
    %26 = vector.broadcast %cst : f32 to vector<64x512xf32>
    %27 = arith.maximumf %25, %26 : vector<64x512xf32>
    %c0_7 = arith.constant 0 : index
    %c0_8 = arith.constant 0 : index
    %c0_9 = arith.constant 0 : index
    %28 = vector.load %arg10[%c0_7, %c0_8, %c0_9] : memref<1x64x512xf32, #tpu.memory_space<vmem>>, vector<1x64x512xf32>
    %29 = vector.shape_cast %28 : vector<1x64x512xf32> to vector<64x512xf32>
    %30 = vector.shape_cast %27 : vector<64x512xf32> to vector<1x64x512xf32>
    tpu.vector_store %arg10[%c0_7, %c0_8, %c0_9], %30 {strides = array<i32>} : memref<1x64x512xf32, #tpu.memory_space<vmem>>, vector<1x64x512xf32>,
    %c0_10 = arith.constant 0 : index
    %c0_11 = arith.constant 0 : index
    %31 = vector.load %arg6[%c0_10, %c0_11] : memref<128x64xbf16, #tpu.memory_space<vmem>>, vector<128x64xbf16>
    %32 = arith.truncf %27 : vector<64x512xf32> to vector<64x512xbf16>
    %cst_12 = arith.constant dense<0.000000e+00> : vector<128x512xf32>
    %33 = tpu.matmul %31, %32, %cst_12 {dimension_numbers = #tpu.dot_dimension_numbers<[1], [0], [0], [1], [0, 0, 1, 1], [], []>} : vector<128x64xbf16>, vector<64x512xbf16>, vector<128x512xf32> -> vector<128x512xf32>
    %c0_13 = arith.constant 0 : index
    %c0_14 = arith.constant 0 : index
    %34 = vector.load %arg7[%c0_13, %c0_14] : memref<128x1xf32, #tpu.memory_space<vmem>>, vector<128x1xf32>
    %35 = vector.broadcast %34 : vector<128x1xf32> to vector<128x512xf32>
    %36 = arith.addf %33, %35 : vector<128x512xf32>
    %cst_15 = arith.constant 0.000000e+00 : f32
    %37 = vector.broadcast %cst_15 : f32 to vector<128x512xf32>
    %38 = arith.maximumf %36, %37 : vector<128x512xf32>
    %c0_16 = arith.constant 0 : index
    %c0_17 = arith.constant 0 : index
    %c0_18 = arith.constant 0 : index
    %39 = vector.load %arg11[%c0_16, %c0_17, %c0_18] : memref<1x128x512xf32, #tpu.memory_space<vmem>>, vector<1x128x512xf32>
    %40 = vector.shape_cast %39 : vector<1x128x512xf32> to vector<128x512xf32>
    %41 = vector.shape_cast %38 : vector<128x512xf32> to vector<1x128x512xf32>
    tpu.vector_store %arg11[%c0_16, %c0_17, %c0_18], %41 {strides = array<i32>} : memref<1x128x512xf32, #tpu.memory_space<vmem>>, vector<1x128x512xf32>,
    %c0_19 = arith.constant 0 : index
    %c0_20 = arith.constant 0 : index
    %42 = vector.load %arg8[%c0_19, %c0_20] : memref<1024x128xbf16, #tpu.memory_space<vmem>>, vector<1024x128xbf16>
    %43 = arith.truncf %38 : vector<128x512xf32> to vector<128x512xbf16>
    %cst_21 = arith.constant dense<0.000000e+00> : vector<1024x512xf32>
    %44 = tpu.matmul %42, %43, %cst_21 {dimension_numbers = #tpu.dot_dimension_numbers<[1], [0], [0], [1], [0, 0, 1, 1], [], []>} : vector<1024x128xbf16>, vector<128x512xbf16>, vector<1024x512xf32> -> vector<1024x512xf32>
    %c0_22 = arith.constant 0 : index
    %c0_23 = arith.constant 0 : index
    %45 = vector.load %arg9[%c0_22, %c0_23] : memref<1024x1xf32, #tpu.memory_space<vmem>>, vector<1024x1xf32>
    %46 = vector.broadcast %45 : vector<1024x1xf32> to vector<1024x512xf32>
    %47 = arith.addf %44, %46 : vector<1024x512xf32>
    %48 = arith.truncf %47 : vector<1024x512xf32> to vector<1024x512xbf16>
    %c0_24 = arith.constant 0 : index
    %c0_25 = arith.constant 0 : index
    %c0_26 = arith.constant 0 : index
    %49 = vector.load %arg12[%c0_24, %c0_25, %c0_26] : memref<1x1024x512xbf16, #tpu.memory_space<vmem>>, vector<1x1024x512xbf16>
    %50 = vector.shape_cast %49 : vector<1x1024x512xbf16> to vector<1024x512xbf16>
    %51 = vector.shape_cast %48 : vector<1024x512xbf16> to vector<1x1024x512xbf16>
    tpu.vector_store %arg12[%c0_24, %c0_25, %c0_26], %51 {strides = array<i32>} : memref<1x1024x512xbf16, #tpu.memory_space<vmem>>, vector<1x1024x512xbf16>,
    %52 = vector.extract_strided_slice %47 {offsets = [0, 0], sizes = [1024, 128], strides = [1, 1]} : vector<1024x512xf32> to vector<1024x128xf32>
    %53 = vector.extract_strided_slice %47 {offsets = [0, 128], sizes = [1024, 128], strides = [1, 1]} : vector<1024x512xf32> to vector<1024x128xf32>
    %54 = arith.maximumf %52, %53 : vector<1024x128xf32>
    %55 = vector.extract_strided_slice %47 {offsets = [0, 256], sizes = [1024, 128], strides = [1, 1]} : vector<1024x512xf32> to vector<1024x128xf32>
    %56 = arith.maximumf %54, %55 : vector<1024x128xf32>
    %57 = vector.extract_strided_slice %47 {offsets = [0, 384], sizes = [1024, 128], strides = [1, 1]} : vector<1024x512xf32> to vector<1024x128xf32>
    %58 = arith.maximumf %56, %57 : vector<1024x128xf32>
    %c0_27 = arith.constant 0 : index
    %c0_28 = arith.constant 0 : index
    %59 = vector.load %arg14[%c0_27, %c0_28] : memref<1024x128xf32, #tpu.memory_space<vmem>>, vector<1024x128xf32>
    %60 = arith.maximumf %59, %58 : vector<1024x128xf32>
    %c0_29 = arith.constant 0 : index
    %c0_30 = arith.constant 0 : index
    %61 = vector.load %arg14[%c0_29, %c0_30] : memref<1024x128xf32, #tpu.memory_space<vmem>>, vector<1024x128xf32>
    tpu.vector_store %arg14[%c0_29, %c0_30], %60 {strides = array<i32>} : memref<1024x128xf32, #tpu.memory_space<vmem>>, vector<1024x128xf32>,
    %c0_i32_31 = arith.constant 0 : i32
    %62 = arith.cmpi eq, %arg2, %c0_i32_31 : i32
    %63 = arith.extui %62 : i1 to i32
    %c0_i32_32 = arith.constant 0 : i32
    %64 = arith.cmpi ne, %63, %c0_i32_32 : i32
    scf.if %64 {
      %c0_33 = arith.constant 0 : index
      %c0_34 = arith.constant 0 : index
      %65 = vector.load %arg14[%c0_33, %c0_34] : memref<1024x128xf32, #tpu.memory_space<vmem>>, vector<1024x128xf32>
      %cst_35 = arith.constant dense<0xFF800000> : vector<1024xf32>
      %66 = vector.multi_reduction <maximumf>, %65, %cst_35 [1] : vector<1024x128xf32> to vector<1024xf32>
      %67 = vector.shape_cast %66 : vector<1024xf32> to vector<1024x1xf32>
      %c0_36 = arith.constant 0 : index
      %c0_37 = arith.constant 0 : index
      %c0_38 = arith.constant 0 : index
      %c0_39 = arith.constant 0 : index
      %68 = vector.load %arg13[%c0_36, %c0_37, %c0_38, %c0_39] : memref<1x1x1024x1xf32, #tpu.memory_space<vmem>>, vector<1x1x1024x1xf32>
      %69 = vector.shape_cast %68 : vector<1x1x1024x1xf32> to vector<1024x1xf32>
      %70 = vector.shape_cast %67 : vector<1024x1xf32> to vector<1x1x1024x1xf32>
      tpu.vector_store %arg13[%c0_36, %c0_37, %c0_38, %c0_39], %70 {strides = array<i32>} : memref<1x1x1024x1xf32, #tpu.memory_space<vmem>>, vector<1x1x1024x1xf32>,
    } else {
    }
    return
  }
  func.func @transform_0(%arg0: i32, %arg1: i32, %arg2: i32) -> (i32, i32, i32) {
    %c1_i32 = arith.constant 1 : i32
    %0 = arith.muli %arg1, %c1_i32 : i32
    %1 = arith.addi %0, %arg2 : i32
    %c0_i32 = arith.constant 0 : i32
    %c0_i32_0 = arith.constant 0 : i32
    return %arg0, %c0_i32, %1 : i32, i32, i32
  }
  func.func @transform_1(%arg0: i32, %arg1: i32, %arg2: i32) -> (i32, i32) {
    %c0_i32 = arith.constant 0 : i32
    %c0_i32_0 = arith.constant 0 : i32
    %c0_i32_1 = arith.constant 0 : i32
    return %c0_i32, %c0_i32_0 : i32, i32
  }
  func.func @transform_2(%arg0: i32, %arg1: i32, %arg2: i32) -> (i32, i32) {
    %c0_i32 = arith.constant 0 : i32
    %c0_i32_0 = arith.constant 0 : i32
    %c0_i32_1 = arith.constant 0 : i32
    return %c0_i32, %c0_i32_0 : i32, i32
  }
  func.func @transform_3(%arg0: i32, %arg1: i32, %arg2: i32) -> (i32, i32) {
    %c0_i32 = arith.constant 0 : i32
    %c0_i32_0 = arith.constant 0 : i32
    %c0_i32_1 = arith.constant 0 : i32
    return %c0_i32, %c0_i32_0 : i32, i32
  }
  func.func @transform_4(%arg0: i32, %arg1: i32, %arg2: i32) -> (i32, i32) {
    %c0_i32 = arith.constant 0 : i32
    %c0_i32_0 = arith.constant 0 : i32
    %c0_i32_1 = arith.constant 0 : i32
    return %c0_i32, %c0_i32_0 : i32, i32
  }
  func.func @transform_5(%arg0: i32, %arg1: i32, %arg2: i32) -> (i32, i32) {
    %c0_i32 = arith.constant 0 : i32
    %c0_i32_0 = arith.constant 0 : i32
    %c0_i32_1 = arith.constant 0 : i32
    return %c0_i32, %c0_i32_0 : i32, i32
  }
  func.func @transform_6(%arg0: i32, %arg1: i32, %arg2: i32) -> (i32, i32) {
    %c0_i32 = arith.constant 0 : i32
    %c0_i32_0 = arith.constant 0 : i32
    %c0_i32_1 = arith.constant 0 : i32
    return %c0_i32, %c0_i32_0 : i32, i32
  }
  func.func @transform_7(%arg0: i32, %arg1: i32, %arg2: i32) -> (i32, i32, i32) {
    %c1_i32 = arith.constant 1 : i32
    %0 = arith.muli %arg1, %c1_i32 : i32
    %1 = arith.addi %0, %arg2 : i32
    %c0_i32 = arith.constant 0 : i32
    %c0_i32_0 = arith.constant 0 : i32
    return %arg0, %c0_i32, %1 : i32, i32, i32
  }
  func.func @transform_8(%arg0: i32, %arg1: i32, %arg2: i32) -> (i32, i32, i32) {
    %c1_i32 = arith.constant 1 : i32
    %0 = arith.muli %arg1, %c1_i32 : i32
    %1 = arith.addi %0, %arg2 : i32
    %c0_i32 = arith.constant 0 : i32
    %c0_i32_0 = arith.constant 0 : i32
    return %arg0, %c0_i32, %1 : i32, i32, i32
  }
  func.func @transform_9(%arg0: i32, %arg1: i32, %arg2: i32) -> (i32, i32, i32) {
    %c1_i32 = arith.constant 1 : i32
    %0 = arith.muli %arg1, %c1_i32 : i32
    %1 = arith.addi %0, %arg2 : i32
    %c0_i32 = arith.constant 0 : i32
    %c0_i32_0 = arith.constant 0 : i32
    return %arg0, %c0_i32, %1 : i32, i32, i32
  }
  func.func @transform_10(%arg0: i32, %arg1: i32, %arg2: i32) -> (i32, i32, i32, i32) {
    %c0_i32 = arith.constant 0 : i32
    %c0_i32_0 = arith.constant 0 : i32
    %c0_i32_1 = arith.constant 0 : i32
    return %arg0, %arg1, %c0_i32, %c0_i32_0 : i32, i32, i32, i32
  }
}

</mosaic_0001>

<llo_original>
// kernel: tpu_custom_call.1
$region0: #{tpu_custom_call.1}
  #allocation0 [shape = 'u32[]', space=smem, size = 0x4, offset = 0x4, fixed_abs, tag = 'smem constant byte address 0x4 - core index']
  #allocation1 [shape = 'u32[72,128]{1,0:T(1,128)}', space=vmem, size = 0x9000, scoped, tag = 'internal scratch']
  #allocation2 [shape = 'f32[1024,128]{1,0:T(8,128)}', space=vmem, size = 0x80000, scoped, tag = 'scratch operand']
  %s0 = inlined_call_operand.vmem [shape: f32[2,3,512], index: 0, kind: input, shape index: {}]
  %s1 = inlined_call_operand.vmem [shape: f32[64,3], index: 1, kind: input, shape index: {}]
  %s2 = inlined_call_operand.vmem [shape: f32[64,1], index: 2, kind: input, shape index: {}]
  %s3 = inlined_call_operand.vmem [shape: bf16[128,64], index: 3, kind: input, shape index: {}]
  %s4 = inlined_call_operand.vmem [shape: f32[128,1], index: 4, kind: input, shape index: {}]
  %s5 = inlined_call_operand.hbm [shape: bf16[1024,128], index: 5, kind: input, shape index: {}]
  %s6 = inlined_call_operand.vmem [shape: f32[1024,1], index: 6, kind: input, shape index: {}]
  %s7 = inlined_call_operand.hbm [shape: f32[2,64,512], index: 7, kind: output, shape index: {0}]
  %s8 = inlined_call_operand.hbm [shape: f32[2,128,512], index: 8, kind: output, shape index: {1}]
  %s9 = inlined_call_operand.hbm [shape: bf16[2,1024,512], index: 9, kind: output, shape index: {2}]
  %s10 = inlined_call_operand.vmem [shape: f32[2,1,1024,1], index: 10, kind: output, shape index: {3}]
  %11 = xla_tuple %s7, %s8, %s9, %s10
  %s12 = sld [smem:[#allocation0]]
  $region97: #{tpu_custom_call.1} parent=0
    _
  %s14 = ssub.s32 1, %s12
  %s15 = scalar_select 0, %s14, %s12
  $region1: #{tpu_custom_call.1} parent=0
    #allocation3 [shape = 'u8[262144]{0}', space=vmem, size = 0x40000, scoped, tag = 'input window, operand 5, single buffered']
    #allocation4 [shape = 's32[2]{0}', space=sflag, size = 0x8, scoped, tag = 'scoped memory for tpu_custom_call.1']
    #allocation5 [shape = 's32[2]{0}', space=sflag, size = 0x8, scoped, tag = 'scoped memory for tpu_custom_call.1']
    #allocation6 [shape = 'u8[262144]{0}', space=vmem, size = 0x40000, scoped, tag = 'output window, operand 0']
    #allocation7 [shape = 'u8[524288]{0}', space=vmem, size = 0x80000, scoped, tag = 'output window, operand 1']
    #allocation8 [shape = 's32[2]{0}', space=sflag, size = 0x8, scoped, tag = 'scoped memory for tpu_custom_call.1']
    #allocation9 [shape = 'u8[2097152]{0}', space=vmem, size = 0x200000, scoped, tag = 'output window, operand 2']
    %16 = vsyncpa [#allocation4], 0
    %17 = vsyncpa [#allocation5], 0
    %s18 = scalar_lea.sflag [#allocation5], 1
    %19 = vsyncpa %s18, 0
    %20 = vsyncpa [#allocation8], 0
    %s21 = scalar_lea.sflag [#allocation8], 1
    %22 = vsyncpa %s21, 0
    loop: start=0, step=1, limit=4
    $region2: #{tpu_custom_call.1} parent=1 // loop_pre_header
      _
    $region3: #{tpu_custom_call.1} parent=1 // loop_header
      %s24 = sphi 0, %s28
      %p25 = scmp.ge.s32.totalorder %s24, 4
      %s31 = sphi 0, %s50
      %s32 = sphi 0, %s46
      %s33 = sphi 0, %s42
      %s34 = sphi 0, %s31
      %s35 = sphi 0, %s32
      %s36 = sphi 0, %s33
      %s37 = sphi 0, %s34
      %s38 = sphi 0, %s35
      %s39 = sphi 0, %s36
      %s57 = sphi 0, %s59
      %s60 = sphi 0, %s57
      %s61 = sphi 0, %s60
      %s77 = sphi 0, %s61
      %s81 = sphi 0, %s81
      %s83 = sphi 0, %s81
      %s84 = sphi 0, %s83
      %s98 = sphi 0, %s84
      %s102 = sphi 0, %s102
      %s104 = sphi 0, %s102
      %s105 = sphi 0, %s104
      %s119 = sphi 0, %s105
      %s123 = sphi 0, %s123
      %s125 = sphi 0, %s123
      %s126 = sphi 0, %s125
      %s140 = sphi 0, %s126
      %s144 = sphi 0, %s144
      %s146 = sphi 0, %s144
      %s147 = sphi 0, %s146
      %s161 = sphi 0, %s147
      %s165 = sphi 0, %s165
      %s167 = sphi 0, %s165
      %s168 = sphi 0, %s167
      %s182 = sphi 0, %s168
      %s186 = sphi 0, %s186
      %s188 = sphi 0, %s186
      %s189 = sphi 0, %s188
      %s203 = sphi 0, %s189
      %s213 = sphi 0, %s215
      %s216 = sphi 0, %s213
      %s217 = sphi 0, %s216
      %s233 = sphi 0, %s217
      %s243 = sphi 0, %s245
      %s246 = sphi 0, %s243
      %s247 = sphi 0, %s246
      %s263 = sphi 0, %s247
      %s273 = sphi 0, %s275
      %s276 = sphi 0, %s273
      %s277 = sphi 0, %s276
      %s293 = sphi 0, %s277
      %s301 = sphi 0, %s303
      %s304 = sphi 0, %s301
      %s305 = sphi 0, %s304
      %s321 = sphi 0, %s305
    $region4: #{tpu_custom_call.1} parent=1 // loop_header_branch
      %27 = sbr.rel (%p25) target = $region8
    $region5: #{tpu_custom_call.1} parent=1 // loop_body
      %s29 = ssub.s32 %s24, 1
      %s30 = ssub.s32 %s24, 2
      %s40 = sadd.s32 1, %s33
      %p41 = scmp.ge.s32.totalorder %s40, 1
      %s42 = scalar_select %p41, 0, %s40
      %s43 = sadd.s32 1, %s32
      %s44 = scalar_select %p41, %s43, %s32
      %p45 = scmp.ge.s32.totalorder %s44, 1
      %s46 = scalar_select %p45, 0, %s44
      %s47 = sadd.s32 1, %s31
      %s48 = scalar_select %p45, %s47, %s31
      %p49 = scmp.ge.s32.totalorder %s48, 2
      %s50 = scalar_select %p49, 0, %s48
      %s51 = sadd.s32 %s32, %s33
      %s52 = sadd.s32 %s46, %s42
      %s53 = ssub.s32 %s31, %s50
      %s54 = ssub.s32 %s51, %s52
      %s55 = sor.u32 %s53, %s54
      %p56 = scmp.eq.s32.totalorder %s55, 0
      %s58 = sadd.s32 %s57, 1
      %s59 = scalar_select %p56, %s57, %s58
      %p62 = pneg %p56
      %p63 = scmp.eq.s32.totalorder %s24, 1
      %p64 = por %p62, %p63
      %p65 = scmp.ne.s32.totalorder %s57, %s60
      %p66 = scmp.eq.s32.totalorder %s24, 0
      %p67 = por %p65, %p66
      %p68 = scmp.ne.s32.totalorder %s57, %s60
      %p69 = scmp.eq.s32.totalorder %s29, 1
      %p70 = por %p68, %p69
      %p71 = scmp.ne.s32.totalorder %s60, %s61
      %p72 = scmp.eq.s32.totalorder %s29, 0
      %p73 = por %p71, %p72
      %p74 = scmp.ne.s32.totalorder %s60, %s61
      %p75 = scmp.eq.s32.totalorder %s30, 1
      %p76 = por %p74, %p75
      %p78 = scmp.ne.s32.totalorder %s61, %s77
      %p79 = scmp.eq.s32.totalorder %s30, 0
      %p80 = por %p78, %p79
      %s82 = sadd.s32 %s81, 1
      %p85 = scmp.eq.s32.totalorder %s24, 1
      %p86 = scmp.ne.s32.totalorder %s81, %s83
      %p87 = scmp.eq.s32.totalorder %s24, 0
      %p88 = por %p86, %p87
      %p89 = scmp.ne.s32.totalorder %s81, %s83
      %p90 = scmp.eq.s32.totalorder %s29, 1
      %p91 = por %p89, %p90
      %p92 = scmp.ne.s32.totalorder %s83, %s84
      %p93 = scmp.eq.s32.totalorder %s29, 0
      %p94 = por %p92, %p93
      %p95 = scmp.ne.s32.totalorder %s83, %s84
      %p96 = scmp.eq.s32.totalorder %s30, 1
      %p97 = por %p95, %p96
      %p99 = scmp.ne.s32.totalorder %s84, %s98
      %p100 = scmp.eq.s32.totalorder %s30, 0
      %p101 = por %p99, %p100
      %s103 = sadd.s32 %s102, 1
      %p106 = scmp.eq.s32.totalorder %s24, 1
      %p107 = scmp.ne.s32.totalorder %s102, %s104
      %p108 = scmp.eq.s32.totalorder %s24, 0
      %p109 = por %p107, %p108
      %p110 = scmp.ne.s32.totalorder %s102, %s104
      %p111 = scmp.eq.s32.totalorder %s29, 1
      %p112 = por %p110, %p111
      %p113 = scmp.ne.s32.totalorder %s104, %s105
      %p114 = scmp.eq.s32.totalorder %s29, 0
      %p115 = por %p113, %p114
      %p116 = scmp.ne.s32.totalorder %s104, %s105
      %p117 = scmp.eq.s32.totalorder %s30, 1
      %p118 = por %p116, %p117
      %p120 = scmp.ne.s32.totalorder %s105, %s119
      %p121 = scmp.eq.s32.totalorder %s30, 0
      %p122 = por %p120, %p121
      %s124 = sadd.s32 %s123, 1
      %p127 = scmp.eq.s32.totalorder %s24, 1
      %p128 = scmp.ne.s32.totalorder %s123, %s125
      %p129 = scmp.eq.s32.totalorder %s24, 0
      %p130 = por %p128, %p129
      %p131 = scmp.ne.s32.totalorder %s123, %s125
      %p132 = scmp.eq.s32.totalorder %s29, 1
      %p133 = por %p131, %p132
      %p134 = scmp.ne.s32.totalorder %s125, %s126
      %p135 = scmp.eq.s32.totalorder %s29, 0
      %p136 = por %p134, %p135
      %p137 = scmp.ne.s32.totalorder %s125, %s126
      %p138 = scmp.eq.s32.totalorder %s30, 1
      %p139 = por %p137, %p138
      %p141 = scmp.ne.s32.totalorder %s126, %s140
      %p142 = scmp.eq.s32.totalorder %s30, 0
      %p143 = por %p141, %p142
      %s145 = sadd.s32 %s144, 1
      %p148 = scmp.eq.s32.totalorder %s24, 1
      %p149 = scmp.ne.s32.totalorder %s144, %s146
      %p150 = scmp.eq.s32.totalorder %s24, 0
      %p151 = por %p149, %p150
      %p152 = scmp.ne.s32.totalorder %s144, %s146
      %p153 = scmp.eq.s32.totalorder %s29, 1
      %p154 = por %p152, %p153
      %p155 = scmp.ne.s32.totalorder %s146, %s147
      %p156 = scmp.eq.s32.totalorder %s29, 0
      %p157 = por %p155, %p156
      %p158 = scmp.ne.s32.totalorder %s146, %s147
      %p159 = scmp.eq.s32.totalorder %s30, 1
      %p160 = por %p158, %p159
      %p162 = scmp.ne.s32.totalorder %s147, %s161
      %p163 = scmp.eq.s32.totalorder %s30, 0
      %p164 = por %p162, %p163
      %s166 = sadd.s32 %s165, 1
      %p169 = scmp.eq.s32.totalorder %s24, 1
      %p170 = scmp.ne.s32.totalorder %s165, %s167
      %p171 = scmp.eq.s32.totalorder %s24, 0
      %p172 = por %p170, %p171
      %p173 = scmp.ne.s32.totalorder %s165, %s167
      %p174 = scmp.eq.s32.totalorder %s29, 1
      %p175 = por %p173, %p174
      %p176 = scmp.ne.s32.totalorder %s167, %s168
      %p177 = scmp.eq.s32.totalorder %s29, 0
      %p178 = por %p176, %p177
      %p179 = scmp.ne.s32.totalorder %s167, %s168
      %p180 = scmp.eq.s32.totalorder %s30, 1
      %p181 = por %p179, %p180
      %p183 = scmp.ne.s32.totalorder %s168, %s182
      %p184 = scmp.eq.s32.totalorder %s30, 0
      %p185 = por %p183, %p184
      %s187 = sadd.s32 %s186, 1
      %p190 = scmp.eq.s32.totalorder %s24, 1
      %p191 = scmp.ne.s32.totalorder %s186, %s188
      %p192 = scmp.eq.s32.totalorder %s24, 0
      %p193 = por %p191, %p192
      %p194 = scmp.ne.s32.totalorder %s186, %s188
      %p195 = scmp.eq.s32.totalorder %s29, 1
      %p196 = por %p194, %p195
      %p197 = scmp.ne.s32.totalorder %s188, %s189
      %p198 = scmp.eq.s32.totalorder %s29, 0
      %p199 = por %p197, %p198
      %p200 = scmp.ne.s32.totalorder %s188, %s189
      %p201 = scmp.eq.s32.totalorder %s30, 1
      %p202 = por %p200, %p201
      %p204 = scmp.ne.s32.totalorder %s189, %s203
      %p205 = scmp.eq.s32.totalorder %s30, 0
      %p206 = por %p204, %p205
      %s207 = sadd.s32 %s32, %s33
      %s208 = sadd.s32 %s46, %s42
      %s209 = ssub.s32 %s31, %s50
      %s210 = ssub.s32 %s207, %s208
      %s211 = sor.u32 %s209, %s210
      %p212 = scmp.eq.s32.totalorder %s211, 0
      %s214 = sadd.s32 %s213, 1
      %s215 = scalar_select %p212, %s213, %s214
      %p218 = pneg %p212
      %p219 = scmp.eq.s32.totalorder %s24, 1
      %p220 = por %p218, %p219
      %p221 = scmp.ne.s32.totalorder %s213, %s216
      %p222 = scmp.eq.s32.totalorder %s24, 0
      %p223 = por %p221, %p222
      %p224 = scmp.ne.s32.totalorder %s213, %s216
      %p225 = scmp.eq.s32.totalorder %s29, 1
      %p226 = por %p224, %p225
      %p227 = scmp.ne.s32.totalorder %s216, %s217
      %p228 = scmp.eq.s32.totalorder %s29, 0
      %p229 = por %p227, %p228
      %p230 = scmp.ne.s32.totalorder %s216, %s217
      %p231 = scmp.eq.s32.totalorder %s30, 1
      %p232 = por %p230, %p231
      %p234 = scmp.ne.s32.totalorder %s217, %s233
      %p235 = scmp.eq.s32.totalorder %s30, 0
      %p236 = por %p234, %p235
      %s237 = sadd.s32 %s32, %s33
      %s238 = sadd.s32 %s46, %s42
      %s239 = ssub.s32 %s31, %s50
      %s240 = ssub.s32 %s237, %s238
      %s241 = sor.u32 %s239, %s240
      %p242 = scmp.eq.s32.totalorder %s241, 0
      %s244 = sadd.s32 %s243, 1
      %s245 = scalar_select %p242, %s243, %s244
      %p248 = pneg %p242
      %p249 = scmp.eq.s32.totalorder %s24, 1
      %p250 = por %p248, %p249
      %p251 = scmp.ne.s32.totalorder %s243, %s246
      %p252 = scmp.eq.s32.totalorder %s24, 0
      %p253 = por %p251, %p252
      %p254 = scmp.ne.s32.totalorder %s243, %s246
      %p255 = scmp.eq.s32.totalorder %s29, 1
      %p256 = por %p254, %p255
      %p257 = scmp.ne.s32.totalorder %s246, %s247
      %p258 = scmp.eq.s32.totalorder %s29, 0
      %p259 = por %p257, %p258
      %p260 = scmp.ne.s32.totalorder %s246, %s247
      %p261 = scmp.eq.s32.totalorder %s30, 1
      %p262 = por %p260, %p261
      %p264 = scmp.ne.s32.totalorder %s247, %s263
      %p265 = scmp.eq.s32.totalorder %s30, 0
      %p266 = por %p264, %p265
      %s267 = sadd.s32 %s32, %s33
      %s268 = sadd.s32 %s46, %s42
      %s269 = ssub.s32 %s31, %s50
      %s270 = ssub.s32 %s267, %s268
      %s271 = sor.u32 %s269, %s270
      %p272 = scmp.eq.s32.totalorder %s271, 0
      %s274 = sadd.s32 %s273, 1
      %s275 = scalar_select %p272, %s273, %s274
      %p278 = pneg %p272
      %p279 = scmp.eq.s32.totalorder %s24, 1
      %p280 = por %p278, %p279
      %p281 = scmp.ne.s32.totalorder %s273, %s276
      %p282 = scmp.eq.s32.totalorder %s24, 0
      %p283 = por %p281, %p282
      %p284 = scmp.ne.s32.totalorder %s273, %s276
      %p285 = scmp.eq.s32.totalorder %s29, 1
      %p286 = por %p284, %p285
      %p287 = scmp.ne.s32.totalorder %s276, %s277
      %p288 = scmp.eq.s32.totalorder %s29, 0
      %p289 = por %p287, %p288
      %p290 = scmp.ne.s32.totalorder %s276, %s277
      %p291 = scmp.eq.s32.totalorder %s30, 1
      %p292 = por %p290, %p291
      %p294 = scmp.ne.s32.totalorder %s277, %s293
      %p295 = scmp.eq.s32.totalorder %s30, 0
      %p296 = por %p294, %p295
      %s297 = ssub.s32 %s31, %s50
      %s298 = ssub.s32 %s32, %s46
      %s299 = sor.u32 %s297, %s298
      %p300 = scmp.eq.s32.totalorder %s299, 0
      %s302 = sadd.s32 %s301, 1
      %s303 = scalar_select %p300, %s301, %s302
      %p306 = pneg %p300
      %p307 = scmp.eq.s32.totalorder %s24, 1
      %p308 = por %p306, %p307
      %p309 = scmp.ne.s32.totalorder %s301, %s304
      %p310 = scmp.eq.s32.totalorder %s24, 0
      %p311 = por %p309, %p310
      %p312 = scmp.ne.s32.totalorder %s301, %s304
      %p313 = scmp.eq.s32.totalorder %s29, 1
      %p314 = por %p312, %p313
      %p315 = scmp.ne.s32.totalorder %s304, %s305
      %p316 = scmp.eq.s32.totalorder %s29, 0
      %p317 = por %p315, %p316
      %p318 = scmp.ne.s32.totalorder %s304, %s305
      %p319 = scmp.eq.s32.totalorder %s30, 1
      %p320 = por %p318, %p319
      %p322 = scmp.ne.s32.totalorder %s305, %s321
      %p323 = scmp.eq.s32.totalorder %s30, 0
      %p324 = por %p322, %p323
      %p325 = scmp.le.s32.totalorder 1, %s24
      %p326 = scmp.lt.s32.totalorder %s24, 3
      %p327 = pnand %p325, %p326
      %p328 = pneg %p327
      // Predicated region
      $region9: #{tpu_custom_call.1} parent=5 // pred_check
        _
      $region10: #{tpu_custom_call.1} parent=5 // pred_check_branch
        %330 = sbr.rel (%p327) target = $region12
      $region11: #{tpu_custom_call.1} parent=5 // pred_region
        %s331 = ssub.s32 %s24, 1
        // Predicated region
        $region13: #{tpu_custom_call.1} parent=11 // pred_check
          %p332 = pneg %p94
        $region14: #{tpu_custom_call.1} parent=11 // pred_check_branch
          %334 = sbr.rel (%p332) target = $region16
        $region15: #{tpu_custom_call.1} parent=11 // pred_region
          _
        $region16: #{tpu_custom_call.1} parent=11 // pred_fallthru
          _
        // Predicated region
        $region17: #{tpu_custom_call.1} parent=11 // pred_check
          %p335 = pneg %p115
        $region18: #{tpu_custom_call.1} parent=11 // pred_check_branch
          %337 = sbr.rel (%p335) target = $region20
        $region19: #{tpu_custom_call.1} parent=11 // pred_region
          _
        $region20: #{tpu_custom_call.1} parent=11 // pred_fallthru
          _
        // Predicated region
        $region21: #{tpu_custom_call.1} parent=11 // pred_check
          %p338 = pneg %p136
        $region22: #{tpu_custom_call.1} parent=11 // pred_check_branch
          %340 = sbr.rel (%p338) target = $region24
        $region23: #{tpu_custom_call.1} parent=11 // pred_region
          _
        $region24: #{tpu_custom_call.1} parent=11 // pred_fallthru
          _
        // Predicated region
        $region25: #{tpu_custom_call.1} parent=11 // pred_check
          %p341 = pneg %p157
        $region26: #{tpu_custom_call.1} parent=11 // pred_check_branch
          %343 = sbr.rel (%p341) target = $region28
        $region27: #{tpu_custom_call.1} parent=11 // pred_region
          _
        $region28: #{tpu_custom_call.1} parent=11 // pred_fallthru
          _
        // Predicated region
        $region29: #{tpu_custom_call.1} parent=11 // pred_check
          %p344 = pneg %p178
        $region30: #{tpu_custom_call.1} parent=11 // pred_check_branch
          %346 = sbr.rel (%p344) target = $region32
        $region31: #{tpu_custom_call.1} parent=11 // pred_region
          %348 = vsyncadd [#allocation4], 0
          %s349 = sshll.u32 %s5, 4
          %s350 = int_to_ptr.hbm [resolvable:$true] %s349
          %s351 = sshll.u32 [#allocation3], 4
          %s352 = int_to_ptr.vmem [resolvable:$true] %s351
          %357 = dma.hbm_to_vmem [thread:$0]  %s350, 8192, %s352, [#allocation4], 64, 64, 4
        $region32: #{tpu_custom_call.1} parent=11 // pred_fallthru
          _
        // Predicated region
        $region33: #{tpu_custom_call.1} parent=11 // pred_check
          %p358 = pneg %p199
        $region34: #{tpu_custom_call.1} parent=11 // pred_check_branch
          %360 = sbr.rel (%p358) target = $region36
        $region35: #{tpu_custom_call.1} parent=11 // pred_region
          _
        $region36: #{tpu_custom_call.1} parent=11 // pred_fallthru
          _
      $region12: #{tpu_custom_call.1} parent=5 // pred_fallthru
        _
      %p361 = scmp.lt.s32.totalorder %s24, 2
      // Predicated region
      $region37: #{tpu_custom_call.1} parent=5 // pred_check
        %p362 = pneg %p361
      $region38: #{tpu_custom_call.1} parent=5 // pred_check_branch
        %364 = sbr.rel (%p362) target = $region40
      $region39: #{tpu_custom_call.1} parent=5 // pred_region
        // Predicated region
        $region41: #{tpu_custom_call.1} parent=39 // pred_check
          %p365 = pneg %p67
        $region42: #{tpu_custom_call.1} parent=39 // pred_check_branch
          %367 = sbr.rel (%p365) target = $region44
        $region43: #{tpu_custom_call.1} parent=39 // pred_region
          %s368 = sadd.s32 %s32, %s33
          %s369 = smul.u32 4, %s368
          %p370 = scmp.lt.s32.totalorder %s31, 1
          %s371 = scalar_select %p370, %s31, 1
          %p372 = scmp.lt.s32.totalorder %s369, 3
          %s373 = scalar_select %p372, %s369, 3
          %s374 = smul.addr %s371, 4
          %s375 = sadd.s32 %s373, %s374
          %s376 = smul.addr %s375, 4
          %s377 = scalar_lea.vmem %s0, %s376
          %s378 = sadd.s32 %s32, %s33
          %s379 = smul.u32 4, %s378
        $region44: #{tpu_custom_call.1} parent=39 // pred_fallthru
          _
      $region40: #{tpu_custom_call.1} parent=5 // pred_fallthru
        _
      %p380 = scmp.le.s32.totalorder 1, %s24
      %p381 = scmp.lt.s32.totalorder %s24, 3
      %p382 = pnand %p380, %p381
      %p383 = pneg %p382
      // Predicated region
      $region45: #{tpu_custom_call.1} parent=5 // pred_check
        _
      $region46: #{tpu_custom_call.1} parent=5 // pred_check_branch
        %385 = sbr.rel (%p382) target = $region48
      $region47: #{tpu_custom_call.1} parent=5 // pred_region
        %s386 = ssub.s32 %s24, 1
        // Predicated region
        $region49: #{tpu_custom_call.1} parent=47 // pred_check
          %p387 = pneg %p178
        $region50: #{tpu_custom_call.1} parent=47 // pred_check_branch
          %389 = sbr.rel (%p387) target = $region52
        $region51: #{tpu_custom_call.1} parent=47 // pred_region
          %391 = dma.done [#allocation4], 8192
        $region52: #{tpu_custom_call.1} parent=47 // pred_fallthru
          _
        %s392 = sadd.s32 %s35, %s36
        %s393 = smul.u32 4, %s392
        %p394 = scmp.lt.s32.totalorder %s34, 1
        %s395 = scalar_select %p394, %s34, 1
        %p396 = scmp.lt.s32.totalorder %s393, 3
        %s397 = scalar_select %p396, %s393, 3
        %s398 = smul.addr %s395, 4
        %s399 = sadd.s32 %s397, %s398
        %s400 = smul.addr %s399, 4
        %s401 = scalar_lea.vmem %s0, %s400
        %p402 = pneg %p73
        %p403 = pneg %p70
        %p404 = pneg %p94
        %p405 = pneg %p91
        %p406 = pneg %p115
        %p407 = pneg %p112
        %p408 = pneg %p136
        %p409 = pneg %p133
        %p410 = pneg %p157
        %p411 = pneg %p154
        %p412 = pneg %p178
        %p413 = pneg %p175
        %p414 = pneg %p199
        %p415 = pneg %p196
        %p416 = pneg %p229
        %p417 = pneg %p226
        %s418 = sand.u32 %s216, 1
        %s419 = scalar_lea.sflag [#allocation5], %s418
        %s420 = sand.u32 %s216, 1
        %s421 = smul.addr %s420, 256
        %s422 = scalar_lea.vmem [#allocation6], %s421
        %p423 = pneg %p259
        %p424 = pneg %p256
        %s425 = sand.u32 %s29, 1
        %s426 = scalar_lea.sflag [#allocation8], %s425
        %s427 = sand.u32 %s246, 1
        %s428 = smul.addr %s427, 512
        %s429 = scalar_lea.vmem [#allocation7], %s428
        %p430 = pneg %p289
        %p431 = pneg %p286
        %s432 = sand.u32 %s29, 1
        %s433 = scalar_lea.sflag [#allocation8], %s432
        %s434 = sand.u32 %s276, 1
        %s435 = smul.addr %s434, 2048
        %s436 = scalar_lea.vmem [#allocation9], %s435
        %p437 = pneg %p317
        %p438 = pneg %p314
        %p439 = scmp.lt.s32.totalorder %s34, 1
        %s440 = scalar_select %p439, %s34, 1
        %p441 = scmp.lt.s32.totalorder %s35, 0
        %s442 = scalar_select %p441, %s35, 0
        %s443 = smul.addr %s442, 128
        %s444 = smul.addr %s440, 128
        %s445 = sadd.s32 %s443, %s444
        %s446 = smul.addr %s445, 8
        %s447 = scalar_lea.vmem %s10, %s446
        %s448 = sadd.s32 %s35, %s36
        %s449 = smul.u32 4, %s448
        %p450 = scmp.lt.s32.totalorder %s34, 1
        %s451 = scalar_select %p450, %s34, 1
        %p452 = scmp.lt.s32.totalorder %s449, 3
        %s453 = scalar_select %p452, %s449, 3
        %s454 = smul.addr %s451, 4
        %s455 = sadd.s32 %s453, %s454
        %s456 = smul.addr %s455, 4
        %s457 = scalar_lea.vmem %s0, %s456
        %s458 = sadd.s32 %s35, %s36
        %s459 = smul.u32 4, %s458
        %s460 = sadd.s32 %s35, %s36
        %s461 = smul.u32 4, %s460
        %s462 = sadd.s32 %s35, %s36
        %s463 = smul.u32 4, %s462
        %s464 = sadd.s32 %s35, %s36
        %s465 = smul.u32 4, %s464
        %p466 = scmp.lt.s32.totalorder %s34, 1
        %s467 = scalar_select %p466, %s34, 1
        %p468 = scmp.lt.s32.totalorder %s35, 0
        %s469 = scalar_select %p468, %s35, 0
        %s470 = smul.addr %s469, 128
        %s471 = smul.addr %s467, 128
        %s472 = sadd.s32 %s470, %s471
        %s473 = smul.addr %s472, 8
        %s474 = scalar_lea.vmem %s10, %s473
        %p476 = scmp.eq.s32.totalorder %s36, 0
        // Predicated region
        $region53: #{tpu_custom_call.1} parent=47 // pred_check
          %p477 = pneg %p476
        $region54: #{tpu_custom_call.1} parent=47 // pred_check_branch
          %479 = sbr.rel (%p477) target = $region56
        $region55: #{tpu_custom_call.1} parent=47 // pred_region
          %480 = vst [vmem:[#allocation2] sm:$0xff] -inf
          %481 = vst [vmem:[#allocation2 + $0x8] sm:$0xff] -inf
          %482 = vst [vmem:[#allocation2 + $0x10] sm:$0xff] -inf
          %483 = vst [vmem:[#allocation2 + $0x18] sm:$0xff] -inf
          %484 = vst [vmem:[#allocation2 + $0x20] sm:$0xff] -inf
          %485 = vst [vmem:[#allocation2 + $0x28] sm:$0xff] -inf
          %486 = vst [vmem:[#allocation2 + $0x30] sm:$0xff] -inf
          %487 = vst [vmem:[#allocation2 + $0x38] sm:$0xff] -inf
          %488 = vst [vmem:[#allocation2 + $0x40] sm:$0xff] -inf
          %489 = vst [vmem:[#allocation2 + $0x48] sm:$0xff] -inf
          %490 = vst [vmem:[#allocation2 + $0x50] sm:$0xff] -inf
          %491 = vst [vmem:[#allocation2 + $0x58] sm:$0xff] -inf
          %492 = vst [vmem:[#allocation2 + $0x60] sm:$0xff] -inf
          %493 = vst [vmem:[#allocation2 + $0x68] sm:$0xff] -inf
          %494 = vst [vmem:[#allocation2 + $0x70] sm:$0xff] -inf
          %495 = vst [vmem:[#allocation2 + $0x78] sm:$0xff] -inf
          %496 = vst [vmem:[#allocation2 + $0x80] sm:$0xff] -inf
          %497 = vst [vmem:[#allocation2 + $0x88] sm:$0xff] -inf
          %498 = vst [vmem:[#allocation2 + $0x90] sm:$0xff] -inf
          %499 = vst [vmem:[#allocation2 + $0x98] sm:$0xff] -inf
          %500 = vst [vmem:[#allocation2 + $0xa0] sm:$0xff] -inf
          %501 = vst [vmem:[#allocation2 + $0xa8] sm:$0xff] -inf
          %502 = vst [vmem:[#allocation2 + $0xb0] sm:$0xff] -inf
          %503 = vst [vmem:[#allocation2 + $0xb8] sm:$0xff] -inf
          %504 = vst [vmem:[#allocation2 + $0xc0] sm:$0xff] -inf
          %505 = vst [vmem:[#allocation2 + $0xc8] sm:$0xff] -inf
          %506 = vst [vmem:[#allocation2 + $0xd0] sm:$0xff] -inf
          %507 = vst [vmem:[#allocation2 + $0xd8] sm:$0xff] -inf
          %508 = vst [vmem:[#allocation2 + $0xe0] sm:$0xff] -inf
          %509 = vst [vmem:[#allocation2 + $0xe8] sm:$0xff] -inf
          %510 = vst [vmem:[#allocation2 + $0xf0] sm:$0xff] -inf
          %511 = vst [vmem:[#allocation2 + $0xf8] sm:$0xff] -inf
          %512 = vst [vmem:[#allocation2 + $0x100] sm:$0xff] -inf
          %513 = vst [vmem:[#allocation2 + $0x108] sm:$0xff] -inf
          %514 = vst [vmem:[#allocation2 + $0x110] sm:$0xff] -inf
          %515 = vst [vmem:[#allocation2 + $0x118] sm:$0xff] -inf
          %516 = vst [vmem:[#allocation2 + $0x120] sm:$0xff] -inf
          %517 = vst [vmem:[#allocation2 + $0x128] sm:$0xff] -inf
          %518 = vst [vmem:[#allocation2 + $0x130] sm:$0xff] -inf
          %519 = vst [vmem:[#allocation2 + $0x138] sm:$0xff] -inf
          %520 = vst [vmem:[#allocation2 + $0x140] sm:$0xff] -inf
          %521 = vst [vmem:[#allocation2 + $0x148] sm:$0xff] -inf
          %522 = vst [vmem:[#allocation2 + $0x150] sm:$0xff] -inf
          %523 = vst [vmem:[#allocation2 + $0x158] sm:$0xff] -inf
          %524 = vst [vmem:[#allocation2 + $0x160] sm:$0xff] -inf
          %525 = vst [vmem:[#allocation2 + $0x168] sm:$0xff] -inf
          %526 = vst [vmem:[#allocation2 + $0x170] sm:$0xff] -inf
          %527 = vst [vmem:[#allocation2 + $0x178] sm:$0xff] -inf
          %528 = vst [vmem:[#allocation2 + $0x180] sm:$0xff] -inf
          %529 = vst [vmem:[#allocation2 + $0x188] sm:$0xff] -inf
          %530 = vst [vmem:[#allocation2 + $0x190] sm:$0xff] -inf
          %531 = vst [vmem:[#allocation2 + $0x198] sm:$0xff] -inf
          %532 = vst [vmem:[#allocation2 + $0x1a0] sm:$0xff] -inf
          %533 = vst [vmem:[#allocation2 + $0x1a8] sm:$0xff] -inf
          %534 = vst [vmem:[#allocation2 + $0x1b0] sm:$0xff] -inf
          %535 = vst [vmem:[#allocation2 + $0x1b8] sm:$0xff] -inf
          %536 = vst [vmem:[#allocation2 + $0x1c0] sm:$0xff] -inf
          %537 = vst [vmem:[#allocation2 + $0x1c8] sm:$0xff] -inf
          %538 = vst [vmem:[#allocation2 + $0x1d0] sm:$0xff] -inf
          %539 = vst [vmem:[#allocation2 + $0x1d8] sm:$0xff] -inf
          %540 = vst [vmem:[#allocation2 + $0x1e0] sm:$0xff] -inf
          %541 = vst [vmem:[#allocation2 + $0x1e8] sm:$0xff] -inf
          %542 = vst [vmem:[#allocation2 + $0x1f0] sm:$0xff] -inf
          %543 = vst [vmem:[#allocation2 + $0x1f8] sm:$0xff] -inf
          %544 = vst [vmem:[#allocation2 + $0x200] sm:$0xff] -inf
          %545 = vst [vmem:[#allocation2 + $0x208] sm:$0xff] -inf
          %546 = vst [vmem:[#allocation2 + $0x210] sm:$0xff] -inf
          %547 = vst [vmem:[#allocation2 + $0x218] sm:$0xff] -inf
          %548 = vst [vmem:[#allocation2 + $0x220] sm:$0xff] -inf
          %549 = vst [vmem:[#allocation2 + $0x228] sm:$0xff] -inf
          %550 = vst [vmem:[#allocation2 + $0x230] sm:$0xff] -inf
          %551 = vst [vmem:[#allocation2 + $0x238] sm:$0xff] -inf
          %552 = vst [vmem:[#allocation2 + $0x240] sm:$0xff] -inf
          %553 = vst [vmem:[#allocation2 + $0x248] sm:$0xff] -inf
          %554 = vst [vmem:[#allocation2 + $0x250] sm:$0xff] -inf
          %555 = vst [vmem:[#allocation2 + $0x258] sm:$0xff] -inf
          %556 = vst [vmem:[#allocation2 + $0x260] sm:$0xff] -inf
          %557 = vst [vmem:[#allocation2 + $0x268] sm:$0xff] -inf
          %558 = vst [vmem:[#allocation2 + $0x270] sm:$0xff] -inf
          %559 = vst [vmem:[#allocation2 + $0x278] sm:$0xff] -inf
          %560 = vst [vmem:[#allocation2 + $0x280] sm:$0xff] -inf
          %561 = vst [vmem:[#allocation2 + $0x288] sm:$0xff] -inf
          %562 = vst [vmem:[#allocation2 + $0x290] sm:$0xff] -inf
          %563 = vst [vmem:[#allocation2 + $0x298] sm:$0xff] -inf
          %564 = vst [vmem:[#allocation2 + $0x2a0] sm:$0xff] -inf
          %565 = vst [vmem:[#allocation2 + $0x2a8] sm:$0xff] -inf
          %566 = vst [vmem:[#allocation2 + $0x2b0] sm:$0xff] -inf
          %567 = vst [vmem:[#allocation2 + $0x2b8] sm:$0xff] -inf
          %568 = vst [vmem:[#allocation2 + $0x2c0] sm:$0xff] -inf
          %569 = vst [vmem:[#allocation2 + $0x2c8] sm:$0xff] -inf
          %570 = vst [vmem:[#allocation2 + $0x2d0] sm:$0xff] -inf
          %571 = vst [vmem:[#allocation2 + $0x2d8] sm:$0xff] -inf
          %572 = vst [vmem:[#allocation2 + $0x2e0] sm:$0xff] -inf
          %573 = vst [vmem:[#allocation2 + $0x2e8] sm:$0xff] -inf
          %574 = vst [vmem:[#allocation2 + $0x2f0] sm:$0xff] -inf
          %575 = vst [vmem:[#allocation2 + $0x2f8] sm:$0xff] -inf
          %576 = vst [vmem:[#allocation2 + $0x300] sm:$0xff] -inf
          %577 = vst [vmem:[#allocation2 + $0x308] sm:$0xff] -inf
          %578 = vst [vmem:[#allocation2 + $0x310] sm:$0xff] -inf
          %579 = vst [vmem:[#allocation2 + $0x318] sm:$0xff] -inf
          %580 = vst [vmem:[#allocation2 + $0x320] sm:$0xff] -inf
          %581 = vst [vmem:[#allocation2 + $0x328] sm:$0xff] -inf
          %582 = vst [vmem:[#allocation2 + $0x330] sm:$0xff] -inf
          %583 = vst [vmem:[#allocation2 + $0x338] sm:$0xff] -inf
          %584 = vst [vmem:[#allocation2 + $0x340] sm:$0xff] -inf
          %585 = vst [vmem:[#allocation2 + $0x348] sm:$0xff] -inf
          %586 = vst [vmem:[#allocation2 + $0x350] sm:$0xff] -inf
          %587 = vst [vmem:[#allocation2 + $0x358] sm:$0xff] -inf
          %588 = vst [vmem:[#allocation2 + $0x360] sm:$0xff] -inf
          %589 = vst [vmem:[#allocation2 + $0x368] sm:$0xff] -inf
          %590 = vst [vmem:[#allocation2 + $0x370] sm:$0xff] -inf
          %591 = vst [vmem:[#allocation2 + $0x378] sm:$0xff] -inf
          %592 = vst [vmem:[#allocation2 + $0x380] sm:$0xff] -inf
          %593 = vst [vmem:[#allocation2 + $0x388] sm:$0xff] -inf
          %594 = vst [vmem:[#allocation2 + $0x390] sm:$0xff] -inf
          %595 = vst [vmem:[#allocation2 + $0x398] sm:$0xff] -inf
          %596 = vst [vmem:[#allocation2 + $0x3a0] sm:$0xff] -inf
          %597 = vst [vmem:[#allocation2 + $0x3a8] sm:$0xff] -inf
          %598 = vst [vmem:[#allocation2 + $0x3b0] sm:$0xff] -inf
          %599 = vst [vmem:[#allocation2 + $0x3b8] sm:$0xff] -inf
          %600 = vst [vmem:[#allocation2 + $0x3c0] sm:$0xff] -inf
          %601 = vst [vmem:[#allocation2 + $0x3c8] sm:$0xff] -inf
          %602 = vst [vmem:[#allocation2 + $0x3d0] sm:$0xff] -inf
          %603 = vst [vmem:[#allocation2 + $0x3d8] sm:$0xff] -inf
          %604 = vst [vmem:[#allocation2 + $0x3e0] sm:$0xff] -inf
          %605 = vst [vmem:[#allocation2 + $0x3e8] sm:$0xff] -inf
          %606 = vst [vmem:[#allocation2 + $0x3f0] sm:$0xff] -inf
          %607 = vst [vmem:[#allocation2 + $0x3f8] sm:$0xff] -inf
        $region56: #{tpu_custom_call.1} parent=47 // pred_fallthru
          _
        %v608 = vld [vmem:[%s457] sm:$0x77]
        %v609 = vld [vmem:[%s457 + $0x8] sm:$0x77]
        %v610 = vld [vmem:[%s1] sm:$0xff]
        %v611 = vld [vmem:[%s1 + $0x8] sm:$0xff]
        %v612 = vld [vmem:[%s1 + $0x10] sm:$0xff]
        %v613 = vld [vmem:[%s1 + $0x18] sm:$0xff]
        %v614 = vld [vmem:[%s1 + $0x20] sm:$0xff]
        %v615 = vld [vmem:[%s1 + $0x28] sm:$0xff]
        %v616 = vld [vmem:[%s1 + $0x30] sm:$0xff]
        %v617 = vld [vmem:[%s1 + $0x38] sm:$0xff]
        %v618 = vld [vmem:[%s2] sm:$0xff]
        %v619 = vld [vmem:[%s2 + $0x8] sm:$0xff]
        %v620 = vld [vmem:[%s2 + $0x10] sm:$0xff]
        %v621 = vld [vmem:[%s2 + $0x18] sm:$0xff]
        %v622 = vld [vmem:[%s2 + $0x20] sm:$0xff]
        %v623 = vld [vmem:[%s2 + $0x28] sm:$0xff]
        %v624 = vld [vmem:[%s2 + $0x30] sm:$0xff]
        %v625 = vld [vmem:[%s2 + $0x38] sm:$0xff]
        %627 = vset.pattern.permute.xlu0 0
        %628 = vperm.xlu0 %627, %v610
        %v629 = vpop.permute.xlu0 %628
        %632 = vset.pattern.permute.xlu0 0
        %633 = vperm.xlu0 %632, %v611
        %v634 = vpop.permute.xlu0 %633
        %637 = vset.pattern.permute.xlu0 0
        %638 = vperm.xlu0 %637, %v612
        %v639 = vpop.permute.xlu0 %638
        %642 = vset.pattern.permute.xlu0 0
        %643 = vperm.xlu0 %642, %v613
        %v644 = vpop.permute.xlu0 %643
        %647 = vset.pattern.permute.xlu0 0
        %648 = vperm.xlu0 %647, %v614
        %v649 = vpop.permute.xlu0 %648
        %652 = vset.pattern.permute.xlu0 0
        %653 = vperm.xlu0 %652, %v615
        %v654 = vpop.permute.xlu0 %653
        %657 = vset.pattern.permute.xlu0 0
        %658 = vperm.xlu0 %657, %v616
        %v659 = vpop.permute.xlu0 %658
        %662 = vset.pattern.permute.xlu0 0
        %663 = vperm.xlu0 %662, %v617
        %v664 = vpop.permute.xlu0 %663
        %v668 = vperm.slane %v608, 0
        %v669 = vperm.slane %v608, 4
        %v670 = vperm.slane %v609, 0
        %v671 = vperm.slane %v609, 4
        %v676 = vperm.slane %v668, 0
        %v677 = vperm.slane %v669, 0
        %v678 = vperm.slane %v670, 0
        %v679 = vperm.slane %v671, 0
        %v680 = vmul.f32 %v629, %v676
        %v681 = vmul.f32 %v629, %v677
        %v682 = vmul.f32 %v629, %v678
        %v683 = vmul.f32 %v629, %v679
        %v684 = vmul.f32 %v634, %v676
        %v685 = vmul.f32 %v634, %v677
        %v686 = vmul.f32 %v634, %v678
        %v687 = vmul.f32 %v634, %v679
        %v688 = vmul.f32 %v639, %v676
        %v689 = vmul.f32 %v639, %v677
        %v690 = vmul.f32 %v639, %v678
        %v691 = vmul.f32 %v639, %v679
        %v692 = vmul.f32 %v644, %v676
        %v693 = vmul.f32 %v644, %v677
        %v694 = vmul.f32 %v644, %v678
        %v695 = vmul.f32 %v644, %v679
        %v696 = vmul.f32 %v649, %v676
        %v697 = vmul.f32 %v649, %v677
        %v698 = vmul.f32 %v649, %v678
        %v699 = vmul.f32 %v649, %v679
        %v700 = vmul.f32 %v654, %v676
        %v701 = vmul.f32 %v654, %v677
        %v702 = vmul.f32 %v654, %v678
        %v703 = vmul.f32 %v654, %v679
        %v704 = vmul.f32 %v659, %v676
        %v705 = vmul.f32 %v659, %v677
        %v706 = vmul.f32 %v659, %v678
        %v707 = vmul.f32 %v659, %v679
        %v708 = vmul.f32 %v664, %v676
        %v709 = vmul.f32 %v664, %v677
        %v710 = vmul.f32 %v664, %v678
        %v711 = vmul.f32 %v664, %v679
        %713 = vset.pattern.permute.xlu0 0
        %714 = vperm.xlu0 %713, %v618
        %v715 = vpop.permute.xlu0 %714
        %718 = vset.pattern.permute.xlu0 0
        %719 = vperm.xlu0 %718, %v619
        %v720 = vpop.permute.xlu0 %719
        %723 = vset.pattern.permute.xlu0 0
        %724 = vperm.xlu0 %723, %v620
        %v725 = vpop.permute.xlu0 %724
        %728 = vset.pattern.permute.xlu0 0
        %729 = vperm.xlu0 %728, %v621
        %v730 = vpop.permute.xlu0 %729
        %733 = vset.pattern.permute.xlu0 0
        %734 = vperm.xlu0 %733, %v622
        %v735 = vpop.permute.xlu0 %734
        %738 = vset.pattern.permute.xlu0 0
        %739 = vperm.xlu0 %738, %v623
        %v740 = vpop.permute.xlu0 %739
        %743 = vset.pattern.permute.xlu0 0
        %744 = vperm.xlu0 %743, %v624
        %v745 = vpop.permute.xlu0 %744
        %748 = vset.pattern.permute.xlu0 0
        %749 = vperm.xlu0 %748, %v625
        %v750 = vpop.permute.xlu0 %749
        %v752 = vadd.f32 %v715, %v680
        %v753 = vadd.f32 %v715, %v681
        %v754 = vadd.f32 %v715, %v682
        %v755 = vadd.f32 %v715, %v683
        %v756 = vadd.f32 %v720, %v684
        %v757 = vadd.f32 %v720, %v685
        %v758 = vadd.f32 %v720, %v686
        %v759 = vadd.f32 %v720, %v687
        %v760 = vadd.f32 %v725, %v688
        %v761 = vadd.f32 %v725, %v689
        %v762 = vadd.f32 %v725, %v690
        %v763 = vadd.f32 %v725, %v691
        %v764 = vadd.f32 %v730, %v692
        %v765 = vadd.f32 %v730, %v693
        %v766 = vadd.f32 %v730, %v694
        %v767 = vadd.f32 %v730, %v695
        %v768 = vadd.f32 %v735, %v696
        %v769 = vadd.f32 %v735, %v697
        %v770 = vadd.f32 %v735, %v698
        %v771 = vadd.f32 %v735, %v699
        %v772 = vadd.f32 %v740, %v700
        %v773 = vadd.f32 %v740, %v701
        %v774 = vadd.f32 %v740, %v702
        %v775 = vadd.f32 %v740, %v703
        %v776 = vadd.f32 %v745, %v704
        %v777 = vadd.f32 %v745, %v705
        %v778 = vadd.f32 %v745, %v706
        %v779 = vadd.f32 %v745, %v707
        %v780 = vadd.f32 %v750, %v708
        %v781 = vadd.f32 %v750, %v709
        %v782 = vadd.f32 %v750, %v710
        %v783 = vadd.f32 %v750, %v711
        %784 = vset.pattern.permute.xlu0 1
        %785 = vperm.xlu0 %784, %v610
        %v786 = vpop.permute.xlu0 %785
        %788 = vset.pattern.permute.xlu0 1
        %789 = vperm.xlu0 %788, %v611
        %v790 = vpop.permute.xlu0 %789
        %792 = vset.pattern.permute.xlu0 1
        %793 = vperm.xlu0 %792, %v612
        %v794 = vpop.permute.xlu0 %793
        %796 = vset.pattern.permute.xlu0 1
        %797 = vperm.xlu0 %796, %v613
        %v798 = vpop.permute.xlu0 %797
        %800 = vset.pattern.permute.xlu0 1
        %801 = vperm.xlu0 %800, %v614
        %v802 = vpop.permute.xlu0 %801
        %804 = vset.pattern.permute.xlu0 1
        %805 = vperm.xlu0 %804, %v615
        %v806 = vpop.permute.xlu0 %805
        %808 = vset.pattern.permute.xlu0 1
        %809 = vperm.xlu0 %808, %v616
        %v810 = vpop.permute.xlu0 %809
        %812 = vset.pattern.permute.xlu0 1
        %813 = vperm.xlu0 %812, %v617
        %v814 = vpop.permute.xlu0 %813
        %v816 = vperm.slane %v608, 1
        %v817 = vperm.slane %v608, 5
        %v818 = vperm.slane %v609, 1
        %v819 = vperm.slane %v609, 5
        %v824 = vperm.slane %v816, 1
        %v825 = vperm.slane %v817, 1
        %v826 = vperm.slane %v818, 1
        %v827 = vperm.slane %v819, 1
        %v828 = vmul.f32 %v786, %v824
        %v829 = vmul.f32 %v786, %v825
        %v830 = vmul.f32 %v786, %v826
        %v831 = vmul.f32 %v786, %v827
        %v832 = vmul.f32 %v790, %v824
        %v833 = vmul.f32 %v790, %v825
        %v834 = vmul.f32 %v790, %v826
        %v835 = vmul.f32 %v790, %v827
        %v836 = vmul.f32 %v794, %v824
        %v837 = vmul.f32 %v794, %v825
        %v838 = vmul.f32 %v794, %v826
        %v839 = vmul.f32 %v794, %v827
        %v840 = vmul.f32 %v798, %v824
        %v841 = vmul.f32 %v798, %v825
        %v842 = vmul.f32 %v798, %v826
        %v843 = vmul.f32 %v798, %v827
        %v844 = vmul.f32 %v802, %v824
        %v845 = vmul.f32 %v802, %v825
        %v846 = vmul.f32 %v802, %v826
        %v847 = vmul.f32 %v802, %v827
        %v848 = vmul.f32 %v806, %v824
        %v849 = vmul.f32 %v806, %v825
        %v850 = vmul.f32 %v806, %v826
        %v851 = vmul.f32 %v806, %v827
        %v852 = vmul.f32 %v810, %v824
        %v853 = vmul.f32 %v810, %v825
        %v854 = vmul.f32 %v810, %v826
        %v855 = vmul.f32 %v810, %v827
        %v856 = vmul.f32 %v814, %v824
        %v857 = vmul.f32 %v814, %v825
        %v858 = vmul.f32 %v814, %v826
        %v859 = vmul.f32 %v814, %v827
        %v860 = vadd.f32 %v752, %v828
        %v861 = vadd.f32 %v753, %v829
        %v862 = vadd.f32 %v754, %v830
        %v863 = vadd.f32 %v755, %v831
        %v864 = vadd.f32 %v756, %v832
        %v865 = vadd.f32 %v757, %v833
        %v866 = vadd.f32 %v758, %v834
        %v867 = vadd.f32 %v759, %v835
        %v868 = vadd.f32 %v760, %v836
        %v869 = vadd.f32 %v761, %v837
        %v870 = vadd.f32 %v762, %v838
        %v871 = vadd.f32 %v763, %v839
        %v872 = vadd.f32 %v764, %v840
        %v873 = vadd.f32 %v765, %v841
        %v874 = vadd.f32 %v766, %v842
        %v875 = vadd.f32 %v767, %v843
        %v876 = vadd.f32 %v768, %v844
        %v877 = vadd.f32 %v769, %v845
        %v878 = vadd.f32 %v770, %v846
        %v879 = vadd.f32 %v771, %v847
        %v880 = vadd.f32 %v772, %v848
        %v881 = vadd.f32 %v773, %v849
        %v882 = vadd.f32 %v774, %v850
        %v883 = vadd.f32 %v775, %v851
        %v884 = vadd.f32 %v776, %v852
        %v885 = vadd.f32 %v777, %v853
        %v886 = vadd.f32 %v778, %v854
        %v887 = vadd.f32 %v779, %v855
        %v888 = vadd.f32 %v780, %v856
        %v889 = vadd.f32 %v781, %v857
        %v890 = vadd.f32 %v782, %v858
        %v891 = vadd.f32 %v783, %v859
        %892 = vset.pattern.permute.xlu0 2
        %893 = vperm.xlu0 %892, %v610
        %v894 = vpop.permute.xlu0 %893
        %896 = vset.pattern.permute.xlu0 2
        %897 = vperm.xlu0 %896, %v611
        %v898 = vpop.permute.xlu0 %897
        %900 = vset.pattern.permute.xlu0 2
        %901 = vperm.xlu0 %900, %v612
        %v902 = vpop.permute.xlu0 %901
        %904 = vset.pattern.permute.xlu0 2
        %905 = vperm.xlu0 %904, %v613
        %v906 = vpop.permute.xlu0 %905
        %908 = vset.pattern.permute.xlu0 2
        %909 = vperm.xlu0 %908, %v614
        %v910 = vpop.permute.xlu0 %909
        %912 = vset.pattern.permute.xlu0 2
        %913 = vperm.xlu0 %912, %v615
        %v914 = vpop.permute.xlu0 %913
        %916 = vset.pattern.permute.xlu0 2
        %917 = vperm.xlu0 %916, %v616
        %v918 = vpop.permute.xlu0 %917
        %920 = vset.pattern.permute.xlu0 2
        %921 = vperm.xlu0 %920, %v617
        %v922 = vpop.permute.xlu0 %921
        %v924 = vperm.slane %v608, 2
        %v925 = vperm.slane %v608, 6
        %v926 = vperm.slane %v609, 2
        %v927 = vperm.slane %v609, 6
        %v932 = vperm.slane %v924, 2
        %v933 = vperm.slane %v925, 2
        %v934 = vperm.slane %v926, 2
        %v935 = vperm.slane %v927, 2
        %v936 = vmul.f32 %v894, %v932
        %v937 = vmul.f32 %v894, %v933
        %v938 = vmul.f32 %v894, %v934
        %v939 = vmul.f32 %v894, %v935
        %v940 = vmul.f32 %v898, %v932
        %v941 = vmul.f32 %v898, %v933
        %v942 = vmul.f32 %v898, %v934
        %v943 = vmul.f32 %v898, %v935
        %v944 = vmul.f32 %v902, %v932
        %v945 = vmul.f32 %v902, %v933
        %v946 = vmul.f32 %v902, %v934
        %v947 = vmul.f32 %v902, %v935
        %v948 = vmul.f32 %v906, %v932
        %v949 = vmul.f32 %v906, %v933
        %v950 = vmul.f32 %v906, %v934
        %v951 = vmul.f32 %v906, %v935
        %v952 = vmul.f32 %v910, %v932
        %v953 = vmul.f32 %v910, %v933
        %v954 = vmul.f32 %v910, %v934
        %v955 = vmul.f32 %v910, %v935
        %v956 = vmul.f32 %v914, %v932
        %v957 = vmul.f32 %v914, %v933
        %v958 = vmul.f32 %v914, %v934
        %v959 = vmul.f32 %v914, %v935
        %v960 = vmul.f32 %v918, %v932
        %v961 = vmul.f32 %v918, %v933
        %v962 = vmul.f32 %v918, %v934
        %v963 = vmul.f32 %v918, %v935
        %v964 = vmul.f32 %v922, %v932
        %v965 = vmul.f32 %v922, %v933
        %v966 = vmul.f32 %v922, %v934
        %v967 = vmul.f32 %v922, %v935
        %v968 = vadd.f32 %v860, %v936
        %v969 = vadd.f32 %v861, %v937
        %v970 = vadd.f32 %v862, %v938
        %v971 = vadd.f32 %v863, %v939
        %v972 = vadd.f32 %v864, %v940
        %v973 = vadd.f32 %v865, %v941
        %v974 = vadd.f32 %v866, %v942
        %v975 = vadd.f32 %v867, %v943
        %v976 = vadd.f32 %v868, %v944
        %v977 = vadd.f32 %v869, %v945
        %v978 = vadd.f32 %v870, %v946
        %v979 = vadd.f32 %v871, %v947
        %v980 = vadd.f32 %v872, %v948
        %v981 = vadd.f32 %v873, %v949
        %v982 = vadd.f32 %v874, %v950
        %v983 = vadd.f32 %v875, %v951
        %v984 = vadd.f32 %v876, %v952
        %v985 = vadd.f32 %v877, %v953
        %v986 = vadd.f32 %v878, %v954
        %v987 = vadd.f32 %v879, %v955
        %v988 = vadd.f32 %v880, %v956
        %v989 = vadd.f32 %v881, %v957
        %v990 = vadd.f32 %v882, %v958
        %v991 = vadd.f32 %v883, %v959
        %v992 = vadd.f32 %v884, %v960
        %v993 = vadd.f32 %v885, %v961
        %v994 = vadd.f32 %v886, %v962
        %v995 = vadd.f32 %v887, %v963
        %v996 = vadd.f32 %v888, %v964
        %v997 = vadd.f32 %v889, %v965
        %v998 = vadd.f32 %v890, %v966
        %v999 = vadd.f32 %v891, %v967
        %v1000 = vmax.f32 %v968, 0.0
        %v1001 = vmax.f32 %v969, 0.0
        %v1002 = vmax.f32 %v970, 0.0
        %v1003 = vmax.f32 %v971, 0.0
        %v1004 = vmax.f32 %v972, 0.0
        %v1005 = vmax.f32 %v973, 0.0
        %v1006 = vmax.f32 %v974, 0.0
        %v1007 = vmax.f32 %v975, 0.0
        %v1008 = vmax.f32 %v976, 0.0
        %v1009 = vmax.f32 %v977, 0.0
        %v1010 = vmax.f32 %v978, 0.0
        %v1011 = vmax.f32 %v979, 0.0
        %v1012 = vmax.f32 %v980, 0.0
        %v1013 = vmax.f32 %v981, 0.0
        %v1014 = vmax.f32 %v982, 0.0
        %v1015 = vmax.f32 %v983, 0.0
        %v1016 = vmax.f32 %v984, 0.0
        %v1017 = vmax.f32 %v985, 0.0
        %v1018 = vmax.f32 %v986, 0.0
        %v1019 = vmax.f32 %v987, 0.0
        %v1020 = vmax.f32 %v988, 0.0
        %v1021 = vmax.f32 %v989, 0.0
        %v1022 = vmax.f32 %v990, 0.0
        %v1023 = vmax.f32 %v991, 0.0
        %v1024 = vmax.f32 %v992, 0.0
        %v1025 = vmax.f32 %v993, 0.0
        %v1026 = vmax.f32 %v994, 0.0
        %v1027 = vmax.f32 %v995, 0.0
        %v1028 = vmax.f32 %v996, 0.0
        %v1029 = vmax.f32 %v997, 0.0
        %v1030 = vmax.f32 %v998, 0.0
        %v1031 = vmax.f32 %v999, 0.0
        %1032 = vst [vmem:[%s422] sm:$0xff] %v1000
        %1033 = vst [vmem:[%s422 + $0x8] sm:$0xff] %v1001
        %1034 = vst [vmem:[%s422 + $0x10] sm:$0xff] %v1002
        %1035 = vst [vmem:[%s422 + $0x18] sm:$0xff] %v1003
        %1036 = vst [vmem:[%s422 + $0x20] sm:$0xff] %v1004
        %1037 = vst [vmem:[%s422 + $0x28] sm:$0xff] %v1005
        %1038 = vst [vmem:[%s422 + $0x30] sm:$0xff] %v1006
        %1039 = vst [vmem:[%s422 + $0x38] sm:$0xff] %v1007
        %1040 = vst [vmem:[%s422 + $0x40] sm:$0xff] %v1008
        %1041 = vst [vmem:[%s422 + $0x48] sm:$0xff] %v1009
        %1042 = vst [vmem:[%s422 + $0x50] sm:$0xff] %v1010
        %1043 = vst [vmem:[%s422 + $0x58] sm:$0xff] %v1011
        %1044 = vst [vmem:[%s422 + $0x60] sm:$0xff] %v1012
        %1045 = vst [vmem:[%s422 + $0x68] sm:$0xff] %v1013
        %1046 = vst [vmem:[%s422 + $0x70] sm:$0xff] %v1014
        %1047 = vst [vmem:[%s422 + $0x78] sm:$0xff] %v1015
        %1048 = vst [vmem:[%s422 + $0x80] sm:$0xff] %v1016
        %1049 = vst [vmem:[%s422 + $0x88] sm:$0xff] %v1017
        %1050 = vst [vmem:[%s422 + $0x90] sm:$0xff] %v1018
        %1051 = vst [vmem:[%s422 + $0x98] sm:$0xff] %v1019
        %1052 = vst [vmem:[%s422 + $0xa0] sm:$0xff] %v1020
        %1053 = vst [vmem:[%s422 + $0xa8] sm:$0xff] %v1021
        %1054 = vst [vmem:[%s422 + $0xb0] sm:$0xff] %v1022
        %1055 = vst [vmem:[%s422 + $0xb8] sm:$0xff] %v1023
        %1056 = vst [vmem:[%s422 + $0xc0] sm:$0xff] %v1024
        %1057 = vst [vmem:[%s422 + $0xc8] sm:$0xff] %v1025
        %1058 = vst [vmem:[%s422 + $0xd0] sm:$0xff] %v1026
        %1059 = vst [vmem:[%s422 + $0xd8] sm:$0xff] %v1027
        %1060 = vst [vmem:[%s422 + $0xe0] sm:$0xff] %v1028
        %1061 = vst [vmem:[%s422 + $0xe8] sm:$0xff] %v1029
        %1062 = vst [vmem:[%s422 + $0xf0] sm:$0xff] %v1030
        %1063 = vst [vmem:[%s422 + $0xf8] sm:$0xff] %v1031
        %v1064 = vld [vmem:[%s3] sm:$0xf]
        %v1065 = vld [vmem:[%s3 + $0x4] sm:$0xf]
        %v1066 = vld [vmem:[%s3 + $0x8] sm:$0xf]
        %v1067 = vld [vmem:[%s3 + $0xc] sm:$0xf]
        %v1068 = vld [vmem:[%s3 + $0x10] sm:$0xf]
        %v1069 = vld [vmem:[%s3 + $0x14] sm:$0xf]
        %v1070 = vld [vmem:[%s3 + $0x18] sm:$0xf]
        %v1071 = vld [vmem:[%s3 + $0x1c] sm:$0xf]
        %v1072 = vld [vmem:[%s3 + $0x20] sm:$0xf]
        %v1073 = vld [vmem:[%s3 + $0x24] sm:$0xf]
        %v1074 = vld [vmem:[%s3 + $0x28] sm:$0xf]
        %v1075 = vld [vmem:[%s3 + $0x2c] sm:$0xf]
        %v1076 = vld [vmem:[%s3 + $0x30] sm:$0xf]
        %v1077 = vld [vmem:[%s3 + $0x34] sm:$0xf]
        %v1078 = vld [vmem:[%s3 + $0x38] sm:$0xf]
        %v1079 = vld [vmem:[%s3 + $0x3c] sm:$0xf]
        %v1080 = vpack.c.bf16 %v1004, %v1000
        %v1081 = vpack.c.bf16 %v1005, %v1001
        %v1082 = vpack.c.bf16 %v1006, %v1002
        %v1083 = vpack.c.bf16 %v1007, %v1003
        %v1084 = vpack.c.bf16 %v1012, %v1008
        %v1085 = vpack.c.bf16 %v1013, %v1009
        %v1086 = vpack.c.bf16 %v1014, %v1010
        %v1087 = vpack.c.bf16 %v1015, %v1011
        %v1088 = vpack.c.bf16 %v1020, %v1016
        %v1089 = vpack.c.bf16 %v1021, %v1017
        %v1090 = vpack.c.bf16 %v1022, %v1018
        %v1091 = vpack.c.bf16 %v1023, %v1019
        %v1092 = vpack.c.bf16 %v1028, %v1024
        %v1093 = vpack.c.bf16 %v1029, %v1025
        %v1094 = vpack.c.bf16 %v1030, %v1026
        %v1095 = vpack.c.bf16 %v1031, %v1027
        %v1096 = vld [vmem:[%s4] sm:$0xff]
        %v1097 = vld [vmem:[%s4 + $0x8] sm:$0xff]
        %v1098 = vld [vmem:[%s4 + $0x10] sm:$0xff]
        %v1099 = vld [vmem:[%s4 + $0x18] sm:$0xff]
        %v1100 = vld [vmem:[%s4 + $0x20] sm:$0xff]
        %v1101 = vld [vmem:[%s4 + $0x28] sm:$0xff]
        %v1102 = vld [vmem:[%s4 + $0x30] sm:$0xff]
        %v1103 = vld [vmem:[%s4 + $0x38] sm:$0xff]
        %v1104 = vld [vmem:[%s4 + $0x40] sm:$0xff]
        %v1105 = vld [vmem:[%s4 + $0x48] sm:$0xff]
        %v1106 = vld [vmem:[%s4 + $0x50] sm:$0xff]
        %v1107 = vld [vmem:[%s4 + $0x58] sm:$0xff]
        %v1108 = vld [vmem:[%s4 + $0x60] sm:$0xff]
        %v1109 = vld [vmem:[%s4 + $0x68] sm:$0xff]
        %v1110 = vld [vmem:[%s4 + $0x70] sm:$0xff]
        %v1111 = vld [vmem:[%s4 + $0x78] sm:$0xff]
        %1113 = vset.pattern.permute.xlu0 0
        %1114 = vperm.xlu0 %1113, %v1096
        %v1115 = vpop.permute.xlu0 %1114
        %1118 = vset.pattern.permute.xlu0 0
        %1119 = vperm.xlu0 %1118, %v1097
        %v1120 = vpop.permute.xlu0 %1119
        %1123 = vset.pattern.permute.xlu0 0
        %1124 = vperm.xlu0 %1123, %v1098
        %v1125 = vpop.permute.xlu0 %1124
        %1128 = vset.pattern.permute.xlu0 0
        %1129 = vperm.xlu0 %1128, %v1099
        %v1130 = vpop.permute.xlu0 %1129
        %1133 = vset.pattern.permute.xlu0 0
        %1134 = vperm.xlu0 %1133, %v1100
        %v1135 = vpop.permute.xlu0 %1134
        %1138 = vset.pattern.permute.xlu0 0
        %1139 = vperm.xlu0 %1138, %v1101
        %v1140 = vpop.permute.xlu0 %1139
        %1143 = vset.pattern.permute.xlu0 0
        %1144 = vperm.xlu0 %1143, %v1102
        %v1145 = vpop.permute.xlu0 %1144
        %1148 = vset.pattern.permute.xlu0 0
        %1149 = vperm.xlu0 %1148, %v1103
        %v1150 = vpop.permute.xlu0 %1149
        %1153 = vset.pattern.permute.xlu0 0
        %1154 = vperm.xlu0 %1153, %v1104
        %v1155 = vpop.permute.xlu0 %1154
        %1158 = vset.pattern.permute.xlu0 0
        %1159 = vperm.xlu0 %1158, %v1105
        %v1160 = vpop.permute.xlu0 %1159
        %1163 = vset.pattern.permute.xlu0 0
        %1164 = vperm.xlu0 %1163, %v1106
        %v1165 = vpop.permute.xlu0 %1164
        %1168 = vset.pattern.permute.xlu0 0
        %1169 = vperm.xlu0 %1168, %v1107
        %v1170 = vpop.permute.xlu0 %1169
        %1173 = vset.pattern.permute.xlu0 0
        %1174 = vperm.xlu0 %1173, %v1108
        %v1175 = vpop.permute.xlu0 %1174
        %1178 = vset.pattern.permute.xlu0 0
        %1179 = vperm.xlu0 %1178, %v1109
        %v1180 = vpop.permute.xlu0 %1179
        %1183 = vset.pattern.permute.xlu0 0
        %1184 = vperm.xlu0 %1183, %v1110
        %v1185 = vpop.permute.xlu0 %1184
        %1188 = vset.pattern.permute.xlu0 0
        %1189 = vperm.xlu0 %1188, %v1111
        %v1190 = vpop.permute.xlu0 %1189
        %v1208 = vunpack.c.l.b16 %v1064
        %v1209 = vunpack.c.l.b16 %v1065
        %v1210 = vunpack.c.l.b16 %v1066
        %v1211 = vunpack.c.l.b16 %v1067
        %v1212 = vunpack.c.l.b16 %v1068
        %v1213 = vunpack.c.l.b16 %v1069
        %v1214 = vunpack.c.l.b16 %v1070
        %v1215 = vunpack.c.l.b16 %v1071
        %v1216 = vunpack.c.l.b16 %v1072
        %v1217 = vunpack.c.l.b16 %v1073
        %v1218 = vunpack.c.l.b16 %v1074
        %v1219 = vunpack.c.l.b16 %v1075
        %v1220 = vunpack.c.l.b16 %v1076
        %v1221 = vunpack.c.l.b16 %v1077
        %v1222 = vunpack.c.l.b16 %v1078
        %v1223 = vunpack.c.l.b16 %v1079
        %v1224 = vpack.c.b16 %v1209, %v1208
        %v1225 = vpack.c.b16 %v1211, %v1210
        %v1226 = vpack.c.b16 %v1213, %v1212
        %v1227 = vpack.c.b16 %v1215, %v1214
        %v1228 = vpack.c.b16 %v1217, %v1216
        %v1229 = vpack.c.b16 %v1219, %v1218
        %v1230 = vpack.c.b16 %v1221, %v1220
        %v1231 = vpack.c.b16 %v1223, %v1222
        %vm1232 = vcmask 523264
        %v1234 = vsel %vm1232, %v1224, 0
        %v1237 = vsel %vm1232, %v1225, 0
        %v1240 = vsel %vm1232, %v1226, 0
        %v1243 = vsel %vm1232, %v1227, 0
        %v1246 = vsel %vm1232, %v1228, 0
        %v1249 = vsel %vm1232, %v1229, 0
        %v1252 = vsel %vm1232, %v1230, 0
        %v1255 = vsel %vm1232, %v1231, 0
        %1257 = vmatpush.bf16.msra.mxu0 0
        %1258 = vmatpush.bf16.msra.mxu0 0
        %1259 = vmatpush.bf16.msra.mxu0 0
        %1260 = vmatpush.bf16.msra.mxu0 0
        %1261 = vmatpush.bf16.msra.mxu0 %v1092
        %1262 = vmatpush.bf16.msra.mxu0 %v1088
        %1263 = vmatpush.bf16.msra.mxu0 %v1084
        %1264 = vmatpush.bf16.msra.mxu0 %v1080
        %1265 = vmatmul.bf16.gmra.mxu0 %v1234
        %v1266 = vpop.f32.mrf.mxu0
        %v1267 = vadd.f32 %v1115, %v1266
        %v1268 = vpop.f32.mrf.mxu0
        %v1269 = vadd.f32 %v1120, %v1268
        %1270 = vmatmul.bf16.gmra.mxu0 %v1237
        %v1271 = vpop.f32.mrf.mxu0
        %v1272 = vadd.f32 %v1125, %v1271
        %v1273 = vpop.f32.mrf.mxu0
        %v1274 = vadd.f32 %v1130, %v1273
        %1275 = vmatmul.bf16.gmra.mxu0 %v1240
        %v1276 = vpop.f32.mrf.mxu0
        %v1277 = vadd.f32 %v1135, %v1276
        %v1278 = vpop.f32.mrf.mxu0
        %v1279 = vadd.f32 %v1140, %v1278
        %1280 = vmatmul.bf16.gmra.mxu0 %v1243
        %v1281 = vpop.f32.mrf.mxu0
        %v1282 = vadd.f32 %v1145, %v1281
        %v1283 = vpop.f32.mrf.mxu0
        %v1284 = vadd.f32 %v1150, %v1283
        %1285 = vmatmul.bf16.gmra.mxu0 %v1246
        %v1286 = vpop.f32.mrf.mxu0
        %v1287 = vadd.f32 %v1155, %v1286
        %v1288 = vpop.f32.mrf.mxu0
        %v1289 = vadd.f32 %v1160, %v1288
        %1290 = vmatmul.bf16.gmra.mxu0 %v1249
        %v1291 = vpop.f32.mrf.mxu0
        %v1292 = vadd.f32 %v1165, %v1291
        %v1293 = vpop.f32.mrf.mxu0
        %v1294 = vadd.f32 %v1170, %v1293
        %1295 = vmatmul.bf16.gmra.mxu0 %v1252
        %v1296 = vpop.f32.mrf.mxu0
        %v1297 = vadd.f32 %v1175, %v1296
        %v1298 = vpop.f32.mrf.mxu0
        %v1299 = vadd.f32 %v1180, %v1298
        %1300 = vmatmul.bf16.gmra.mxu0 %v1255
        %v1301 = vpop.f32.mrf.mxu0
        %v1302 = vadd.f32 %v1185, %v1301
        %v1303 = vpop.f32.mrf.mxu0
        %v1304 = vadd.f32 %v1190, %v1303
        %1305 = vdwg.mxu0
        %1306 = vmatpush.bf16.msra.mxu0 0
        %1307 = vmatpush.bf16.msra.mxu0 0
        %1308 = vmatpush.bf16.msra.mxu0 0
        %1309 = vmatpush.bf16.msra.mxu0 0
        %1310 = vmatpush.bf16.msra.mxu0 %v1093
        %1311 = vmatpush.bf16.msra.mxu0 %v1089
        %1312 = vmatpush.bf16.msra.mxu0 %v1085
        %1313 = vmatpush.bf16.msra.mxu0 %v1081
        %1314 = vmatmul.bf16.gmra.mxu0 %v1234
        %v1315 = vpop.f32.mrf.mxu0
        %v1316 = vadd.f32 %v1115, %v1315
        %v1317 = vpop.f32.mrf.mxu0
        %v1318 = vadd.f32 %v1120, %v1317
        %1319 = vmatmul.bf16.gmra.mxu0 %v1237
        %v1320 = vpop.f32.mrf.mxu0
        %v1321 = vadd.f32 %v1125, %v1320
        %v1322 = vpop.f32.mrf.mxu0
        %v1323 = vadd.f32 %v1130, %v1322
        %1324 = vmatmul.bf16.gmra.mxu0 %v1240
        %v1325 = vpop.f32.mrf.mxu0
        %v1326 = vadd.f32 %v1135, %v1325
        %v1327 = vpop.f32.mrf.mxu0
        %v1328 = vadd.f32 %v1140, %v1327
        %1329 = vmatmul.bf16.gmra.mxu0 %v1243
        %v1330 = vpop.f32.mrf.mxu0
        %v1331 = vadd.f32 %v1145, %v1330
        %v1332 = vpop.f32.mrf.mxu0
        %v1333 = vadd.f32 %v1150, %v1332
        %1334 = vmatmul.bf16.gmra.mxu0 %v1246
        %v1335 = vpop.f32.mrf.mxu0
        %v1336 = vadd.f32 %v1155, %v1335
        %v1337 = vpop.f32.mrf.mxu0
        %v1338 = vadd.f32 %v1160, %v1337
        %1339 = vmatmul.bf16.gmra.mxu0 %v1249
        %v1340 = vpop.f32.mrf.mxu0
        %v1341 = vadd.f32 %v1165, %v1340
        %v1342 = vpop.f32.mrf.mxu0
        %v1343 = vadd.f32 %v1170, %v1342
        %1344 = vmatmul.bf16.gmra.mxu0 %v1252
        %v1345 = vpop.f32.mrf.mxu0
        %v1346 = vadd.f32 %v1175, %v1345
        %v1347 = vpop.f32.mrf.mxu0
        %v1348 = vadd.f32 %v1180, %v1347
        %1349 = vmatmul.bf16.gmra.mxu0 %v1255
        %v1350 = vpop.f32.mrf.mxu0
        %v1351 = vadd.f32 %v1185, %v1350
        %v1352 = vpop.f32.mrf.mxu0
        %v1353 = vadd.f32 %v1190, %v1352
        %1354 = vdwg.mxu0
        %1355 = vmatpush.bf16.msra.mxu0 0
        %1356 = vmatpush.bf16.msra.mxu0 0
        %1357 = vmatpush.bf16.msra.mxu0 0
        %1358 = vmatpush.bf16.msra.mxu0 0
        %1359 = vmatpush.bf16.msra.mxu0 %v1094
        %1360 = vmatpush.bf16.msra.mxu0 %v1090
        %1361 = vmatpush.bf16.msra.mxu0 %v1086
        %1362 = vmatpush.bf16.msra.mxu0 %v1082
        %1363 = vmatmul.bf16.gmra.mxu0 %v1234
        %v1364 = vpop.f32.mrf.mxu0
        %v1365 = vadd.f32 %v1115, %v1364
        %v1366 = vpop.f32.mrf.mxu0
        %v1367 = vadd.f32 %v1120, %v1366
        %1368 = vmatmul.bf16.gmra.mxu0 %v1237
        %v1369 = vpop.f32.mrf.mxu0
        %v1370 = vadd.f32 %v1125, %v1369
        %v1371 = vpop.f32.mrf.mxu0
        %v1372 = vadd.f32 %v1130, %v1371
        %1373 = vmatmul.bf16.gmra.mxu0 %v1240
        %v1374 = vpop.f32.mrf.mxu0
        %v1375 = vadd.f32 %v1135, %v1374
        %v1376 = vpop.f32.mrf.mxu0
        %v1377 = vadd.f32 %v1140, %v1376
        %1378 = vmatmul.bf16.gmra.mxu0 %v1243
        %v1379 = vpop.f32.mrf.mxu0
        %v1380 = vadd.f32 %v1145, %v1379
        %v1381 = vpop.f32.mrf.mxu0
        %v1382 = vadd.f32 %v1150, %v1381
        %1383 = vmatmul.bf16.gmra.mxu0 %v1246
        %v1384 = vpop.f32.mrf.mxu0
        %v1385 = vadd.f32 %v1155, %v1384
        %v1386 = vpop.f32.mrf.mxu0
        %v1387 = vadd.f32 %v1160, %v1386
        %1388 = vmatmul.bf16.gmra.mxu0 %v1249
        %v1389 = vpop.f32.mrf.mxu0
        %v1390 = vadd.f32 %v1165, %v1389
        %v1391 = vpop.f32.mrf.mxu0
        %v1392 = vadd.f32 %v1170, %v1391
        %1393 = vmatmul.bf16.gmra.mxu0 %v1252
        %v1394 = vpop.f32.mrf.mxu0
        %v1395 = vadd.f32 %v1175, %v1394
        %v1396 = vpop.f32.mrf.mxu0
        %v1397 = vadd.f32 %v1180, %v1396
        %1398 = vmatmul.bf16.gmra.mxu0 %v1255
        %v1399 = vpop.f32.mrf.mxu0
        %v1400 = vadd.f32 %v1185, %v1399
        %v1401 = vpop.f32.mrf.mxu0
        %v1402 = vadd.f32 %v1190, %v1401
        %1403 = vdwg.mxu0
        %1404 = vmatpush.bf16.msra.mxu0 0
        %1405 = vmatpush.bf16.msra.mxu0 0
        %1406 = vmatpush.bf16.msra.mxu0 0
        %1407 = vmatpush.bf16.msra.mxu0 0
        %1408 = vmatpush.bf16.msra.mxu0 %v1095
        %1409 = vmatpush.bf16.msra.mxu0 %v1091
        %1410 = vmatpush.bf16.msra.mxu0 %v1087
        %1411 = vmatpush.bf16.msra.mxu0 %v1083
        %1412 = vmatmul.bf16.gmra.mxu0 %v1234
        %v1413 = vpop.f32.mrf.mxu0
        %v1414 = vadd.f32 %v1115, %v1413
        %v1415 = vpop.f32.mrf.mxu0
        %v1416 = vadd.f32 %v1120, %v1415
        %1417 = vmatmul.bf16.gmra.mxu0 %v1237
        %v1418 = vpop.f32.mrf.mxu0
        %v1419 = vadd.f32 %v1125, %v1418
        %v1420 = vpop.f32.mrf.mxu0
        %v1421 = vadd.f32 %v1130, %v1420
        %1422 = vmatmul.bf16.gmra.mxu0 %v1240
        %v1423 = vpop.f32.mrf.mxu0
        %v1424 = vadd.f32 %v1135, %v1423
        %v1425 = vpop.f32.mrf.mxu0
        %v1426 = vadd.f32 %v1140, %v1425
        %1427 = vmatmul.bf16.gmra.mxu0 %v1243
        %v1428 = vpop.f32.mrf.mxu0
        %v1429 = vadd.f32 %v1145, %v1428
        %v1430 = vpop.f32.mrf.mxu0
        %v1431 = vadd.f32 %v1150, %v1430
        %1432 = vmatmul.bf16.gmra.mxu0 %v1246
        %v1433 = vpop.f32.mrf.mxu0
        %v1434 = vadd.f32 %v1155, %v1433
        %v1435 = vpop.f32.mrf.mxu0
        %v1436 = vadd.f32 %v1160, %v1435
        %1437 = vmatmul.bf16.gmra.mxu0 %v1249
        %v1438 = vpop.f32.mrf.mxu0
        %v1439 = vadd.f32 %v1165, %v1438
        %v1440 = vpop.f32.mrf.mxu0
        %v1441 = vadd.f32 %v1170, %v1440
        %1442 = vmatmul.bf16.gmra.mxu0 %v1252
        %v1443 = vpop.f32.mrf.mxu0
        %v1444 = vadd.f32 %v1175, %v1443
        %v1445 = vpop.f32.mrf.mxu0
        %v1446 = vadd.f32 %v1180, %v1445
        %1447 = vmatmul.bf16.gmra.mxu0 %v1255
        %v1448 = vpop.f32.mrf.mxu0
        %v1449 = vadd.f32 %v1185, %v1448
        %v1450 = vpop.f32.mrf.mxu0
        %v1451 = vadd.f32 %v1190, %v1450
        %1452 = vdwg.mxu0
        %v1453 = vmax.f32 %v1267, 0.0
        %v1454 = vmax.f32 %v1316, 0.0
        %v1455 = vmax.f32 %v1365, 0.0
        %v1456 = vmax.f32 %v1414, 0.0
        %v1457 = vmax.f32 %v1269, 0.0
        %v1458 = vmax.f32 %v1318, 0.0
        %v1459 = vmax.f32 %v1367, 0.0
        %v1460 = vmax.f32 %v1416, 0.0
        %v1461 = vmax.f32 %v1272, 0.0
        %v1462 = vmax.f32 %v1321, 0.0
        %v1463 = vmax.f32 %v1370, 0.0
        %v1464 = vmax.f32 %v1419, 0.0
        %v1465 = vmax.f32 %v1274, 0.0
        %v1466 = vmax.f32 %v1323, 0.0
        %v1467 = vmax.f32 %v1372, 0.0
        %v1468 = vmax.f32 %v1421, 0.0
        %v1469 = vmax.f32 %v1277, 0.0
        %v1470 = vmax.f32 %v1326, 0.0
        %v1471 = vmax.f32 %v1375, 0.0
        %v1472 = vmax.f32 %v1424, 0.0
        %v1473 = vmax.f32 %v1279, 0.0
        %v1474 = vmax.f32 %v1328, 0.0
        %v1475 = vmax.f32 %v1377, 0.0
        %v1476 = vmax.f32 %v1426, 0.0
        %v1477 = vmax.f32 %v1282, 0.0
        %v1478 = vmax.f32 %v1331, 0.0
        %v1479 = vmax.f32 %v1380, 0.0
        %v1480 = vmax.f32 %v1429, 0.0
        %v1481 = vmax.f32 %v1284, 0.0
        %v1482 = vmax.f32 %v1333, 0.0
        %v1483 = vmax.f32 %v1382, 0.0
        %v1484 = vmax.f32 %v1431, 0.0
        %v1485 = vmax.f32 %v1287, 0.0
        %v1486 = vmax.f32 %v1336, 0.0
        %v1487 = vmax.f32 %v1385, 0.0
        %v1488 = vmax.f32 %v1434, 0.0
        %v1489 = vmax.f32 %v1289, 0.0
        %v1490 = vmax.f32 %v1338, 0.0
        %v1491 = vmax.f32 %v1387, 0.0
        %v1492 = vmax.f32 %v1436, 0.0
        %v1493 = vmax.f32 %v1292, 0.0
        %v1494 = vmax.f32 %v1341, 0.0
        %v1495 = vmax.f32 %v1390, 0.0
        %v1496 = vmax.f32 %v1439, 0.0
        %v1497 = vmax.f32 %v1294, 0.0
        %v1498 = vmax.f32 %v1343, 0.0
        %v1499 = vmax.f32 %v1392, 0.0
        %v1500 = vmax.f32 %v1441, 0.0
        %v1501 = vmax.f32 %v1297, 0.0
        %v1502 = vmax.f32 %v1346, 0.0
        %v1503 = vmax.f32 %v1395, 0.0
        %v1504 = vmax.f32 %v1444, 0.0
        %v1505 = vmax.f32 %v1299, 0.0
        %v1506 = vmax.f32 %v1348, 0.0
        %v1507 = vmax.f32 %v1397, 0.0
        %v1508 = vmax.f32 %v1446, 0.0
        %v1509 = vmax.f32 %v1302, 0.0
        %v1510 = vmax.f32 %v1351, 0.0
        %v1511 = vmax.f32 %v1400, 0.0
        %v1512 = vmax.f32 %v1449, 0.0
        %v1513 = vmax.f32 %v1304, 0.0
        %v1514 = vmax.f32 %v1353, 0.0
        %v1515 = vmax.f32 %v1402, 0.0
        %v1516 = vmax.f32 %v1451, 0.0
        %1517 = vst [vmem:[%s429] sm:$0xff] %v1453
        %1518 = vst [vmem:[%s429 + $0x8] sm:$0xff] %v1454
        %1519 = vst [vmem:[%s429 + $0x10] sm:$0xff] %v1455
        %1520 = vst [vmem:[%s429 + $0x18] sm:$0xff] %v1456
        %1521 = vst [vmem:[%s429 + $0x20] sm:$0xff] %v1457
        %1522 = vst [vmem:[%s429 + $0x28] sm:$0xff] %v1458
        %1523 = vst [vmem:[%s429 + $0x30] sm:$0xff] %v1459
        %1524 = vst [vmem:[%s429 + $0x38] sm:$0xff] %v1460
        %1525 = vst [vmem:[%s429 + $0x40] sm:$0xff] %v1461
        %1526 = vst [vmem:[%s429 + $0x48] sm:$0xff] %v1462
        %1527 = vst [vmem:[%s429 + $0x50] sm:$0xff] %v1463
        %1528 = vst [vmem:[%s429 + $0x58] sm:$0xff] %v1464
        %1529 = vst [vmem:[%s429 + $0x60] sm:$0xff] %v1465
        %1530 = vst [vmem:[%s429 + $0x68] sm:$0xff] %v1466
        %1531 = vst [vmem:[%s429 + $0x70] sm:$0xff] %v1467
        %1532 = vst [vmem:[%s429 + $0x78] sm:$0xff] %v1468
        %1533 = vst [vmem:[%s429 + $0x80] sm:$0xff] %v1469
        %1534 = vst [vmem:[%s429 + $0x88] sm:$0xff] %v1470
        %1535 = vst [vmem:[%s429 + $0x90] sm:$0xff] %v1471
        %1536 = vst [vmem:[%s429 + $0x98] sm:$0xff] %v1472
        %1537 = vst [vmem:[%s429 + $0xa0] sm:$0xff] %v1473
        %1538 = vst [vmem:[%s429 + $0xa8] sm:$0xff] %v1474
        %1539 = vst [vmem:[%s429 + $0xb0] sm:$0xff] %v1475
        %1540 = vst [vmem:[%s429 + $0xb8] sm:$0xff] %v1476
        %1541 = vst [vmem:[%s429 + $0xc0] sm:$0xff] %v1477
        %1542 = vst [vmem:[%s429 + $0xc8] sm:$0xff] %v1478
        %1543 = vst [vmem:[%s429 + $0xd0] sm:$0xff] %v1479
        %1544 = vst [vmem:[%s429 + $0xd8] sm:$0xff] %v1480
        %1545 = vst [vmem:[%s429 + $0xe0] sm:$0xff] %v1481
        %1546 = vst [vmem:[%s429 + $0xe8] sm:$0xff] %v1482
        %1547 = vst [vmem:[%s429 + $0xf0] sm:$0xff] %v1483
        %1548 = vst [vmem:[%s429 + $0xf8] sm:$0xff] %v1484
        %1549 = vst [vmem:[%s429 + $0x100] sm:$0xff] %v1485
        %1550 = vst [vmem:[%s429 + $0x108] sm:$0xff] %v1486
        %1551 = vst [vmem:[%s429 + $0x110] sm:$0xff] %v1487
        %1552 = vst [vmem:[%s429 + $0x118] sm:$0xff] %v1488
        %1553 = vst [vmem:[%s429 + $0x120] sm:$0xff] %v1489
        %1554 = vst [vmem:[%s429 + $0x128] sm:$0xff] %v1490
        %1555 = vst [vmem:[%s429 + $0x130] sm:$0xff] %v1491
        %1556 = vst [vmem:[%s429 + $0x138] sm:$0xff] %v1492
        %1557 = vst [vmem:[%s429 + $0x140] sm:$0xff] %v1493
        %1558 = vst [vmem:[%s429 + $0x148] sm:$0xff] %v1494
        %1559 = vst [vmem:[%s429 + $0x150] sm:$0xff] %v1495
        %1560 = vst [vmem:[%s429 + $0x158] sm:$0xff] %v1496
        %1561 = vst [vmem:[%s429 + $0x160] sm:$0xff] %v1497
        %1562 = vst [vmem:[%s429 + $0x168] sm:$0xff] %v1498
        %1563 = vst [vmem:[%s429 + $0x170] sm:$0xff] %v1499
        %1564 = vst [vmem:[%s429 + $0x178] sm:$0xff] %v1500
        %1565 = vst [vmem:[%s429 + $0x180] sm:$0xff] %v1501
        %1566 = vst [vmem:[%s429 + $0x188] sm:$0xff] %v1502
        %1567 = vst [vmem:[%s429 + $0x190] sm:$0xff] %v1503
        %1568 = vst [vmem:[%s429 + $0x198] sm:$0xff] %v1504
        %1569 = vst [vmem:[%s429 + $0x1a0] sm:$0xff] %v1505
        %1570 = vst [vmem:[%s429 + $0x1a8] sm:$0xff] %v1506
        %1571 = vst [vmem:[%s429 + $0x1b0] sm:$0xff] %v1507
        %1572 = vst [vmem:[%s429 + $0x1b8] sm:$0xff] %v1508
        %1573 = vst [vmem:[%s429 + $0x1c0] sm:$0xff] %v1509
        %1574 = vst [vmem:[%s429 + $0x1c8] sm:$0xff] %v1510
        %1575 = vst [vmem:[%s429 + $0x1d0] sm:$0xff] %v1511
        %1576 = vst [vmem:[%s429 + $0x1d8] sm:$0xff] %v1512
        %1577 = vst [vmem:[%s429 + $0x1e0] sm:$0xff] %v1513
        %1578 = vst [vmem:[%s429 + $0x1e8] sm:$0xff] %v1514
        %1579 = vst [vmem:[%s429 + $0x1f0] sm:$0xff] %v1515
        %1580 = vst [vmem:[%s429 + $0x1f8] sm:$0xff] %v1516
        %v1581 = vld [vmem:[#allocation3] sm:$0xf]
        %v1582 = vld [vmem:[#allocation3 + $0x4] sm:$0xf]
        %v1583 = vld [vmem:[#allocation3 + $0x8] sm:$0xf]
        %v1584 = vld [vmem:[#allocation3 + $0xc] sm:$0xf]
        %v1585 = vld [vmem:[#allocation3 + $0x10] sm:$0xf]
        %v1586 = vld [vmem:[#allocation3 + $0x14] sm:$0xf]
        %v1587 = vld [vmem:[#allocation3 + $0x18] sm:$0xf]
        %v1588 = vld [vmem:[#allocation3 + $0x1c] sm:$0xf]
        %v1589 = vld [vmem:[#allocation3 + $0x20] sm:$0xf]
        %v1590 = vld [vmem:[#allocation3 + $0x24] sm:$0xf]
        %v1591 = vld [vmem:[#allocation3 + $0x28] sm:$0xf]
        %v1592 = vld [vmem:[#allocation3 + $0x2c] sm:$0xf]
        %v1593 = vld [vmem:[#allocation3 + $0x30] sm:$0xf]
        %v1594 = vld [vmem:[#allocation3 + $0x34] sm:$0xf]
        %v1595 = vld [vmem:[#allocation3 + $0x38] sm:$0xf]
        %v1596 = vld [vmem:[#allocation3 + $0x3c] sm:$0xf]
        %v1597 = vld [vmem:[#allocation3 + $0x40] sm:$0xf]
        %v1598 = vld [vmem:[#allocation3 + $0x44] sm:$0xf]
        %v1599 = vld [vmem:[#allocation3 + $0x48] sm:$0xf]
        %v1600 = vld [vmem:[#allocation3 + $0x4c] sm:$0xf]
        %v1601 = vld [vmem:[#allocation3 + $0x50] sm:$0xf]
        %v1602 = vld [vmem:[#allocation3 + $0x54] sm:$0xf]
        %v1603 = vld [vmem:[#allocation3 + $0x58] sm:$0xf]
        %v1604 = vld [vmem:[#allocation3 + $0x5c] sm:$0xf]
        %v1605 = vld [vmem:[#allocation3 + $0x60] sm:$0xf]
        %v1606 = vld [vmem:[#allocation3 + $0x64] sm:$0xf]
        %v1607 = vld [vmem:[#allocation3 + $0x68] sm:$0xf]
        %v1608 = vld [vmem:[#allocation3 + $0x6c] sm:$0xf]
        %v1609 = vld [vmem:[#allocation3 + $0x70] sm:$0xf]
        %v1610 = vld [vmem:[#allocation3 + $0x74] sm:$0xf]
        %v1611 = vld [vmem:[#allocation3 + $0x78] sm:$0xf]
        %v1612 = vld [vmem:[#allocation3 + $0x7c] sm:$0xf]
        %v1613 = vld [vmem:[#allocation3 + $0x80] sm:$0xf]
        %v1614 = vld [vmem:[#allocation3 + $0x84] sm:$0xf]
        %v1615 = vld [vmem:[#allocation3 + $0x88] sm:$0xf]
        %v1616 = vld [vmem:[#allocation3 + $0x8c] sm:$0xf]
        %v1617 = vld [vmem:[#allocation3 + $0x90] sm:$0xf]
        %v1618 = vld [vmem:[#allocation3 + $0x94] sm:$0xf]
        %v1619 = vld [vmem:[#allocation3 + $0x98] sm:$0xf]
        %v1620 = vld [vmem:[#allocation3 + $0x9c] sm:$0xf]
        %v1621 = vld [vmem:[#allocation3 + $0xa0] sm:$0xf]
        %v1622 = vld [vmem:[#allocation3 + $0xa4] sm:$0xf]
        %v1623 = vld [vmem:[#allocation3 + $0xa8] sm:$0xf]
        %v1624 = vld [vmem:[#allocation3 + $0xac] sm:$0xf]
        %v1625 = vld [vmem:[#allocation3 + $0xb0] sm:$0xf]
        %v1626 = vld [vmem:[#allocation3 + $0xb4] sm:$0xf]
        %v1627 = vld [vmem:[#allocation3 + $0xb8] sm:$0xf]
        %v1628 = vld [vmem:[#allocation3 + $0xbc] sm:$0xf]
        %v1629 = vld [vmem:[#allocation3 + $0xc0] sm:$0xf]
        %v1630 = vld [vmem:[#allocation3 + $0xc4] sm:$0xf]
        %v1631 = vld [vmem:[#allocation3 + $0xc8] sm:$0xf]
        %v1632 = vld [vmem:[#allocation3 + $0xcc] sm:$0xf]
        %v1633 = vld [vmem:[#allocation3 + $0xd0] sm:$0xf]
        %v1634 = vld [vmem:[#allocation3 + $0xd4] sm:$0xf]
        %v1635 = vld [vmem:[#allocation3 + $0xd8] sm:$0xf]
        %v1636 = vld [vmem:[#allocation3 + $0xdc] sm:$0xf]
        %v1637 = vld [vmem:[#allocation3 + $0xe0] sm:$0xf]
        %v1638 = vld [vmem:[#allocation3 + $0xe4] sm:$0xf]
        %v1639 = vld [vmem:[#allocation3 + $0xe8] sm:$0xf]
        %v1640 = vld [vmem:[#allocation3 + $0xec] sm:$0xf]
        %v1641 = vld [vmem:[#allocation3 + $0xf0] sm:$0xf]
        %v1642 = vld [vmem:[#allocation3 + $0xf4] sm:$0xf]
        %v1643 = vld [vmem:[#allocation3 + $0xf8] sm:$0xf]
        %v1644 = vld [vmem:[#allocation3 + $0xfc] sm:$0xf]
        %v1645 = vld [vmem:[#allocation3 + $0x100] sm:$0xf]
        %v1646 = vld [vmem:[#allocation3 + $0x104] sm:$0xf]
        %v1647 = vld [vmem:[#allocation3 + $0x108] sm:$0xf]
        %v1648 = vld [vmem:[#allocation3 + $0x10c] sm:$0xf]
        %v1649 = vld [vmem:[#allocation3 + $0x110] sm:$0xf]
        %v1650 = vld [vmem:[#allocation3 + $0x114] sm:$0xf]
        %v1651 = vld [vmem:[#allocation3 + $0x118] sm:$0xf]
        %v1652 = vld [vmem:[#allocation3 + $0x11c] sm:$0xf]
        %v1653 = vld [vmem:[#allocation3 + $0x120] sm:$0xf]
        %v1654 = vld [vmem:[#allocation3 + $0x124] sm:$0xf]
        %v1655 = vld [vmem:[#allocation3 + $0x128] sm:$0xf]
        %v1656 = vld [vmem:[#allocation3 + $0x12c] sm:$0xf]
        %v1657 = vld [vmem:[#allocation3 + $0x130] sm:$0xf]
        %v1658 = vld [vmem:[#allocation3 + $0x134] sm:$0xf]
        %v1659 = vld [vmem:[#allocation3 + $0x138] sm:$0xf]
        %v1660 = vld [vmem:[#allocation3 + $0x13c] sm:$0xf]
        %v1661 = vld [vmem:[#allocation3 + $0x140] sm:$0xf]
        %v1662 = vld [vmem:[#allocation3 + $0x144] sm:$0xf]
        %v1663 = vld [vmem:[#allocation3 + $0x148] sm:$0xf]
        %v1664 = vld [vmem:[#allocation3 + $0x14c] sm:$0xf]
        %v1665 = vld [vmem:[#allocation3 + $0x150] sm:$0xf]
        %v1666 = vld [vmem:[#allocation3 + $0x154] sm:$0xf]
        %v1667 = vld [vmem:[#allocation3 + $0x158] sm:$0xf]
        %v1668 = vld [vmem:[#allocation3 + $0x15c] sm:$0xf]
        %v1669 = vld [vmem:[#allocation3 + $0x160] sm:$0xf]
        %v1670 = vld [vmem:[#allocation3 + $0x164] sm:$0xf]
        %v1671 = vld [vmem:[#allocation3 + $0x168] sm:$0xf]
        %v1672 = vld [vmem:[#allocation3 + $0x16c] sm:$0xf]
        %v1673 = vld [vmem:[#allocation3 + $0x170] sm:$0xf]
        %v1674 = vld [vmem:[#allocation3 + $0x174] sm:$0xf]
        %v1675 = vld [vmem:[#allocation3 + $0x178] sm:$0xf]
        %v1676 = vld [vmem:[#allocation3 + $0x17c] sm:$0xf]
        %v1677 = vld [vmem:[#allocation3 + $0x180] sm:$0xf]
        %v1678 = vld [vmem:[#allocation3 + $0x184] sm:$0xf]
        %v1679 = vld [vmem:[#allocation3 + $0x188] sm:$0xf]
        %v1680 = vld [vmem:[#allocation3 + $0x18c] sm:$0xf]
        %v1681 = vld [vmem:[#allocation3 + $0x190] sm:$0xf]
        %v1682 = vld [vmem:[#allocation3 + $0x194] sm:$0xf]
        %v1683 = vld [vmem:[#allocation3 + $0x198] sm:$0xf]
        %v1684 = vld [vmem:[#allocation3 + $0x19c] sm:$0xf]
        %v1685 = vld [vmem:[#allocation3 + $0x1a0] sm:$0xf]
        %v1686 = vld [vmem:[#allocation3 + $0x1a4] sm:$0xf]
        %v1687 = vld [vmem:[#allocation3 + $0x1a8] sm:$0xf]
        %v1688 = vld [vmem:[#allocation3 + $0x1ac] sm:$0xf]
        %v1689 = vld [vmem:[#allocation3 + $0x1b0] sm:$0xf]
        %v1690 = vld [vmem:[#allocation3 + $0x1b4] sm:$0xf]
        %v1691 = vld [vmem:[#allocation3 + $0x1b8] sm:$0xf]
        %v1692 = vld [vmem:[#allocation3 + $0x1bc] sm:$0xf]
        %v1693 = vld [vmem:[#allocation3 + $0x1c0] sm:$0xf]
        %v1694 = vld [vmem:[#allocation3 + $0x1c4] sm:$0xf]
        %v1695 = vld [vmem:[#allocation3 + $0x1c8] sm:$0xf]
        %v1696 = vld [vmem:[#allocation3 + $0x1cc] sm:$0xf]
        %v1697 = vld [vmem:[#allocation3 + $0x1d0] sm:$0xf]
        %v1698 = vld [vmem:[#allocation3 + $0x1d4] sm:$0xf]
        %v1699 = vld [vmem:[#allocation3 + $0x1d8] sm:$0xf]
        %v1700 = vld [vmem:[#allocation3 + $0x1dc] sm:$0xf]
        %v1701 = vld [vmem:[#allocation3 + $0x1e0] sm:$0xf]
        %v1702 = vld [vmem:[#allocation3 + $0x1e4] sm:$0xf]
        %v1703 = vld [vmem:[#allocation3 + $0x1e8] sm:$0xf]
        %v1704 = vld [vmem:[#allocation3 + $0x1ec] sm:$0xf]
        %v1705 = vld [vmem:[#allocation3 + $0x1f0] sm:$0xf]
        %v1706 = vld [vmem:[#allocation3 + $0x1f4] sm:$0xf]
        %v1707 = vld [vmem:[#allocation3 + $0x1f8] sm:$0xf]
        %v1708 = vld [vmem:[#allocation3 + $0x1fc] sm:$0xf]
        %v1709 = vpack.c.bf16 %v1457, %v1453
        %v1710 = vpack.c.bf16 %v1458, %v1454
        %v1711 = vpack.c.bf16 %v1459, %v1455
        %v1712 = vpack.c.bf16 %v1460, %v1456
        %v1713 = vpack.c.bf16 %v1465, %v1461
        %v1714 = vpack.c.bf16 %v1466, %v1462
        %v1715 = vpack.c.bf16 %v1467, %v1463
        %v1716 = vpack.c.bf16 %v1468, %v1464
        %v1717 = vpack.c.bf16 %v1473, %v1469
        %v1718 = vpack.c.bf16 %v1474, %v1470
        %v1719 = vpack.c.bf16 %v1475, %v1471
        %v1720 = vpack.c.bf16 %v1476, %v1472
        %v1721 = vpack.c.bf16 %v1481, %v1477
        %v1722 = vpack.c.bf16 %v1482, %v1478
        %v1723 = vpack.c.bf16 %v1483, %v1479
        %v1724 = vpack.c.bf16 %v1484, %v1480
        %v1725 = vpack.c.bf16 %v1489, %v1485
        %v1726 = vpack.c.bf16 %v1490, %v1486
        %v1727 = vpack.c.bf16 %v1491, %v1487
        %v1728 = vpack.c.bf16 %v1492, %v1488
        %v1729 = vpack.c.bf16 %v1497, %v1493
        %v1730 = vpack.c.bf16 %v1498, %v1494
        %v1731 = vpack.c.bf16 %v1499, %v1495
        %v1732 = vpack.c.bf16 %v1500, %v1496
        %v1733 = vpack.c.bf16 %v1505, %v1501
        %v1734 = vpack.c.bf16 %v1506, %v1502
        %v1735 = vpack.c.bf16 %v1507, %v1503
        %v1736 = vpack.c.bf16 %v1508, %v1504
        %v1737 = vpack.c.bf16 %v1513, %v1509
        %v1738 = vpack.c.bf16 %v1514, %v1510
        %v1739 = vpack.c.bf16 %v1515, %v1511
        %v1740 = vpack.c.bf16 %v1516, %v1512
        %v1741 = vld [vmem:[%s6] sm:$0xff]
        %v1742 = vld [vmem:[%s6 + $0x8] sm:$0xff]
        %v1743 = vld [vmem:[%s6 + $0x10] sm:$0xff]
        %v1744 = vld [vmem:[%s6 + $0x18] sm:$0xff]
        %v1745 = vld [vmem:[%s6 + $0x20] sm:$0xff]
        %v1746 = vld [vmem:[%s6 + $0x28] sm:$0xff]
        %v1747 = vld [vmem:[%s6 + $0x30] sm:$0xff]
        %v1748 = vld [vmem:[%s6 + $0x38] sm:$0xff]
        %v1749 = vld [vmem:[%s6 + $0x40] sm:$0xff]
        %v1750 = vld [vmem:[%s6 + $0x48] sm:$0xff]
        %v1751 = vld [vmem:[%s6 + $0x50] sm:$0xff]
        %v1752 = vld [vmem:[%s6 + $0x58] sm:$0xff]
        %v1753 = vld [vmem:[%s6 + $0x60] sm:$0xff]
        %v1754 = vld [vmem:[%s6 + $0x68] sm:$0xff]
        %v1755 = vld [vmem:[%s6 + $0x70] sm:$0xff]
        %v1756 = vld [vmem:[%s6 + $0x78] sm:$0xff]
        %v1757 = vld [vmem:[%s6 + $0x80] sm:$0xff]
        %v1758 = vld [vmem:[%s6 + $0x88] sm:$0xff]
        %v1759 = vld [vmem:[%s6 + $0x90] sm:$0xff]
        %v1760 = vld [vmem:[%s6 + $0x98] sm:$0xff]
        %v1761 = vld [vmem:[%s6 + $0xa0] sm:$0xff]
        %v1762 = vld [vmem:[%s6 + $0xa8] sm:$0xff]
        %v1763 = vld [vmem:[%s6 + $0xb0] sm:$0xff]
        %v1764 = vld [vmem:[%s6 + $0xb8] sm:$0xff]
        %v1765 = vld [vmem:[%s6 + $0xc0] sm:$0xff]
        %v1766 = vld [vmem:[%s6 + $0xc8] sm:$0xff]
        %v1767 = vld [vmem:[%s6 + $0xd0] sm:$0xff]
        %v1768 = vld [vmem:[%s6 + $0xd8] sm:$0xff]
        %v1769 = vld [vmem:[%s6 + $0xe0] sm:$0xff]
        %v1770 = vld [vmem:[%s6 + $0xe8] sm:$0xff]
        %v1771 = vld [vmem:[%s6 + $0xf0] sm:$0xff]
        %v1772 = vld [vmem:[%s6 + $0xf8] sm:$0xff]
        %v1773 = vld [vmem:[%s6 + $0x100] sm:$0xff]
        %v1774 = vld [vmem:[%s6 + $0x108] sm:$0xff]
        %v1775 = vld [vmem:[%s6 + $0x110] sm:$0xff]
        %v1776 = vld [vmem:[%s6 + $0x118] sm:$0xff]
        %v1777 = vld [vmem:[%s6 + $0x120] sm:$0xff]
        %v1778 = vld [vmem:[%s6 + $0x128] sm:$0xff]
        %v1779 = vld [vmem:[%s6 + $0x130] sm:$0xff]
        %v1780 = vld [vmem:[%s6 + $0x138] sm:$0xff]
        %v1781 = vld [vmem:[%s6 + $0x140] sm:$0xff]
        %v1782 = vld [vmem:[%s6 + $0x148] sm:$0xff]
        %v1783 = vld [vmem:[%s6 + $0x150] sm:$0xff]
        %v1784 = vld [vmem:[%s6 + $0x158] sm:$0xff]
        %v1785 = vld [vmem:[%s6 + $0x160] sm:$0xff]
        %v1786 = vld [vmem:[%s6 + $0x168] sm:$0xff]
        %v1787 = vld [vmem:[%s6 + $0x170] sm:$0xff]
        %v1788 = vld [vmem:[%s6 + $0x178] sm:$0xff]
        %v1789 = vld [vmem:[%s6 + $0x180] sm:$0xff]
        %v1790 = vld [vmem:[%s6 + $0x188] sm:$0xff]
        %v1791 = vld [vmem:[%s6 + $0x190] sm:$0xff]
        %v1792 = vld [vmem:[%s6 + $0x198] sm:$0xff]
        %v1793 = vld [vmem:[%s6 + $0x1a0] sm:$0xff]
        %v1794 = vld [vmem:[%s6 + $0x1a8] sm:$0xff]
        %v1795 = vld [vmem:[%s6 + $0x1b0] sm:$0xff]
        %v1796 = vld [vmem:[%s6 + $0x1b8] sm:$0xff]
        %v1797 = vld [vmem:[%s6 + $0x1c0] sm:$0xff]
        %v1798 = vld [vmem:[%s6 + $0x1c8] sm:$0xff]
        %v1799 = vld [vmem:[%s6 + $0x1d0] sm:$0xff]
        %v1800 = vld [vmem:[%s6 + $0x1d8] sm:$0xff]
        %v1801 = vld [vmem:[%s6 + $0x1e0] sm:$0xff]
        %v1802 = vld [vmem:[%s6 + $0x1e8] sm:$0xff]
        %v1803 = vld [vmem:[%s6 + $0x1f0] sm:$0xff]
        %v1804 = vld [vmem:[%s6 + $0x1f8] sm:$0xff]
        %v1805 = vld [vmem:[%s6 + $0x200] sm:$0xff]
        %v1806 = vld [vmem:[%s6 + $0x208] sm:$0xff]
        %v1807 = vld [vmem:[%s6 + $0x210] sm:$0xff]
        %v1808 = vld [vmem:[%s6 + $0x218] sm:$0xff]
        %v1809 = vld [vmem:[%s6 + $0x220] sm:$0xff]
        %v1810 = vld [vmem:[%s6 + $0x228] sm:$0xff]
        %v1811 = vld [vmem:[%s6 + $0x230] sm:$0xff]
        %v1812 = vld [vmem:[%s6 + $0x238] sm:$0xff]
        %v1813 = vld [vmem:[%s6 + $0x240] sm:$0xff]
        %v1814 = vld [vmem:[%s6 + $0x248] sm:$0xff]
        %v1815 = vld [vmem:[%s6 + $0x250] sm:$0xff]
        %v1816 = vld [vmem:[%s6 + $0x258] sm:$0xff]
        %v1817 = vld [vmem:[%s6 + $0x260] sm:$0xff]
        %v1818 = vld [vmem:[%s6 + $0x268] sm:$0xff]
        %v1819 = vld [vmem:[%s6 + $0x270] sm:$0xff]
        %v1820 = vld [vmem:[%s6 + $0x278] sm:$0xff]
        %v1821 = vld [vmem:[%s6 + $0x280] sm:$0xff]
        %v1822 = vld [vmem:[%s6 + $0x288] sm:$0xff]
        %v1823 = vld [vmem:[%s6 + $0x290] sm:$0xff]
        %v1824 = vld [vmem:[%s6 + $0x298] sm:$0xff]
        %v1825 = vld [vmem:[%s6 + $0x2a0] sm:$0xff]
        %v1826 = vld [vmem:[%s6 + $0x2a8] sm:$0xff]
        %v1827 = vld [vmem:[%s6 + $0x2b0] sm:$0xff]
        %v1828 = vld [vmem:[%s6 + $0x2b8] sm:$0xff]
        %v1829 = vld [vmem:[%s6 + $0x2c0] sm:$0xff]
        %v1830 = vld [vmem:[%s6 + $0x2c8] sm:$0xff]
        %v1831 = vld [vmem:[%s6 + $0x2d0] sm:$0xff]
        %v1832 = vld [vmem:[%s6 + $0x2d8] sm:$0xff]
        %v1833 = vld [vmem:[%s6 + $0x2e0] sm:$0xff]
        %v1834 = vld [vmem:[%s6 + $0x2e8] sm:$0xff]
        %v1835 = vld [vmem:[%s6 + $0x2f0] sm:$0xff]
        %v1836 = vld [vmem:[%s6 + $0x2f8] sm:$0xff]
        %v1837 = vld [vmem:[%s6 + $0x300] sm:$0xff]
        %v1838 = vld [vmem:[%s6 + $0x308] sm:$0xff]
        %v1839 = vld [vmem:[%s6 + $0x310] sm:$0xff]
        %v1840 = vld [vmem:[%s6 + $0x318] sm:$0xff]
        %v1841 = vld [vmem:[%s6 + $0x320] sm:$0xff]
        %v1842 = vld [vmem:[%s6 + $0x328] sm:$0xff]
        %v1843 = vld [vmem:[%s6 + $0x330] sm:$0xff]
        %v1844 = vld [vmem:[%s6 + $0x338] sm:$0xff]
        %v1845 = vld [vmem:[%s6 + $0x340] sm:$0xff]
        %v1846 = vld [vmem:[%s6 + $0x348] sm:$0xff]
        %v1847 = vld [vmem:[%s6 + $0x350] sm:$0xff]
        %v1848 = vld [vmem:[%s6 + $0x358] sm:$0xff]
        %v1849 = vld [vmem:[%s6 + $0x360] sm:$0xff]
        %v1850 = vld [vmem:[%s6 + $0x368] sm:$0xff]
        %v1851 = vld [vmem:[%s6 + $0x370] sm:$0xff]
        %v1852 = vld [vmem:[%s6 + $0x378] sm:$0xff]
        %v1853 = vld [vmem:[%s6 + $0x380] sm:$0xff]
        %v1854 = vld [vmem:[%s6 + $0x388] sm:$0xff]
        %v1855 = vld [vmem:[%s6 + $0x390] sm:$0xff]
        %v1856 = vld [vmem:[%s6 + $0x398] sm:$0xff]
        %v1857 = vld [vmem:[%s6 + $0x3a0] sm:$0xff]
        %v1858 = vld [vmem:[%s6 + $0x3a8] sm:$0xff]
        %v1859 = vld [vmem:[%s6 + $0x3b0] sm:$0xff]
        %v1860 = vld [vmem:[%s6 + $0x3b8] sm:$0xff]
        %v1861 = vld [vmem:[%s6 + $0x3c0] sm:$0xff]
        %v1862 = vld [vmem:[%s6 + $0x3c8] sm:$0xff]
        %v1863 = vld [vmem:[%s6 + $0x3d0] sm:$0xff]
        %v1864 = vld [vmem:[%s6 + $0x3d8] sm:$0xff]
        %v1865 = vld [vmem:[%s6 + $0x3e0] sm:$0xff]
        %v1866 = vld [vmem:[%s6 + $0x3e8] sm:$0xff]
        %v1867 = vld [vmem:[%s6 + $0x3f0] sm:$0xff]
        %v1868 = vld [vmem:[%s6 + $0x3f8] sm:$0xff]
        %1870 = vset.pattern.permute.xlu0 0
        %1871 = vperm.xlu0 %1870, %v1741
        %v1872 = vpop.permute.xlu0 %1871
        %1875 = vset.pattern.permute.xlu0 0
        %1876 = vperm.xlu0 %1875, %v1742
        %v1877 = vpop.permute.xlu0 %1876
        %1880 = vset.pattern.permute.xlu0 0
        %1881 = vperm.xlu0 %1880, %v1743
        %v1882 = vpop.permute.xlu0 %1881
        %1885 = vset.pattern.permute.xlu0 0
        %1886 = vperm.xlu0 %1885, %v1744
        %v1887 = vpop.permute.xlu0 %1886
        %1890 = vset.pattern.permute.xlu0 0
        %1891 = vperm.xlu0 %1890, %v1745
        %v1892 = vpop.permute.xlu0 %1891
        %1895 = vset.pattern.permute.xlu0 0
        %1896 = vperm.xlu0 %1895, %v1746
        %v1897 = vpop.permute.xlu0 %1896
        %1900 = vset.pattern.permute.xlu0 0
        %1901 = vperm.xlu0 %1900, %v1747
        %v1902 = vpop.permute.xlu0 %1901
        %1905 = vset.pattern.permute.xlu0 0
        %1906 = vperm.xlu0 %1905, %v1748
        %v1907 = vpop.permute.xlu0 %1906
        %1910 = vset.pattern.permute.xlu0 0
        %1911 = vperm.xlu0 %1910, %v1749
        %v1912 = vpop.permute.xlu0 %1911
        %1915 = vset.pattern.permute.xlu0 0
        %1916 = vperm.xlu0 %1915, %v1750
        %v1917 = vpop.permute.xlu0 %1916
        %1920 = vset.pattern.permute.xlu0 0
        %1921 = vperm.xlu0 %1920, %v1751
        %v1922 = vpop.permute.xlu0 %1921
        %1925 = vset.pattern.permute.xlu0 0
        %1926 = vperm.xlu0 %1925, %v1752
        %v1927 = vpop.permute.xlu0 %1926
        %1930 = vset.pattern.permute.xlu0 0
        %1931 = vperm.xlu0 %1930, %v1753
        %v1932 = vpop.permute.xlu0 %1931
        %1935 = vset.pattern.permute.xlu0 0
        %1936 = vperm.xlu0 %1935, %v1754
        %v1937 = vpop.permute.xlu0 %1936
        %1940 = vset.pattern.permute.xlu0 0
        %1941 = vperm.xlu0 %1940, %v1755
        %v1942 = vpop.permute.xlu0 %1941
        %1945 = vset.pattern.permute.xlu0 0
        %1946 = vperm.xlu0 %1945, %v1756
        %v1947 = vpop.permute.xlu0 %1946
        %1950 = vset.pattern.permute.xlu0 0
        %1951 = vperm.xlu0 %1950, %v1757
        %v1952 = vpop.permute.xlu0 %1951
        %1955 = vset.pattern.permute.xlu0 0
        %1956 = vperm.xlu0 %1955, %v1758
        %v1957 = vpop.permute.xlu0 %1956
        %1960 = vset.pattern.permute.xlu0 0
        %1961 = vperm.xlu0 %1960, %v1759
        %v1962 = vpop.permute.xlu0 %1961
        %1965 = vset.pattern.permute.xlu0 0
        %1966 = vperm.xlu0 %1965, %v1760
        %v1967 = vpop.permute.xlu0 %1966
        %1970 = vset.pattern.permute.xlu0 0
        %1971 = vperm.xlu0 %1970, %v1761
        %v1972 = vpop.permute.xlu0 %1971
        %1975 = vset.pattern.permute.xlu0 0
        %1976 = vperm.xlu0 %1975, %v1762
        %v1977 = vpop.permute.xlu0 %1976
        %1980 = vset.pattern.permute.xlu0 0
        %1981 = vperm.xlu0 %1980, %v1763
        %v1982 = vpop.permute.xlu0 %1981
        %1985 = vset.pattern.permute.xlu0 0
        %1986 = vperm.xlu0 %1985, %v1764
        %v1987 = vpop.permute.xlu0 %1986
        %1990 = vset.pattern.permute.xlu0 0
        %1991 = vperm.xlu0 %1990, %v1765
        %v1992 = vpop.permute.xlu0 %1991
        %1995 = vset.pattern.permute.xlu0 0
        %1996 = vperm.xlu0 %1995, %v1766
        %v1997 = vpop.permute.xlu0 %1996
        %2000 = vset.pattern.permute.xlu0 0
        %2001 = vperm.xlu0 %2000, %v1767
        %v2002 = vpop.permute.xlu0 %2001
        %2005 = vset.pattern.permute.xlu0 0
        %2006 = vperm.xlu0 %2005, %v1768
        %v2007 = vpop.permute.xlu0 %2006
        %2010 = vset.pattern.permute.xlu0 0
        %2011 = vperm.xlu0 %2010, %v1769
        %v2012 = vpop.permute.xlu0 %2011
        %2015 = vset.pattern.permute.xlu0 0
        %2016 = vperm.xlu0 %2015, %v1770
        %v2017 = vpop.permute.xlu0 %2016
        %2020 = vset.pattern.permute.xlu0 0
        %2021 = vperm.xlu0 %2020, %v1771
        %v2022 = vpop.permute.xlu0 %2021
        %2025 = vset.pattern.permute.xlu0 0
        %2026 = vperm.xlu0 %2025, %v1772
        %v2027 = vpop.permute.xlu0 %2026
        %2030 = vset.pattern.permute.xlu0 0
        %2031 = vperm.xlu0 %2030, %v1773
        %v2032 = vpop.permute.xlu0 %2031
        %2035 = vset.pattern.permute.xlu0 0
        %2036 = vperm.xlu0 %2035, %v1774
        %v2037 = vpop.permute.xlu0 %2036
        %2040 = vset.pattern.permute.xlu0 0
        %2041 = vperm.xlu0 %2040, %v1775
        %v2042 = vpop.permute.xlu0 %2041
        %2045 = vset.pattern.permute.xlu0 0
        %2046 = vperm.xlu0 %2045, %v1776
        %v2047 = vpop.permute.xlu0 %2046
        %2050 = vset.pattern.permute.xlu0 0
        %2051 = vperm.xlu0 %2050, %v1777
        %v2052 = vpop.permute.xlu0 %2051
        %2055 = vset.pattern.permute.xlu0 0
        %2056 = vperm.xlu0 %2055, %v1778
        %v2057 = vpop.permute.xlu0 %2056
        %2060 = vset.pattern.permute.xlu0 0
        %2061 = vperm.xlu0 %2060, %v1779
        %v2062 = vpop.permute.xlu0 %2061
        %2065 = vset.pattern.permute.xlu0 0
        %2066 = vperm.xlu0 %2065, %v1780
        %v2067 = vpop.permute.xlu0 %2066
        %2070 = vset.pattern.permute.xlu0 0
        %2071 = vperm.xlu0 %2070, %v1781
        %v2072 = vpop.permute.xlu0 %2071
        %2075 = vset.pattern.permute.xlu0 0
        %2076 = vperm.xlu0 %2075, %v1782
        %v2077 = vpop.permute.xlu0 %2076
        %2080 = vset.pattern.permute.xlu0 0
        %2081 = vperm.xlu0 %2080, %v1783
        %v2082 = vpop.permute.xlu0 %2081
        %2085 = vset.pattern.permute.xlu0 0
        %2086 = vperm.xlu0 %2085, %v1784
        %v2087 = vpop.permute.xlu0 %2086
        %2090 = vset.pattern.permute.xlu0 0
        %2091 = vperm.xlu0 %2090, %v1785
        %v2092 = vpop.permute.xlu0 %2091
        %2095 = vset.pattern.permute.xlu0 0
        %2096 = vperm.xlu0 %2095, %v1786
        %v2097 = vpop.permute.xlu0 %2096
        %2100 = vset.pattern.permute.xlu0 0
        %2101 = vperm.xlu0 %2100, %v1787
        %v2102 = vpop.permute.xlu0 %2101
        %2105 = vset.pattern.permute.xlu0 0
        %2106 = vperm.xlu0 %2105, %v1788
        %v2107 = vpop.permute.xlu0 %2106
        %2110 = vset.pattern.permute.xlu0 0
        %2111 = vperm.xlu0 %2110, %v1789
        %v2112 = vpop.permute.xlu0 %2111
        %2115 = vset.pattern.permute.xlu0 0
        %2116 = vperm.xlu0 %2115, %v1790
        %v2117 = vpop.permute.xlu0 %2116
        %2120 = vset.pattern.permute.xlu0 0
        %2121 = vperm.xlu0 %2120, %v1791
        %v2122 = vpop.permute.xlu0 %2121
        %2125 = vset.pattern.permute.xlu0 0
        %2126 = vperm.xlu0 %2125, %v1792
        %v2127 = vpop.permute.xlu0 %2126
        %2130 = vset.pattern.permute.xlu0 0
        %2131 = vperm.xlu0 %2130, %v1793
        %v2132 = vpop.permute.xlu0 %2131
        %2135 = vset.pattern.permute.xlu0 0
        %2136 = vperm.xlu0 %2135, %v1794
        %v2137 = vpop.permute.xlu0 %2136
        %2140 = vset.pattern.permute.xlu0 0
        %2141 = vperm.xlu0 %2140, %v1795
        %v2142 = vpop.permute.xlu0 %2141
        %2145 = vset.pattern.permute.xlu0 0
        %2146 = vperm.xlu0 %2145, %v1796
        %v2147 = vpop.permute.xlu0 %2146
        %2150 = vset.pattern.permute.xlu0 0
        %2151 = vperm.xlu0 %2150, %v1797
        %v2152 = vpop.permute.xlu0 %2151
        %2155 = vset.pattern.permute.xlu0 0
        %2156 = vperm.xlu0 %2155, %v1798
        %v2157 = vpop.permute.xlu0 %2156
        %2160 = vset.pattern.permute.xlu0 0
        %2161 = vperm.xlu0 %2160, %v1799
        %v2162 = vpop.permute.xlu0 %2161
        %2165 = vset.pattern.permute.xlu0 0
        %2166 = vperm.xlu0 %2165, %v1800
        %v2167 = vpop.permute.xlu0 %2166
        %2170 = vset.pattern.permute.xlu0 0
        %2171 = vperm.xlu0 %2170, %v1801
        %v2172 = vpop.permute.xlu0 %2171
        %2175 = vset.pattern.permute.xlu0 0
        %2176 = vperm.xlu0 %2175, %v1802
        %v2177 = vpop.permute.xlu0 %2176
        %2180 = vset.pattern.permute.xlu0 0
        %2181 = vperm.xlu0 %2180, %v1803
        %v2182 = vpop.permute.xlu0 %2181
        %2185 = vset.pattern.permute.xlu0 0
        %2186 = vperm.xlu0 %2185, %v1804
        %v2187 = vpop.permute.xlu0 %2186
        %2190 = vset.pattern.permute.xlu0 0
        %2191 = vperm.xlu0 %2190, %v1805
        %v2192 = vpop.permute.xlu0 %2191
        %2195 = vset.pattern.permute.xlu0 0
        %2196 = vperm.xlu0 %2195, %v1806
        %v2197 = vpop.permute.xlu0 %2196
        %2200 = vset.pattern.permute.xlu0 0
        %2201 = vperm.xlu0 %2200, %v1807
        %v2202 = vpop.permute.xlu0 %2201
        %2205 = vset.pattern.permute.xlu0 0
        %2206 = vperm.xlu0 %2205, %v1808
        %v2207 = vpop.permute.xlu0 %2206
        %2210 = vset.pattern.permute.xlu0 0
        %2211 = vperm.xlu0 %2210, %v1809
        %v2212 = vpop.permute.xlu0 %2211
        %2215 = vset.pattern.permute.xlu0 0
        %2216 = vperm.xlu0 %2215, %v1810
        %v2217 = vpop.permute.xlu0 %2216
        %2220 = vset.pattern.permute.xlu0 0
        %2221 = vperm.xlu0 %2220, %v1811
        %v2222 = vpop.permute.xlu0 %2221
        %2225 = vset.pattern.permute.xlu0 0
        %2226 = vperm.xlu0 %2225, %v1812
        %v2227 = vpop.permute.xlu0 %2226
        %2230 = vset.pattern.permute.xlu0 0
        %2231 = vperm.xlu0 %2230, %v1813
        %v2232 = vpop.permute.xlu0 %2231
        %2235 = vset.pattern.permute.xlu0 0
        %2236 = vperm.xlu0 %2235, %v1814
        %v2237 = vpop.permute.xlu0 %2236
        %2240 = vset.pattern.permute.xlu0 0
        %2241 = vperm.xlu0 %2240, %v1815
        %v2242 = vpop.permute.xlu0 %2241
        %2245 = vset.pattern.permute.xlu0 0
        %2246 = vperm.xlu0 %2245, %v1816
        %v2247 = vpop.permute.xlu0 %2246
        %2250 = vset.pattern.permute.xlu0 0
        %2251 = vperm.xlu0 %2250, %v1817
        %v2252 = vpop.permute.xlu0 %2251
        %2255 = vset.pattern.permute.xlu0 0
        %2256 = vperm.xlu0 %2255, %v1818
        %v2257 = vpop.permute.xlu0 %2256
        %2260 = vset.pattern.permute.xlu0 0
        %2261 = vperm.xlu0 %2260, %v1819
        %v2262 = vpop.permute.xlu0 %2261
        %2265 = vset.pattern.permute.xlu0 0
        %2266 = vperm.xlu0 %2265, %v1820
        %v2267 = vpop.permute.xlu0 %2266
        %2270 = vset.pattern.permute.xlu0 0
        %2271 = vperm.xlu0 %2270, %v1821
        %v2272 = vpop.permute.xlu0 %2271
        %2275 = vset.pattern.permute.xlu0 0
        %2276 = vperm.xlu0 %2275, %v1822
        %v2277 = vpop.permute.xlu0 %2276
        %2280 = vset.pattern.permute.xlu0 0
        %2281 = vperm.xlu0 %2280, %v1823
        %v2282 = vpop.permute.xlu0 %2281
        %2285 = vset.pattern.permute.xlu0 0
        %2286 = vperm.xlu0 %2285, %v1824
        %v2287 = vpop.permute.xlu0 %2286
        %2290 = vset.pattern.permute.xlu0 0
        %2291 = vperm.xlu0 %2290, %v1825
        %v2292 = vpop.permute.xlu0 %2291
        %2295 = vset.pattern.permute.xlu0 0
        %2296 = vperm.xlu0 %2295, %v1826
        %v2297 = vpop.permute.xlu0 %2296
        %2300 = vset.pattern.permute.xlu0 0
        %2301 = vperm.xlu0 %2300, %v1827
        %v2302 = vpop.permute.xlu0 %2301
        %2305 = vset.pattern.permute.xlu0 0
        %2306 = vperm.xlu0 %2305, %v1828
        %v2307 = vpop.permute.xlu0 %2306
        %2310 = vset.pattern.permute.xlu0 0
        %2311 = vperm.xlu0 %2310, %v1829
        %v2312 = vpop.permute.xlu0 %2311
        %2315 = vset.pattern.permute.xlu0 0
        %2316 = vperm.xlu0 %2315, %v1830
        %v2317 = vpop.permute.xlu0 %2316
        %2320 = vset.pattern.permute.xlu0 0
        %2321 = vperm.xlu0 %2320, %v1831
        %v2322 = vpop.permute.xlu0 %2321
        %2325 = vset.pattern.permute.xlu0 0
        %2326 = vperm.xlu0 %2325, %v1832
        %v2327 = vpop.permute.xlu0 %2326
        %2330 = vset.pattern.permute.xlu0 0
        %2331 = vperm.xlu0 %2330, %v1833
        %v2332 = vpop.permute.xlu0 %2331
        %2335 = vset.pattern.permute.xlu0 0
        %2336 = vperm.xlu0 %2335, %v1834
        %v2337 = vpop.permute.xlu0 %2336
        %2340 = vset.pattern.permute.xlu0 0
        %2341 = vperm.xlu0 %2340, %v1835
        %v2342 = vpop.permute.xlu0 %2341
        %2345 = vset.pattern.permute.xlu0 0
        %2346 = vperm.xlu0 %2345, %v1836
        %v2347 = vpop.permute.xlu0 %2346
        %2350 = vset.pattern.permute.xlu0 0
        %2351 = vperm.xlu0 %2350, %v1837
        %v2352 = vpop.permute.xlu0 %2351
        %2355 = vset.pattern.permute.xlu0 0
        %2356 = vperm.xlu0 %2355, %v1838
        %v2357 = vpop.permute.xlu0 %2356
        %2360 = vset.pattern.permute.xlu0 0
        %2361 = vperm.xlu0 %2360, %v1839
        %v2362 = vpop.permute.xlu0 %2361
        %2365 = vset.pattern.permute.xlu0 0
        %2366 = vperm.xlu0 %2365, %v1840
        %v2367 = vpop.permute.xlu0 %2366
        %2370 = vset.pattern.permute.xlu0 0
        %2371 = vperm.xlu0 %2370, %v1841
        %v2372 = vpop.permute.xlu0 %2371
        %2375 = vset.pattern.permute.xlu0 0
        %2376 = vperm.xlu0 %2375, %v1842
        %v2377 = vpop.permute.xlu0 %2376
        %2380 = vset.pattern.permute.xlu0 0
        %2381 = vperm.xlu0 %2380, %v1843
        %v2382 = vpop.permute.xlu0 %2381
        %2385 = vset.pattern.permute.xlu0 0
        %2386 = vperm.xlu0 %2385, %v1844
        %v2387 = vpop.permute.xlu0 %2386
        %2390 = vset.pattern.permute.xlu0 0
        %2391 = vperm.xlu0 %2390, %v1845
        %v2392 = vpop.permute.xlu0 %2391
        %2395 = vset.pattern.permute.xlu0 0
        %2396 = vperm.xlu0 %2395, %v1846
        %v2397 = vpop.permute.xlu0 %2396
        %2400 = vset.pattern.permute.xlu0 0
        %2401 = vperm.xlu0 %2400, %v1847
        %v2402 = vpop.permute.xlu0 %2401
        %2405 = vset.pattern.permute.xlu0 0
        %2406 = vperm.xlu0 %2405, %v1848
        %v2407 = vpop.permute.xlu0 %2406
        %2410 = vset.pattern.permute.xlu0 0
        %2411 = vperm.xlu0 %2410, %v1849
        %v2412 = vpop.permute.xlu0 %2411
        %2415 = vset.pattern.permute.xlu0 0
        %2416 = vperm.xlu0 %2415, %v1850
        %v2417 = vpop.permute.xlu0 %2416
        %2420 = vset.pattern.permute.xlu0 0
        %2421 = vperm.xlu0 %2420, %v1851
        %v2422 = vpop.permute.xlu0 %2421
        %2425 = vset.pattern.permute.xlu0 0
        %2426 = vperm.xlu0 %2425, %v1852
        %v2427 = vpop.permute.xlu0 %2426
        %2430 = vset.pattern.permute.xlu0 0
        %2431 = vperm.xlu0 %2430, %v1853
        %v2432 = vpop.permute.xlu0 %2431
        %2435 = vset.pattern.permute.xlu0 0
        %2436 = vperm.xlu0 %2435, %v1854
        %v2437 = vpop.permute.xlu0 %2436
        %2440 = vset.pattern.permute.xlu0 0
        %2441 = vperm.xlu0 %2440, %v1855
        %v2442 = vpop.permute.xlu0 %2441
        %2445 = vset.pattern.permute.xlu0 0
        %2446 = vperm.xlu0 %2445, %v1856
        %v2447 = vpop.permute.xlu0 %2446
        %2450 = vset.pattern.permute.xlu0 0
        %2451 = vperm.xlu0 %2450, %v1857
        %v2452 = vpop.permute.xlu0 %2451
        %2455 = vset.pattern.permute.xlu0 0
        %2456 = vperm.xlu0 %2455, %v1858
        %v2457 = vpop.permute.xlu0 %2456
        %2460 = vset.pattern.permute.xlu0 0
        %2461 = vperm.xlu0 %2460, %v1859
        %v2462 = vpop.permute.xlu0 %2461
        %2465 = vset.pattern.permute.xlu0 0
        %2466 = vperm.xlu0 %2465, %v1860
        %v2467 = vpop.permute.xlu0 %2466
        %2470 = vset.pattern.permute.xlu0 0
        %2471 = vperm.xlu0 %2470, %v1861
        %v2472 = vpop.permute.xlu0 %2471
        %2475 = vset.pattern.permute.xlu0 0
        %2476 = vperm.xlu0 %2475, %v1862
        %v2477 = vpop.permute.xlu0 %2476
        %2480 = vset.pattern.permute.xlu0 0
        %2481 = vperm.xlu0 %2480, %v1863
        %v2482 = vpop.permute.xlu0 %2481
        %2485 = vset.pattern.permute.xlu0 0
        %2486 = vperm.xlu0 %2485, %v1864
        %v2487 = vpop.permute.xlu0 %2486
        %2490 = vset.pattern.permute.xlu0 0
        %2491 = vperm.xlu0 %2490, %v1865
        %v2492 = vpop.permute.xlu0 %2491
        %2495 = vset.pattern.permute.xlu0 0
        %2496 = vperm.xlu0 %2495, %v1866
        %v2497 = vpop.permute.xlu0 %2496
        %2500 = vset.pattern.permute.xlu0 0
        %2501 = vperm.xlu0 %2500, %v1867
        %v2502 = vpop.permute.xlu0 %2501
        %2505 = vset.pattern.permute.xlu0 0
        %2506 = vperm.xlu0 %2505, %v1868
        %v2507 = vpop.permute.xlu0 %2506
        %v2637 = vunpack.c.l.b16 %v1581
        %v2638 = vunpack.c.l.b16 %v1582
        %v2639 = vunpack.c.l.b16 %v1583
        %v2640 = vunpack.c.l.b16 %v1584
        %v2641 = vunpack.c.l.b16 %v1585
        %v2642 = vunpack.c.l.b16 %v1586
        %v2643 = vunpack.c.l.b16 %v1587
        %v2644 = vunpack.c.l.b16 %v1588
        %v2645 = vunpack.c.l.b16 %v1589
        %v2646 = vunpack.c.l.b16 %v1590
        %v2647 = vunpack.c.l.b16 %v1591
        %v2648 = vunpack.c.l.b16 %v1592
        %v2649 = vunpack.c.l.b16 %v1593
        %v2650 = vunpack.c.l.b16 %v1594
        %v2651 = vunpack.c.l.b16 %v1595
        %v2652 = vunpack.c.l.b16 %v1596
        %v2653 = vunpack.c.l.b16 %v1597
        %v2654 = vunpack.c.l.b16 %v1598
        %v2655 = vunpack.c.l.b16 %v1599
        %v2656 = vunpack.c.l.b16 %v1600
        %v2657 = vunpack.c.l.b16 %v1601
        %v2658 = vunpack.c.l.b16 %v1602
        %v2659 = vunpack.c.l.b16 %v1603
        %v2660 = vunpack.c.l.b16 %v1604
        %v2661 = vunpack.c.l.b16 %v1605
        %v2662 = vunpack.c.l.b16 %v1606
        %v2663 = vunpack.c.l.b16 %v1607
        %v2664 = vunpack.c.l.b16 %v1608
        %v2665 = vunpack.c.l.b16 %v1609
        %v2666 = vunpack.c.l.b16 %v1610
        %v2667 = vunpack.c.l.b16 %v1611
        %v2668 = vunpack.c.l.b16 %v1612
        %v2669 = vunpack.c.l.b16 %v1613
        %v2670 = vunpack.c.l.b16 %v1614
        %v2671 = vunpack.c.l.b16 %v1615
        %v2672 = vunpack.c.l.b16 %v1616
        %v2673 = vunpack.c.l.b16 %v1617
        %v2674 = vunpack.c.l.b16 %v1618
        %v2675 = vunpack.c.l.b16 %v1619
        %v2676 = vunpack.c.l.b16 %v1620
        %v2677 = vunpack.c.l.b16 %v1621
        %v2678 = vunpack.c.l.b16 %v1622
        %v2679 = vunpack.c.l.b16 %v1623
        %v2680 = vunpack.c.l.b16 %v1624
        %v2681 = vunpack.c.l.b16 %v1625
        %v2682 = vunpack.c.l.b16 %v1626
        %v2683 = vunpack.c.l.b16 %v1627
        %v2684 = vunpack.c.l.b16 %v1628
        %v2685 = vunpack.c.l.b16 %v1629
        %v2686 = vunpack.c.l.b16 %v1630
        %v2687 = vunpack.c.l.b16 %v1631
        %v2688 = vunpack.c.l.b16 %v1632
        %v2689 = vunpack.c.l.b16 %v1633
        %v2690 = vunpack.c.l.b16 %v1634
        %v2691 = vunpack.c.l.b16 %v1635
        %v2692 = vunpack.c.l.b16 %v1636
        %v2693 = vunpack.c.l.b16 %v1637
        %v2694 = vunpack.c.l.b16 %v1638
        %v2695 = vunpack.c.l.b16 %v1639
        %v2696 = vunpack.c.l.b16 %v1640
        %v2697 = vunpack.c.l.b16 %v1641
        %v2698 = vunpack.c.l.b16 %v1642
        %v2699 = vunpack.c.l.b16 %v1643
        %v2700 = vunpack.c.l.b16 %v1644
        %v2701 = vunpack.c.l.b16 %v1645
        %v2702 = vunpack.c.l.b16 %v1646
        %v2703 = vunpack.c.l.b16 %v1647
        %v2704 = vunpack.c.l.b16 %v1648
        %v2705 = vunpack.c.l.b16 %v1649
        %v2706 = vunpack.c.l.b16 %v1650
        %v2707 = vunpack.c.l.b16 %v1651
        %v2708 = vunpack.c.l.b16 %v1652
        %v2709 = vunpack.c.l.b16 %v1653
        %v2710 = vunpack.c.l.b16 %v1654
        %v2711 = vunpack.c.l.b16 %v1655
        %v2712 = vunpack.c.l.b16 %v1656
        %v2713 = vunpack.c.l.b16 %v1657
        %v2714 = vunpack.c.l.b16 %v1658
        %v2715 = vunpack.c.l.b16 %v1659
        %v2716 = vunpack.c.l.b16 %v1660
        %v2717 = vunpack.c.l.b16 %v1661
        %v2718 = vunpack.c.l.b16 %v1662
        %v2719 = vunpack.c.l.b16 %v1663
        %v2720 = vunpack.c.l.b16 %v1664
        %v2721 = vunpack.c.l.b16 %v1665
        %v2722 = vunpack.c.l.b16 %v1666
        %v2723 = vunpack.c.l.b16 %v1667
        %v2724 = vunpack.c.l.b16 %v1668
        %v2725 = vunpack.c.l.b16 %v1669
        %v2726 = vunpack.c.l.b16 %v1670
        %v2727 = vunpack.c.l.b16 %v1671
        %v2728 = vunpack.c.l.b16 %v1672
        %v2729 = vunpack.c.l.b16 %v1673
        %v2730 = vunpack.c.l.b16 %v1674
        %v2731 = vunpack.c.l.b16 %v1675
        %v2732 = vunpack.c.l.b16 %v1676
        %v2733 = vunpack.c.l.b16 %v1677
        %v2734 = vunpack.c.l.b16 %v1678
        %v2735 = vunpack.c.l.b16 %v1679
        %v2736 = vunpack.c.l.b16 %v1680
        %v2737 = vunpack.c.l.b16 %v1681
        %v2738 = vunpack.c.l.b16 %v1682
        %v2739 = vunpack.c.l.b16 %v1683
        %v2740 = vunpack.c.l.b16 %v1684
        %v2741 = vunpack.c.l.b16 %v1685
        %v2742 = vunpack.c.l.b16 %v1686
        %v2743 = vunpack.c.l.b16 %v1687
        %v2744 = vunpack.c.l.b16 %v1688
        %v2745 = vunpack.c.l.b16 %v1689
        %v2746 = vunpack.c.l.b16 %v1690
        %v2747 = vunpack.c.l.b16 %v1691
        %v2748 = vunpack.c.l.b16 %v1692
        %v2749 = vunpack.c.l.b16 %v1693
        %v2750 = vunpack.c.l.b16 %v1694
        %v2751 = vunpack.c.l.b16 %v1695
        %v2752 = vunpack.c.l.b16 %v1696
        %v2753 = vunpack.c.l.b16 %v1697
        %v2754 = vunpack.c.l.b16 %v1698
        %v2755 = vunpack.c.l.b16 %v1699
        %v2756 = vunpack.c.l.b16 %v1700
        %v2757 = vunpack.c.l.b16 %v1701
        %v2758 = vunpack.c.l.b16 %v1702
        %v2759 = vunpack.c.l.b16 %v1703
        %v2760 = vunpack.c.l.b16 %v1704
        %v2761 = vunpack.c.l.b16 %v1705
        %v2762 = vunpack.c.l.b16 %v1706
        %v2763 = vunpack.c.l.b16 %v1707
        %v2764 = vunpack.c.l.b16 %v1708
        %v2765 = vpack.c.b16 %v2638, %v2637
        %v2766 = vpack.c.b16 %v2640, %v2639
        %v2767 = vpack.c.b16 %v2642, %v2641
        %v2768 = vpack.c.b16 %v2644, %v2643
        %v2769 = vpack.c.b16 %v2646, %v2645
        %v2770 = vpack.c.b16 %v2648, %v2647
        %v2771 = vpack.c.b16 %v2650, %v2649
        %v2772 = vpack.c.b16 %v2652, %v2651
        %v2773 = vpack.c.b16 %v2654, %v2653
        %v2774 = vpack.c.b16 %v2656, %v2655
        %v2775 = vpack.c.b16 %v2658, %v2657
        %v2776 = vpack.c.b16 %v2660, %v2659
        %v2777 = vpack.c.b16 %v2662, %v2661
        %v2778 = vpack.c.b16 %v2664, %v2663
        %v2779 = vpack.c.b16 %v2666, %v2665
        %v2780 = vpack.c.b16 %v2668, %v2667
        %v2781 = vpack.c.b16 %v2670, %v2669
        %v2782 = vpack.c.b16 %v2672, %v2671
        %v2783 = vpack.c.b16 %v2674, %v2673
        %v2784 = vpack.c.b16 %v2676, %v2675
        %v2785 = vpack.c.b16 %v2678, %v2677
        %v2786 = vpack.c.b16 %v2680, %v2679
        %v2787 = vpack.c.b16 %v2682, %v2681
        %v2788 = vpack.c.b16 %v2684, %v2683
        %v2789 = vpack.c.b16 %v2686, %v2685
        %v2790 = vpack.c.b16 %v2688, %v2687
        %v2791 = vpack.c.b16 %v2690, %v2689
        %v2792 = vpack.c.b16 %v2692, %v2691
        %v2793 = vpack.c.b16 %v2694, %v2693
        %v2794 = vpack.c.b16 %v2696, %v2695
        %v2795 = vpack.c.b16 %v2698, %v2697
        %v2796 = vpack.c.b16 %v2700, %v2699
        %v2797 = vpack.c.b16 %v2702, %v2701
        %v2798 = vpack.c.b16 %v2704, %v2703
        %v2799 = vpack.c.b16 %v2706, %v2705
        %v2800 = vpack.c.b16 %v2708, %v2707
        %v2801 = vpack.c.b16 %v2710, %v2709
        %v2802 = vpack.c.b16 %v2712, %v2711
        %v2803 = vpack.c.b16 %v2714, %v2713
        %v2804 = vpack.c.b16 %v2716, %v2715
        %v2805 = vpack.c.b16 %v2718, %v2717
        %v2806 = vpack.c.b16 %v2720, %v2719
        %v2807 = vpack.c.b16 %v2722, %v2721
        %v2808 = vpack.c.b16 %v2724, %v2723
        %v2809 = vpack.c.b16 %v2726, %v2725
        %v2810 = vpack.c.b16 %v2728, %v2727
        %v2811 = vpack.c.b16 %v2730, %v2729
        %v2812 = vpack.c.b16 %v2732, %v2731
        %v2813 = vpack.c.b16 %v2734, %v2733
        %v2814 = vpack.c.b16 %v2736, %v2735
        %v2815 = vpack.c.b16 %v2738, %v2737
        %v2816 = vpack.c.b16 %v2740, %v2739
        %v2817 = vpack.c.b16 %v2742, %v2741
        %v2818 = vpack.c.b16 %v2744, %v2743
        %v2819 = vpack.c.b16 %v2746, %v2745
        %v2820 = vpack.c.b16 %v2748, %v2747
        %v2821 = vpack.c.b16 %v2750, %v2749
        %v2822 = vpack.c.b16 %v2752, %v2751
        %v2823 = vpack.c.b16 %v2754, %v2753
        %v2824 = vpack.c.b16 %v2756, %v2755
        %v2825 = vpack.c.b16 %v2758, %v2757
        %v2826 = vpack.c.b16 %v2760, %v2759
        %v2827 = vpack.c.b16 %v2762, %v2761
        %v2828 = vpack.c.b16 %v2764, %v2763
        %2893 = vmatpush.bf16.msra.mxu0 %v1737
        %2894 = vmatpush.bf16.msra.mxu0 %v1733
        %2895 = vmatpush.bf16.msra.mxu0 %v1729
        %2896 = vmatpush.bf16.msra.mxu0 %v1725
        %2897 = vmatpush.bf16.msra.mxu0 %v1721
        %2898 = vmatpush.bf16.msra.mxu0 %v1717
        %2899 = vmatpush.bf16.msra.mxu0 %v1713
        %2900 = vmatpush.bf16.msra.mxu0 %v1709
        %2901 = vmatmul.bf16.gmra.mxu0 %v2765
        %v2902 = vpop.f32.mrf.mxu0
        %v2903 = vadd.f32 %v1872, %v2902
        %v2904 = vpop.f32.mrf.mxu0
        %v2905 = vadd.f32 %v1877, %v2904
        %2906 = vmatmul.bf16.gmra.mxu0 %v2766
        %v2907 = vpop.f32.mrf.mxu0
        %v2908 = vadd.f32 %v1882, %v2907
        %v2909 = vpop.f32.mrf.mxu0
        %v2910 = vadd.f32 %v1887, %v2909
        %2911 = vmatmul.bf16.gmra.mxu0 %v2767
        %v2912 = vpop.f32.mrf.mxu0
        %v2913 = vadd.f32 %v1892, %v2912
        %v2914 = vpop.f32.mrf.mxu0
        %v2915 = vadd.f32 %v1897, %v2914
        %2916 = vmatmul.bf16.gmra.mxu0 %v2768
        %v2917 = vpop.f32.mrf.mxu0
        %v2918 = vadd.f32 %v1902, %v2917
        %v2919 = vpop.f32.mrf.mxu0
        %v2920 = vadd.f32 %v1907, %v2919
        %2921 = vmatmul.bf16.gmra.mxu0 %v2769
        %v2922 = vpop.f32.mrf.mxu0
        %v2923 = vadd.f32 %v1912, %v2922
        %v2924 = vpop.f32.mrf.mxu0
        %v2925 = vadd.f32 %v1917, %v2924
        %2926 = vmatmul.bf16.gmra.mxu0 %v2770
        %v2927 = vpop.f32.mrf.mxu0
        %v2928 = vadd.f32 %v1922, %v2927
        %v2929 = vpop.f32.mrf.mxu0
        %v2930 = vadd.f32 %v1927, %v2929
        %2931 = vmatmul.bf16.gmra.mxu0 %v2771
        %v2932 = vpop.f32.mrf.mxu0
        %v2933 = vadd.f32 %v1932, %v2932
        %v2934 = vpop.f32.mrf.mxu0
        %v2935 = vadd.f32 %v1937, %v2934
        %2936 = vmatmul.bf16.gmra.mxu0 %v2772
        %v2937 = vpop.f32.mrf.mxu0
        %v2938 = vadd.f32 %v1942, %v2937
        %v2939 = vpop.f32.mrf.mxu0
        %v2940 = vadd.f32 %v1947, %v2939
        %2941 = vmatmul.bf16.gmra.mxu0 %v2773
        %v2942 = vpop.f32.mrf.mxu0
        %v2943 = vadd.f32 %v1952, %v2942
        %v2944 = vpop.f32.mrf.mxu0
        %v2945 = vadd.f32 %v1957, %v2944
        %2946 = vmatmul.bf16.gmra.mxu0 %v2774
        %v2947 = vpop.f32.mrf.mxu0
        %v2948 = vadd.f32 %v1962, %v2947
        %v2949 = vpop.f32.mrf.mxu0
        %v2950 = vadd.f32 %v1967, %v2949
        %2951 = vmatmul.bf16.gmra.mxu0 %v2775
        %v2952 = vpop.f32.mrf.mxu0
        %v2953 = vadd.f32 %v1972, %v2952
        %v2954 = vpop.f32.mrf.mxu0
        %v2955 = vadd.f32 %v1977, %v2954
        %2956 = vmatmul.bf16.gmra.mxu0 %v2776
        %v2957 = vpop.f32.mrf.mxu0
        %v2958 = vadd.f32 %v1982, %v2957
        %v2959 = vpop.f32.mrf.mxu0
        %v2960 = vadd.f32 %v1987, %v2959
        %2961 = vmatmul.bf16.gmra.mxu0 %v2777
        %v2962 = vpop.f32.mrf.mxu0
        %v2963 = vadd.f32 %v1992, %v2962
        %v2964 = vpop.f32.mrf.mxu0
        %v2965 = vadd.f32 %v1997, %v2964
        %2966 = vmatmul.bf16.gmra.mxu0 %v2778
        %v2967 = vpop.f32.mrf.mxu0
        %v2968 = vadd.f32 %v2002, %v2967
        %v2969 = vpop.f32.mrf.mxu0
        %v2970 = vadd.f32 %v2007, %v2969
        %2971 = vmatmul.bf16.gmra.mxu0 %v2779
        %v2972 = vpop.f32.mrf.mxu0
        %v2973 = vadd.f32 %v2012, %v2972
        %v2974 = vpop.f32.mrf.mxu0
        %v2975 = vadd.f32 %v2017, %v2974
        %2976 = vmatmul.bf16.gmra.mxu0 %v2780
        %v2977 = vpop.f32.mrf.mxu0
        %v2978 = vadd.f32 %v2022, %v2977
        %v2979 = vpop.f32.mrf.mxu0
        %v2980 = vadd.f32 %v2027, %v2979
        %2981 = vmatmul.bf16.gmra.mxu0 %v2781
        %v2982 = vpop.f32.mrf.mxu0
        %v2983 = vadd.f32 %v2032, %v2982
        %v2984 = vpop.f32.mrf.mxu0
        %v2985 = vadd.f32 %v2037, %v2984
        %2986 = vmatmul.bf16.gmra.mxu0 %v2782
        %v2987 = vpop.f32.mrf.mxu0
        %v2988 = vadd.f32 %v2042, %v2987
        %v2989 = vpop.f32.mrf.mxu0
        %v2990 = vadd.f32 %v2047, %v2989
        %2991 = vmatmul.bf16.gmra.mxu0 %v2783
        %v2992 = vpop.f32.mrf.mxu0
        %v2993 = vadd.f32 %v2052, %v2992
        %v2994 = vpop.f32.mrf.mxu0
        %v2995 = vadd.f32 %v2057, %v2994
        %2996 = vmatmul.bf16.gmra.mxu0 %v2784
        %v2997 = vpop.f32.mrf.mxu0
        %v2998 = vadd.f32 %v2062, %v2997
        %v2999 = vpop.f32.mrf.mxu0
        %v3000 = vadd.f32 %v2067, %v2999
        %3001 = vmatmul.bf16.gmra.mxu0 %v2785
        %v3002 = vpop.f32.mrf.mxu0
        %v3003 = vadd.f32 %v2072, %v3002
        %v3004 = vpop.f32.mrf.mxu0
        %v3005 = vadd.f32 %v2077, %v3004
        %3006 = vmatmul.bf16.gmra.mxu0 %v2786
        %v3007 = vpop.f32.mrf.mxu0
        %v3008 = vadd.f32 %v2082, %v3007
        %v3009 = vpop.f32.mrf.mxu0
        %v3010 = vadd.f32 %v2087, %v3009
        %3011 = vmatmul.bf16.gmra.mxu0 %v2787
        %v3012 = vpop.f32.mrf.mxu0
        %v3013 = vadd.f32 %v2092, %v3012
        %v3014 = vpop.f32.mrf.mxu0
        %v3015 = vadd.f32 %v2097, %v3014
        %3016 = vmatmul.bf16.gmra.mxu0 %v2788
        %v3017 = vpop.f32.mrf.mxu0
        %v3018 = vadd.f32 %v2102, %v3017
        %v3019 = vpop.f32.mrf.mxu0
        %v3020 = vadd.f32 %v2107, %v3019
        %3021 = vmatmul.bf16.gmra.mxu0 %v2789
        %v3022 = vpop.f32.mrf.mxu0
        %v3023 = vadd.f32 %v2112, %v3022
        %v3024 = vpop.f32.mrf.mxu0
        %v3025 = vadd.f32 %v2117, %v3024
        %3026 = vmatmul.bf16.gmra.mxu0 %v2790
        %v3027 = vpop.f32.mrf.mxu0
        %v3028 = vadd.f32 %v2122, %v3027
        %v3029 = vpop.f32.mrf.mxu0
        %v3030 = vadd.f32 %v2127, %v3029
        %3031 = vmatmul.bf16.gmra.mxu0 %v2791
        %v3032 = vpop.f32.mrf.mxu0
        %v3033 = vadd.f32 %v2132, %v3032
        %v3034 = vpop.f32.mrf.mxu0
        %v3035 = vadd.f32 %v2137, %v3034
        %3036 = vmatmul.bf16.gmra.mxu0 %v2792
        %v3037 = vpop.f32.mrf.mxu0
        %v3038 = vadd.f32 %v2142, %v3037
        %v3039 = vpop.f32.mrf.mxu0
        %v3040 = vadd.f32 %v2147, %v3039
        %3041 = vmatmul.bf16.gmra.mxu0 %v2793
        %v3042 = vpop.f32.mrf.mxu0
        %v3043 = vadd.f32 %v2152, %v3042
        %v3044 = vpop.f32.mrf.mxu0
        %v3045 = vadd.f32 %v2157, %v3044
        %3046 = vmatmul.bf16.gmra.mxu0 %v2794
        %v3047 = vpop.f32.mrf.mxu0
        %v3048 = vadd.f32 %v2162, %v3047
        %v3049 = vpop.f32.mrf.mxu0
        %v3050 = vadd.f32 %v2167, %v3049
        %3051 = vmatmul.bf16.gmra.mxu0 %v2795
        %v3052 = vpop.f32.mrf.mxu0
        %v3053 = vadd.f32 %v2172, %v3052
        %v3054 = vpop.f32.mrf.mxu0
        %v3055 = vadd.f32 %v2177, %v3054
        %3056 = vmatmul.bf16.gmra.mxu0 %v2796
        %v3057 = vpop.f32.mrf.mxu0
        %v3058 = vadd.f32 %v2182, %v3057
        %v3059 = vpop.f32.mrf.mxu0
        %v3060 = vadd.f32 %v2187, %v3059
        %3061 = vmatmul.bf16.gmra.mxu0 %v2797
        %v3062 = vpop.f32.mrf.mxu0
        %v3063 = vadd.f32 %v2192, %v3062
        %v3064 = vpop.f32.mrf.mxu0
        %v3065 = vadd.f32 %v2197, %v3064
        %3066 = vmatmul.bf16.gmra.mxu0 %v2798
        %v3067 = vpop.f32.mrf.mxu0
        %v3068 = vadd.f32 %v2202, %v3067
        %v3069 = vpop.f32.mrf.mxu0
        %v3070 = vadd.f32 %v2207, %v3069
        %3071 = vmatmul.bf16.gmra.mxu0 %v2799
        %v3072 = vpop.f32.mrf.mxu0
        %v3073 = vadd.f32 %v2212, %v3072
        %v3074 = vpop.f32.mrf.mxu0
        %v3075 = vadd.f32 %v2217, %v3074
        %3076 = vmatmul.bf16.gmra.mxu0 %v2800
        %v3077 = vpop.f32.mrf.mxu0
        %v3078 = vadd.f32 %v2222, %v3077
        %v3079 = vpop.f32.mrf.mxu0
        %v3080 = vadd.f32 %v2227, %v3079
        %3081 = vmatmul.bf16.gmra.mxu0 %v2801
        %v3082 = vpop.f32.mrf.mxu0
        %v3083 = vadd.f32 %v2232, %v3082
        %v3084 = vpop.f32.mrf.mxu0
        %v3085 = vadd.f32 %v2237, %v3084
        %3086 = vmatmul.bf16.gmra.mxu0 %v2802
        %v3087 = vpop.f32.mrf.mxu0
        %v3088 = vadd.f32 %v2242, %v3087
        %v3089 = vpop.f32.mrf.mxu0
        %v3090 = vadd.f32 %v2247, %v3089
        %3091 = vmatmul.bf16.gmra.mxu0 %v2803
        %v3092 = vpop.f32.mrf.mxu0
        %v3093 = vadd.f32 %v2252, %v3092
        %v3094 = vpop.f32.mrf.mxu0
        %v3095 = vadd.f32 %v2257, %v3094
        %3096 = vmatmul.bf16.gmra.mxu0 %v2804
        %v3097 = vpop.f32.mrf.mxu0
        %v3098 = vadd.f32 %v2262, %v3097
        %v3099 = vpop.f32.mrf.mxu0
        %v3100 = vadd.f32 %v2267, %v3099
        %3101 = vmatmul.bf16.gmra.mxu0 %v2805
        %v3102 = vpop.f32.mrf.mxu0
        %v3103 = vadd.f32 %v2272, %v3102
        %v3104 = vpop.f32.mrf.mxu0
        %v3105 = vadd.f32 %v2277, %v3104
        %3106 = vmatmul.bf16.gmra.mxu0 %v2806
        %v3107 = vpop.f32.mrf.mxu0
        %v3108 = vadd.f32 %v2282, %v3107
        %v3109 = vpop.f32.mrf.mxu0
        %v3110 = vadd.f32 %v2287, %v3109
        %3111 = vmatmul.bf16.gmra.mxu0 %v2807
        %v3112 = vpop.f32.mrf.mxu0
        %v3113 = vadd.f32 %v2292, %v3112
        %v3114 = vpop.f32.mrf.mxu0
        %v3115 = vadd.f32 %v2297, %v3114
        %3116 = vmatmul.bf16.gmra.mxu0 %v2808
        %v3117 = vpop.f32.mrf.mxu0
        %v3118 = vadd.f32 %v2302, %v3117
        %v3119 = vpop.f32.mrf.mxu0
        %v3120 = vadd.f32 %v2307, %v3119
        %3121 = vmatmul.bf16.gmra.mxu0 %v2809
        %v3122 = vpop.f32.mrf.mxu0
        %v3123 = vadd.f32 %v2312, %v3122
        %v3124 = vpop.f32.mrf.mxu0
        %v3125 = vadd.f32 %v2317, %v3124
        %3126 = vmatmul.bf16.gmra.mxu0 %v2810
        %v3127 = vpop.f32.mrf.mxu0
        %v3128 = vadd.f32 %v2322, %v3127
        %v3129 = vpop.f32.mrf.mxu0
        %v3130 = vadd.f32 %v2327, %v3129
        %3131 = vmatmul.bf16.gmra.mxu0 %v2811
        %v3132 = vpop.f32.mrf.mxu0
        %v3133 = vadd.f32 %v2332, %v3132
        %v3134 = vpop.f32.mrf.mxu0
        %v3135 = vadd.f32 %v2337, %v3134
        %3136 = vmatmul.bf16.gmra.mxu0 %v2812
        %v3137 = vpop.f32.mrf.mxu0
        %v3138 = vadd.f32 %v2342, %v3137
        %v3139 = vpop.f32.mrf.mxu0
        %v3140 = vadd.f32 %v2347, %v3139
        %3141 = vmatmul.bf16.gmra.mxu0 %v2813
        %v3142 = vpop.f32.mrf.mxu0
        %v3143 = vadd.f32 %v2352, %v3142
        %v3144 = vpop.f32.mrf.mxu0
        %v3145 = vadd.f32 %v2357, %v3144
        %3146 = vmatmul.bf16.gmra.mxu0 %v2814
        %v3147 = vpop.f32.mrf.mxu0
        %v3148 = vadd.f32 %v2362, %v3147
        %v3149 = vpop.f32.mrf.mxu0
        %v3150 = vadd.f32 %v2367, %v3149
        %3151 = vmatmul.bf16.gmra.mxu0 %v2815
        %v3152 = vpop.f32.mrf.mxu0
        %v3153 = vadd.f32 %v2372, %v3152
        %v3154 = vpop.f32.mrf.mxu0
        %v3155 = vadd.f32 %v2377, %v3154
        %3156 = vmatmul.bf16.gmra.mxu0 %v2816
        %v3157 = vpop.f32.mrf.mxu0
        %v3158 = vadd.f32 %v2382, %v3157
        %v3159 = vpop.f32.mrf.mxu0
        %v3160 = vadd.f32 %v2387, %v3159
        %3161 = vmatmul.bf16.gmra.mxu0 %v2817
        %v3162 = vpop.f32.mrf.mxu0
        %v3163 = vadd.f32 %v2392, %v3162
        %v3164 = vpop.f32.mrf.mxu0
        %v3165 = vadd.f32 %v2397, %v3164
        %3166 = vmatmul.bf16.gmra.mxu0 %v2818
        %v3167 = vpop.f32.mrf.mxu0
        %v3168 = vadd.f32 %v2402, %v3167
        %v3169 = vpop.f32.mrf.mxu0
        %v3170 = vadd.f32 %v2407, %v3169
        %3171 = vmatmul.bf16.gmra.mxu0 %v2819
        %v3172 = vpop.f32.mrf.mxu0
        %v3173 = vadd.f32 %v2412, %v3172
        %v3174 = vpop.f32.mrf.mxu0
        %v3175 = vadd.f32 %v2417, %v3174
        %3176 = vmatmul.bf16.gmra.mxu0 %v2820
        %v3177 = vpop.f32.mrf.mxu0
        %v3178 = vadd.f32 %v2422, %v3177
        %v3179 = vpop.f32.mrf.mxu0
        %v3180 = vadd.f32 %v2427, %v3179
        %3181 = vmatmul.bf16.gmra.mxu0 %v2821
        %v3182 = vpop.f32.mrf.mxu0
        %v3183 = vadd.f32 %v2432, %v3182
        %v3184 = vpop.f32.mrf.mxu0
        %v3185 = vadd.f32 %v2437, %v3184
        %3186 = vmatmul.bf16.gmra.mxu0 %v2822
        %v3187 = vpop.f32.mrf.mxu0
        %v3188 = vadd.f32 %v2442, %v3187
        %v3189 = vpop.f32.mrf.mxu0
        %v3190 = vadd.f32 %v2447, %v3189
        %3191 = vmatmul.bf16.gmra.mxu0 %v2823
        %v3192 = vpop.f32.mrf.mxu0
        %v3193 = vadd.f32 %v2452, %v3192
        %v3194 = vpop.f32.mrf.mxu0
        %v3195 = vadd.f32 %v2457, %v3194
        %3196 = vmatmul.bf16.gmra.mxu0 %v2824
        %v3197 = vpop.f32.mrf.mxu0
        %v3198 = vadd.f32 %v2462, %v3197
        %v3199 = vpop.f32.mrf.mxu0
        %v3200 = vadd.f32 %v2467, %v3199
        %3201 = vmatmul.bf16.gmra.mxu0 %v2825
        %v3202 = vpop.f32.mrf.mxu0
        %v3203 = vadd.f32 %v2472, %v3202
        %v3204 = vpop.f32.mrf.mxu0
        %v3205 = vadd.f32 %v2477, %v3204
        %3206 = vmatmul.bf16.gmra.mxu0 %v2826
        %v3207 = vpop.f32.mrf.mxu0
        %v3208 = vadd.f32 %v2482, %v3207
        %v3209 = vpop.f32.mrf.mxu0
        %v3210 = vadd.f32 %v2487, %v3209
        %3211 = vmatmul.bf16.gmra.mxu0 %v2827
        %v3212 = vpop.f32.mrf.mxu0
        %v3213 = vadd.f32 %v2492, %v3212
        %v3214 = vpop.f32.mrf.mxu0
        %v3215 = vadd.f32 %v2497, %v3214
        %3216 = vmatmul.bf16.gmra.mxu0 %v2828
        %v3217 = vpop.f32.mrf.mxu0
        %v3218 = vadd.f32 %v2502, %v3217
        %v3219 = vpop.f32.mrf.mxu0
        %v3220 = vadd.f32 %v2507, %v3219
        %3221 = vdwg.mxu0
        %3222 = vmatpush.bf16.msra.mxu0 %v1738
        %3223 = vmatpush.bf16.msra.mxu0 %v1734
        %3224 = vmatpush.bf16.msra.mxu0 %v1730
        %3225 = vmatpush.bf16.msra.mxu0 %v1726
        %3226 = vmatpush.bf16.msra.mxu0 %v1722
        %3227 = vmatpush.bf16.msra.mxu0 %v1718
        %3228 = vmatpush.bf16.msra.mxu0 %v1714
        %3229 = vmatpush.bf16.msra.mxu0 %v1710
        %3230 = vmatmul.bf16.gmra.mxu0 %v2765
        %v3231 = vpop.f32.mrf.mxu0
        %v3232 = vadd.f32 %v1872, %v3231
        %v3233 = vpop.f32.mrf.mxu0
        %v3234 = vadd.f32 %v1877, %v3233
        %3235 = vmatmul.bf16.gmra.mxu0 %v2766
        %v3236 = vpop.f32.mrf.mxu0
        %v3237 = vadd.f32 %v1882, %v3236
        %v3238 = vpop.f32.mrf.mxu0
        %v3239 = vadd.f32 %v1887, %v3238
        %3240 = vmatmul.bf16.gmra.mxu0 %v2767
        %v3241 = vpop.f32.mrf.mxu0
        %v3242 = vadd.f32 %v1892, %v3241
        %v3243 = vpop.f32.mrf.mxu0
        %v3244 = vadd.f32 %v1897, %v3243
        %3245 = vmatmul.bf16.gmra.mxu0 %v2768
        %v3246 = vpop.f32.mrf.mxu0
        %v3247 = vadd.f32 %v1902, %v3246
        %v3248 = vpop.f32.mrf.mxu0
        %v3249 = vadd.f32 %v1907, %v3248
        %3250 = vmatmul.bf16.gmra.mxu0 %v2769
        %v3251 = vpop.f32.mrf.mxu0
        %v3252 = vadd.f32 %v1912, %v3251
        %v3253 = vpop.f32.mrf.mxu0
        %v3254 = vadd.f32 %v1917, %v3253
        %3255 = vmatmul.bf16.gmra.mxu0 %v2770
        %v3256 = vpop.f32.mrf.mxu0
        %v3257 = vadd.f32 %v1922, %v3256
        %v3258 = vpop.f32.mrf.mxu0
        %v3259 = vadd.f32 %v1927, %v3258
        %3260 = vmatmul.bf16.gmra.mxu0 %v2771
        %v3261 = vpop.f32.mrf.mxu0
        %v3262 = vadd.f32 %v1932, %v3261
        %v3263 = vpop.f32.mrf.mxu0
        %v3264 = vadd.f32 %v1937, %v3263
        %3265 = vmatmul.bf16.gmra.mxu0 %v2772
        %v3266 = vpop.f32.mrf.mxu0
        %v3267 = vadd.f32 %v1942, %v3266
        %v3268 = vpop.f32.mrf.mxu0
        %v3269 = vadd.f32 %v1947, %v3268
        %3270 = vmatmul.bf16.gmra.mxu0 %v2773
        %v3271 = vpop.f32.mrf.mxu0
        %v3272 = vadd.f32 %v1952, %v3271
        %v3273 = vpop.f32.mrf.mxu0
        %v3274 = vadd.f32 %v1957, %v3273
        %3275 = vmatmul.bf16.gmra.mxu0 %v2774
        %v3276 = vpop.f32.mrf.mxu0
        %v3277 = vadd.f32 %v1962, %v3276
        %v3278 = vpop.f32.mrf.mxu0
        %v3279 = vadd.f32 %v1967, %v3278
        %3280 = vmatmul.bf16.gmra.mxu0 %v2775
        %v3281 = vpop.f32.mrf.mxu0
        %v3282 = vadd.f32 %v1972, %v3281
        %v3283 = vpop.f32.mrf.mxu0
        %v3284 = vadd.f32 %v1977, %v3283
        %3285 = vmatmul.bf16.gmra.mxu0 %v2776
        %v3286 = vpop.f32.mrf.mxu0
        %v3287 = vadd.f32 %v1982, %v3286
        %v3288 = vpop.f32.mrf.mxu0
        %v3289 = vadd.f32 %v1987, %v3288
        %3290 = vmatmul.bf16.gmra.mxu0 %v2777
        %v3291 = vpop.f32.mrf.mxu0
        %v3292 = vadd.f32 %v1992, %v3291
        %v3293 = vpop.f32.mrf.mxu0
        %v3294 = vadd.f32 %v1997, %v3293
        %3295 = vmatmul.bf16.gmra.mxu0 %v2778
        %v3296 = vpop.f32.mrf.mxu0
        %v3297 = vadd.f32 %v2002, %v3296
        %v3298 = vpop.f32.mrf.mxu0
        %v3299 = vadd.f32 %v2007, %v3298
        %3300 = vmatmul.bf16.gmra.mxu0 %v2779
        %v3301 = vpop.f32.mrf.mxu0
        %v3302 = vadd.f32 %v2012, %v3301
        %v3303 = vpop.f32.mrf.mxu0
        %v3304 = vadd.f32 %v2017, %v3303
        %3305 = vmatmul.bf16.gmra.mxu0 %v2780
        %v3306 = vpop.f32.mrf.mxu0
        %v3307 = vadd.f32 %v2022, %v3306
        %v3308 = vpop.f32.mrf.mxu0
        %v3309 = vadd.f32 %v2027, %v3308
        %3310 = vmatmul.bf16.gmra.mxu0 %v2781
        %v3311 = vpop.f32.mrf.mxu0
        %v3312 = vadd.f32 %v2032, %v3311
        %v3313 = vpop.f32.mrf.mxu0
        %v3314 = vadd.f32 %v2037, %v3313
        %3315 = vmatmul.bf16.gmra.mxu0 %v2782
        %v3316 = vpop.f32.mrf.mxu0
        %v3317 = vadd.f32 %v2042, %v3316
        %v3318 = vpop.f32.mrf.mxu0
        %v3319 = vadd.f32 %v2047, %v3318
        %3320 = vmatmul.bf16.gmra.mxu0 %v2783
        %v3321 = vpop.f32.mrf.mxu0
        %v3322 = vadd.f32 %v2052, %v3321
        %v3323 = vpop.f32.mrf.mxu0
        %v3324 = vadd.f32 %v2057, %v3323
        %3325 = vmatmul.bf16.gmra.mxu0 %v2784
        %v3326 = vpop.f32.mrf.mxu0
        %v3327 = vadd.f32 %v2062, %v3326
        %v3328 = vpop.f32.mrf.mxu0
        %v3329 = vadd.f32 %v2067, %v3328
        %3330 = vmatmul.bf16.gmra.mxu0 %v2785
        %v3331 = vpop.f32.mrf.mxu0
        %v3332 = vadd.f32 %v2072, %v3331
        %v3333 = vpop.f32.mrf.mxu0
        %v3334 = vadd.f32 %v2077, %v3333
        %3335 = vmatmul.bf16.gmra.mxu0 %v2786
        %v3336 = vpop.f32.mrf.mxu0
        %v3337 = vadd.f32 %v2082, %v3336
        %v3338 = vpop.f32.mrf.mxu0
        %v3339 = vadd.f32 %v2087, %v3338
        %3340 = vmatmul.bf16.gmra.mxu0 %v2787
        %v3341 = vpop.f32.mrf.mxu0
        %v3342 = vadd.f32 %v2092, %v3341
        %v3343 = vpop.f32.mrf.mxu0
        %v3344 = vadd.f32 %v2097, %v3343
        %3345 = vmatmul.bf16.gmra.mxu0 %v2788
        %v3346 = vpop.f32.mrf.mxu0
        %v3347 = vadd.f32 %v2102, %v3346
        %v3348 = vpop.f32.mrf.mxu0
        %v3349 = vadd.f32 %v2107, %v3348
        %3350 = vmatmul.bf16.gmra.mxu0 %v2789
        %v3351 = vpop.f32.mrf.mxu0
        %v3352 = vadd.f32 %v2112, %v3351
        %v3353 = vpop.f32.mrf.mxu0
        %v3354 = vadd.f32 %v2117, %v3353
        %3355 = vmatmul.bf16.gmra.mxu0 %v2790
        %v3356 = vpop.f32.mrf.mxu0
        %v3357 = vadd.f32 %v2122, %v3356
        %v3358 = vpop.f32.mrf.mxu0
        %v3359 = vadd.f32 %v2127, %v3358
        %3360 = vmatmul.bf16.gmra.mxu0 %v2791
        %v3361 = vpop.f32.mrf.mxu0
        %v3362 = vadd.f32 %v2132, %v3361
        %v3363 = vpop.f32.mrf.mxu0
        %v3364 = vadd.f32 %v2137, %v3363
        %3365 = vmatmul.bf16.gmra.mxu0 %v2792
        %v3366 = vpop.f32.mrf.mxu0
        %v3367 = vadd.f32 %v2142, %v3366
        %v3368 = vpop.f32.mrf.mxu0
        %v3369 = vadd.f32 %v2147, %v3368
        %3370 = vmatmul.bf16.gmra.mxu0 %v2793
        %v3371 = vpop.f32.mrf.mxu0
        %v3372 = vadd.f32 %v2152, %v3371
        %v3373 = vpop.f32.mrf.mxu0
        %v3374 = vadd.f32 %v2157, %v3373
        %3375 = vmatmul.bf16.gmra.mxu0 %v2794
        %v3376 = vpop.f32.mrf.mxu0
        %v3377 = vadd.f32 %v2162, %v3376
        %v3378 = vpop.f32.mrf.mxu0
        %v3379 = vadd.f32 %v2167, %v3378
        %3380 = vmatmul.bf16.gmra.mxu0 %v2795
        %v3381 = vpop.f32.mrf.mxu0
        %v3382 = vadd.f32 %v2172, %v3381
        %v3383 = vpop.f32.mrf.mxu0
        %v3384 = vadd.f32 %v2177, %v3383
        %3385 = vmatmul.bf16.gmra.mxu0 %v2796
        %v3386 = vpop.f32.mrf.mxu0
        %v3387 = vadd.f32 %v2182, %v3386
        %v3388 = vpop.f32.mrf.mxu0
        %v3389 = vadd.f32 %v2187, %v3388
        %3390 = vmatmul.bf16.gmra.mxu0 %v2797
        %v3391 = vpop.f32.mrf.mxu0
        %v3392 = vadd.f32 %v2192, %v3391
        %v3393 = vpop.f32.mrf.mxu0
        %v3394 = vadd.f32 %v2197, %v3393
        %3395 = vmatmul.bf16.gmra.mxu0 %v2798
        %v3396 = vpop.f32.mrf.mxu0
        %v3397 = vadd.f32 %v2202, %v3396
        %v3398 = vpop.f32.mrf.mxu0
        %v3399 = vadd.f32 %v2207, %v3398
        %3400 = vmatmul.bf16.gmra.mxu0 %v2799
        %v3401 = vpop.f32.mrf.mxu0
        %v3402 = vadd.f32 %v2212, %v3401
        %v3403 = vpop.f32.mrf.mxu0
        %v3404 = vadd.f32 %v2217, %v3403
        %3405 = vmatmul.bf16.gmra.mxu0 %v2800
        %v3406 = vpop.f32.mrf.mxu0
        %v3407 = vadd.f32 %v2222, %v3406
        %v3408 = vpop.f32.mrf.mxu0
        %v3409 = vadd.f32 %v2227, %v3408
        %3410 = vmatmul.bf16.gmra.mxu0 %v2801
        %v3411 = vpop.f32.mrf.mxu0
        %v3412 = vadd.f32 %v2232, %v3411
        %v3413 = vpop.f32.mrf.mxu0
        %v3414 = vadd.f32 %v2237, %v3413
        %3415 = vmatmul.bf16.gmra.mxu0 %v2802
        %v3416 = vpop.f32.mrf.mxu0
        %v3417 = vadd.f32 %v2242, %v3416
        %v3418 = vpop.f32.mrf.mxu0
        %v3419 = vadd.f32 %v2247, %v3418
        %3420 = vmatmul.bf16.gmra.mxu0 %v2803
        %v3421 = vpop.f32.mrf.mxu0
        %v3422 = vadd.f32 %v2252, %v3421
        %v3423 = vpop.f32.mrf.mxu0
        %v3424 = vadd.f32 %v2257, %v3423
        %3425 = vmatmul.bf16.gmra.mxu0 %v2804
        %v3426 = vpop.f32.mrf.mxu0
        %v3427 = vadd.f32 %v2262, %v3426
        %v3428 = vpop.f32.mrf.mxu0
        %v3429 = vadd.f32 %v2267, %v3428
        %3430 = vmatmul.bf16.gmra.mxu0 %v2805
        %v3431 = vpop.f32.mrf.mxu0
        %v3432 = vadd.f32 %v2272, %v3431
        %v3433 = vpop.f32.mrf.mxu0
        %v3434 = vadd.f32 %v2277, %v3433
        %3435 = vmatmul.bf16.gmra.mxu0 %v2806
        %v3436 = vpop.f32.mrf.mxu0
        %v3437 = vadd.f32 %v2282, %v3436
        %v3438 = vpop.f32.mrf.mxu0
        %v3439 = vadd.f32 %v2287, %v3438
        %3440 = vmatmul.bf16.gmra.mxu0 %v2807
        %v3441 = vpop.f32.mrf.mxu0
        %v3442 = vadd.f32 %v2292, %v3441
        %v3443 = vpop.f32.mrf.mxu0
        %v3444 = vadd.f32 %v2297, %v3443
        %3445 = vmatmul.bf16.gmra.mxu0 %v2808
        %v3446 = vpop.f32.mrf.mxu0
        %v3447 = vadd.f32 %v2302, %v3446
        %v3448 = vpop.f32.mrf.mxu0
        %v3449 = vadd.f32 %v2307, %v3448
        %3450 = vmatmul.bf16.gmra.mxu0 %v2809
        %v3451 = vpop.f32.mrf.mxu0
        %v3452 = vadd.f32 %v2312, %v3451
        %v3453 = vpop.f32.mrf.mxu0
        %v3454 = vadd.f32 %v2317, %v3453
        %3455 = vmatmul.bf16.gmra.mxu0 %v2810
        %v3456 = vpop.f32.mrf.mxu0
        %v3457 = vadd.f32 %v2322, %v3456
        %v3458 = vpop.f32.mrf.mxu0
        %v3459 = vadd.f32 %v2327, %v3458
        %3460 = vmatmul.bf16.gmra.mxu0 %v2811
        %v3461 = vpop.f32.mrf.mxu0
        %v3462 = vadd.f32 %v2332, %v3461
        %v3463 = vpop.f32.mrf.mxu0
        %v3464 = vadd.f32 %v2337, %v3463
        %3465 = vmatmul.bf16.gmra.mxu0 %v2812
        %v3466 = vpop.f32.mrf.mxu0
        %v3467 = vadd.f32 %v2342, %v3466
        %v3468 = vpop.f32.mrf.mxu0
        %v3469 = vadd.f32 %v2347, %v3468
        %3470 = vmatmul.bf16.gmra.mxu0 %v2813
        %v3471 = vpop.f32.mrf.mxu0
        %v3472 = vadd.f32 %v2352, %v3471
        %v3473 = vpop.f32.mrf.mxu0
        %v3474 = vadd.f32 %v2357, %v3473
        %3475 = vmatmul.bf16.gmra.mxu0 %v2814
        %v3476 = vpop.f32.mrf.mxu0
        %v3477 = vadd.f32 %v2362, %v3476
        %v3478 = vpop.f32.mrf.mxu0
        %v3479 = vadd.f32 %v2367, %v3478
        %3480 = vmatmul.bf16.gmra.mxu0 %v2815
        %v3481 = vpop.f32.mrf.mxu0
        %v3482 = vadd.f32 %v2372, %v3481
        %v3483 = vpop.f32.mrf.mxu0
        %v3484 = vadd.f32 %v2377, %v3483
        %3485 = vmatmul.bf16.gmra.mxu0 %v2816
        %v3486 = vpop.f32.mrf.mxu0
        %v3487 = vadd.f32 %v2382, %v3486
        %v3488 = vpop.f32.mrf.mxu0
        %v3489 = vadd.f32 %v2387, %v3488
        %3490 = vmatmul.bf16.gmra.mxu0 %v2817
        %v3491 = vpop.f32.mrf.mxu0
        %v3492 = vadd.f32 %v2392, %v3491
        %v3493 = vpop.f32.mrf.mxu0
        %v3494 = vadd.f32 %v2397, %v3493
        %3495 = vmatmul.bf16.gmra.mxu0 %v2818
        %v3496 = vpop.f32.mrf.mxu0
        %v3497 = vadd.f32 %v2402, %v3496
        %v3498 = vpop.f32.mrf.mxu0
        %v3499 = vadd.f32 %v2407, %v3498
        %3500 = vmatmul.bf16.gmra.mxu0 %v2819
        %v3501 = vpop.f32.mrf.mxu0
        %v3502 = vadd.f32 %v2412, %v3501
        %v3503 = vpop.f32.mrf.mxu0
        %v3504 = vadd.f32 %v2417, %v3503
        %3505 = vmatmul.bf16.gmra.mxu0 %v2820
        %v3506 = vpop.f32.mrf.mxu0
        %v3507 = vadd.f32 %v2422, %v3506
        %v3508 = vpop.f32.mrf.mxu0
        %v3509 = vadd.f32 %v2427, %v3508
        %3510 = vmatmul.bf16.gmra.mxu0 %v2821
        %v3511 = vpop.f32.mrf.mxu0
        %v3512 = vadd.f32 %v2432, %v3511
        %v3513 = vpop.f32.mrf.mxu0
        %v3514 = vadd.f32 %v2437, %v3513
        %3515 = vmatmul.bf16.gmra.mxu0 %v2822
        %v3516 = vpop.f32.mrf.mxu0
        %v3517 = vadd.f32 %v2442, %v3516
        %v3518 = vpop.f32.mrf.mxu0
        %v3519 = vadd.f32 %v2447, %v3518
        %3520 = vmatmul.bf16.gmra.mxu0 %v2823
        %v3521 = vpop.f32.mrf.mxu0
        %v3522 = vadd.f32 %v2452, %v3521
        %v3523 = vpop.f32.mrf.mxu0
        %v3524 = vadd.f32 %v2457, %v3523
        %3525 = vmatmul.bf16.gmra.mxu0 %v2824
        %v3526 = vpop.f32.mrf.mxu0
        %v3527 = vadd.f32 %v2462, %v3526
        %v3528 = vpop.f32.mrf.mxu0
        %v3529 = vadd.f32 %v2467, %v3528
        %3530 = vmatmul.bf16.gmra.mxu0 %v2825
        %v3531 = vpop.f32.mrf.mxu0
        %v3532 = vadd.f32 %v2472, %v3531
        %v3533 = vpop.f32.mrf.mxu0
        %v3534 = vadd.f32 %v2477, %v3533
        %3535 = vmatmul.bf16.gmra.mxu0 %v2826
        %v3536 = vpop.f32.mrf.mxu0
        %v3537 = vadd.f32 %v2482, %v3536
        %v3538 = vpop.f32.mrf.mxu0
        %v3539 = vadd.f32 %v2487, %v3538
        %3540 = vmatmul.bf16.gmra.mxu0 %v2827
        %v3541 = vpop.f32.mrf.mxu0
        %v3542 = vadd.f32 %v2492, %v3541
        %v3543 = vpop.f32.mrf.mxu0
        %v3544 = vadd.f32 %v2497, %v3543
        %3545 = vmatmul.bf16.gmra.mxu0 %v2828
        %v3546 = vpop.f32.mrf.mxu0
        %v3547 = vadd.f32 %v2502, %v3546
        %v3548 = vpop.f32.mrf.mxu0
        %v3549 = vadd.f32 %v2507, %v3548
        %3550 = vdwg.mxu0
        %3551 = vmatpush.bf16.msra.mxu0 %v1739
        %3552 = vmatpush.bf16.msra.mxu0 %v1735
        %3553 = vmatpush.bf16.msra.mxu0 %v1731
        %3554 = vmatpush.bf16.msra.mxu0 %v1727
        %3555 = vmatpush.bf16.msra.mxu0 %v1723
        %3556 = vmatpush.bf16.msra.mxu0 %v1719
        %3557 = vmatpush.bf16.msra.mxu0 %v1715
        %3558 = vmatpush.bf16.msra.mxu0 %v1711
        %3559 = vmatmul.bf16.gmra.mxu0 %v2765
        %v3560 = vpop.f32.mrf.mxu0
        %v3561 = vadd.f32 %v1872, %v3560
        %v3562 = vpop.f32.mrf.mxu0
        %v3563 = vadd.f32 %v1877, %v3562
        %3564 = vmatmul.bf16.gmra.mxu0 %v2766
        %v3565 = vpop.f32.mrf.mxu0
        %v3566 = vadd.f32 %v1882, %v3565
        %v3567 = vpop.f32.mrf.mxu0
        %v3568 = vadd.f32 %v1887, %v3567
        %3569 = vmatmul.bf16.gmra.mxu0 %v2767
        %v3570 = vpop.f32.mrf.mxu0
        %v3571 = vadd.f32 %v1892, %v3570
        %v3572 = vpop.f32.mrf.mxu0
        %v3573 = vadd.f32 %v1897, %v3572
        %3574 = vmatmul.bf16.gmra.mxu0 %v2768
        %v3575 = vpop.f32.mrf.mxu0
        %v3576 = vadd.f32 %v1902, %v3575
        %v3577 = vpop.f32.mrf.mxu0
        %v3578 = vadd.f32 %v1907, %v3577
        %3579 = vmatmul.bf16.gmra.mxu0 %v2769
        %v3580 = vpop.f32.mrf.mxu0
        %v3581 = vadd.f32 %v1912, %v3580
        %v3582 = vpop.f32.mrf.mxu0
        %v3583 = vadd.f32 %v1917, %v3582
        %3584 = vmatmul.bf16.gmra.mxu0 %v2770
        %v3585 = vpop.f32.mrf.mxu0
        %v3586 = vadd.f32 %v1922, %v3585
        %v3587 = vpop.f32.mrf.mxu0
        %v3588 = vadd.f32 %v1927, %v3587
        %3589 = vmatmul.bf16.gmra.mxu0 %v2771
        %v3590 = vpop.f32.mrf.mxu0
        %v3591 = vadd.f32 %v1932, %v3590
        %v3592 = vpop.f32.mrf.mxu0
        %v3593 = vadd.f32 %v1937, %v3592
        %3594 = vmatmul.bf16.gmra.mxu0 %v2772
        %v3595 = vpop.f32.mrf.mxu0
        %v3596 = vadd.f32 %v1942, %v3595
        %v3597 = vpop.f32.mrf.mxu0
        %v3598 = vadd.f32 %v1947, %v3597
        %3599 = vmatmul.bf16.gmra.mxu0 %v2773
        %v3600 = vpop.f32.mrf.mxu0
        %v3601 = vadd.f32 %v1952, %v3600
        %v3602 = vpop.f32.mrf.mxu0
        %v3603 = vadd.f32 %v1957, %v3602
        %3604 = vmatmul.bf16.gmra.mxu0 %v2774
        %v3605 = vpop.f32.mrf.mxu0
        %v3606 = vadd.f32 %v1962, %v3605
        %v3607 = vpop.f32.mrf.mxu0
        %v3608 = vadd.f32 %v1967, %v3607
        %3609 = vmatmul.bf16.gmra.mxu0 %v2775
        %v3610 = vpop.f32.mrf.mxu0
        %v3611 = vadd.f32 %v1972, %v3610
        %v3612 = vpop.f32.mrf.mxu0
        %v3613 = vadd.f32 %v1977, %v3612
        %3614 = vmatmul.bf16.gmra.mxu0 %v2776
        %v3615 = vpop.f32.mrf.mxu0
        %v3616 = vadd.f32 %v1982, %v3615
        %v3617 = vpop.f32.mrf.mxu0
        %v3618 = vadd.f32 %v1987, %v3617
        %3619 = vmatmul.bf16.gmra.mxu0 %v2777
        %v3620 = vpop.f32.mrf.mxu0
        %v3621 = vadd.f32 %v1992, %v3620
        %v3622 = vpop.f32.mrf.mxu0
        %v3623 = vadd.f32 %v1997, %v3622
        %3624 = vmatmul.bf16.gmra.mxu0 %v2778
        %v3625 = vpop.f32.mrf.mxu0
        %v3626 = vadd.f32 %v2002, %v3625
        %v3627 = vpop.f32.mrf.mxu0
        %v3628 = vadd.f32 %v2007, %v3627
        %3629 = vmatmul.bf16.gmra.mxu0 %v2779
        %v3630 = vpop.f32.mrf.mxu0
        %v3631 = vadd.f32 %v2012, %v3630
        %v3632 = vpop.f32.mrf.mxu0
        %v3633 = vadd.f32 %v2017, %v3632
        %3634 = vmatmul.bf16.gmra.mxu0 %v2780
        %v3635 = vpop.f32.mrf.mxu0
        %v3636 = vadd.f32 %v2022, %v3635
        %v3637 = vpop.f32.mrf.mxu0
        %v3638 = vadd.f32 %v2027, %v3637
        %3639 = vmatmul.bf16.gmra.mxu0 %v2781
        %v3640 = vpop.f32.mrf.mxu0
        %v3641 = vadd.f32 %v2032, %v3640
        %v3642 = vpop.f32.mrf.mxu0
        %v3643 = vadd.f32 %v2037, %v3642
        %3644 = vmatmul.bf16.gmra.mxu0 %v2782
        %v3645 = vpop.f32.mrf.mxu0
        %v3646 = vadd.f32 %v2042, %v3645
        %v3647 = vpop.f32.mrf.mxu0
        %v3648 = vadd.f32 %v2047, %v3647
        %3649 = vmatmul.bf16.gmra.mxu0 %v2783
        %v3650 = vpop.f32.mrf.mxu0
        %v3651 = vadd.f32 %v2052, %v3650
        %v3652 = vpop.f32.mrf.mxu0
        %v3653 = vadd.f32 %v2057, %v3652
        %3654 = vmatmul.bf16.gmra.mxu0 %v2784
        %v3655 = vpop.f32.mrf.mxu0
        %v3656 = vadd.f32 %v2062, %v3655
        %v3657 = vpop.f32.mrf.mxu0
        %v3658 = vadd.f32 %v2067, %v3657
        %3659 = vmatmul.bf16.gmra.mxu0 %v2785
        %v3660 = vpop.f32.mrf.mxu0
        %v3661 = vadd.f32 %v2072, %v3660
        %v3662 = vpop.f32.mrf.mxu0
        %v3663 = vadd.f32 %v2077, %v3662
        %3664 = vmatmul.bf16.gmra.mxu0 %v2786
        %v3665 = vpop.f32.mrf.mxu0
        %v3666 = vadd.f32 %v2082, %v3665
        %v3667 = vpop.f32.mrf.mxu0
        %v3668 = vadd.f32 %v2087, %v3667
        %3669 = vmatmul.bf16.gmra.mxu0 %v2787
        %v3670 = vpop.f32.mrf.mxu0
        %v3671 = vadd.f32 %v2092, %v3670
        %v3672 = vpop.f32.mrf.mxu0
        %v3673 = vadd.f32 %v2097, %v3672
        %3674 = vmatmul.bf16.gmra.mxu0 %v2788
        %v3675 = vpop.f32.mrf.mxu0
        %v3676 = vadd.f32 %v2102, %v3675
        %v3677 = vpop.f32.mrf.mxu0
        %v3678 = vadd.f32 %v2107, %v3677
        %3679 = vmatmul.bf16.gmra.mxu0 %v2789
        %v3680 = vpop.f32.mrf.mxu0
        %v3681 = vadd.f32 %v2112, %v3680
        %v3682 = vpop.f32.mrf.mxu0
        %v3683 = vadd.f32 %v2117, %v3682
        %3684 = vmatmul.bf16.gmra.mxu0 %v2790
        %v3685 = vpop.f32.mrf.mxu0
        %v3686 = vadd.f32 %v2122, %v3685
        %v3687 = vpop.f32.mrf.mxu0
        %v3688 = vadd.f32 %v2127, %v3687
        %3689 = vmatmul.bf16.gmra.mxu0 %v2791
        %v3690 = vpop.f32.mrf.mxu0
        %v3691 = vadd.f32 %v2132, %v3690
        %v3692 = vpop.f32.mrf.mxu0
        %v3693 = vadd.f32 %v2137, %v3692
        %3694 = vmatmul.bf16.gmra.mxu0 %v2792
        %v3695 = vpop.f32.mrf.mxu0
        %v3696 = vadd.f32 %v2142, %v3695
        %v3697 = vpop.f32.mrf.mxu0
        %v3698 = vadd.f32 %v2147, %v3697
        %3699 = vmatmul.bf16.gmra.mxu0 %v2793
        %v3700 = vpop.f32.mrf.mxu0
        %v3701 = vadd.f32 %v2152, %v3700
        %v3702 = vpop.f32.mrf.mxu0
        %v3703 = vadd.f32 %v2157, %v3702
        %3704 = vmatmul.bf16.gmra.mxu0 %v2794
        %v3705 = vpop.f32.mrf.mxu0
        %v3706 = vadd.f32 %v2162, %v3705
        %v3707 = vpop.f32.mrf.mxu0
        %v3708 = vadd.f32 %v2167, %v3707
        %3709 = vmatmul.bf16.gmra.mxu0 %v2795
        %v3710 = vpop.f32.mrf.mxu0
        %v3711 = vadd.f32 %v2172, %v3710
        %v3712 = vpop.f32.mrf.mxu0
        %v3713 = vadd.f32 %v2177, %v3712
        %3714 = vmatmul.bf16.gmra.mxu0 %v2796
        %v3715 = vpop.f32.mrf.mxu0
        %v3716 = vadd.f32 %v2182, %v3715
        %v3717 = vpop.f32.mrf.mxu0
        %v3718 = vadd.f32 %v2187, %v3717
        %3719 = vmatmul.bf16.gmra.mxu0 %v2797
        %v3720 = vpop.f32.mrf.mxu0
        %v3721 = vadd.f32 %v2192, %v3720
        %v3722 = vpop.f32.mrf.mxu0
        %v3723 = vadd.f32 %v2197, %v3722
        %3724 = vmatmul.bf16.gmra.mxu0 %v2798
        %v3725 = vpop.f32.mrf.mxu0
        %v3726 = vadd.f32 %v2202, %v3725
        %v3727 = vpop.f32.mrf.mxu0
        %v3728 = vadd.f32 %v2207, %v3727
        %3729 = vmatmul.bf16.gmra.mxu0 %v2799
        %v3730 = vpop.f32.mrf.mxu0
        %v3731 = vadd.f32 %v2212, %v3730
        %v3732 = vpop.f32.mrf.mxu0
        %v3733 = vadd.f32 %v2217, %v3732
        %3734 = vmatmul.bf16.gmra.mxu0 %v2800
        %v3735 = vpop.f32.mrf.mxu0
        %v3736 = vadd.f32 %v2222, %v3735
        %v3737 = vpop.f32.mrf.mxu0
        %v3738 = vadd.f32 %v2227, %v3737
        %3739 = vmatmul.bf16.gmra.mxu0 %v2801
        %v3740 = vpop.f32.mrf.mxu0
        %v3741 = vadd.f32 %v2232, %v3740
        %v3742 = vpop.f32.mrf.mxu0
        %v3743 = vadd.f32 %v2237, %v3742
        %3744 = vmatmul.bf16.gmra.mxu0 %v2802
        %v3745 = vpop.f32.mrf.mxu0
        %v3746 = vadd.f32 %v2242, %v3745
        %v3747 = vpop.f32.mrf.mxu0
        %v3748 = vadd.f32 %v2247, %v3747
        %3749 = vmatmul.bf16.gmra.mxu0 %v2803
        %v3750 = vpop.f32.mrf.mxu0
        %v3751 = vadd.f32 %v2252, %v3750
        %v3752 = vpop.f32.mrf.mxu0
        %v3753 = vadd.f32 %v2257, %v3752
        %3754 = vmatmul.bf16.gmra.mxu0 %v2804
        %v3755 = vpop.f32.mrf.mxu0
        %v3756 = vadd.f32 %v2262, %v3755
        %v3757 = vpop.f32.mrf.mxu0
        %v3758 = vadd.f32 %v2267, %v3757
        %3759 = vmatmul.bf16.gmra.mxu0 %v2805
        %v3760 = vpop.f32.mrf.mxu0
        %v3761 = vadd.f32 %v2272, %v3760
        %v3762 = vpop.f32.mrf.mxu0
        %v3763 = vadd.f32 %v2277, %v3762
        %3764 = vmatmul.bf16.gmra.mxu0 %v2806
        %v3765 = vpop.f32.mrf.mxu0
        %v3766 = vadd.f32 %v2282, %v3765
        %v3767 = vpop.f32.mrf.mxu0
        %v3768 = vadd.f32 %v2287, %v3767
        %3769 = vmatmul.bf16.gmra.mxu0 %v2807
        %v3770 = vpop.f32.mrf.mxu0
        %v3771 = vadd.f32 %v2292, %v3770
        %v3772 = vpop.f32.mrf.mxu0
        %v3773 = vadd.f32 %v2297, %v3772
        %3774 = vmatmul.bf16.gmra.mxu0 %v2808
        %v3775 = vpop.f32.mrf.mxu0
        %v3776 = vadd.f32 %v2302, %v3775
        %v3777 = vpop.f32.mrf.mxu0
        %v3778 = vadd.f32 %v2307, %v3777
        %3779 = vmatmul.bf16.gmra.mxu0 %v2809
        %v3780 = vpop.f32.mrf.mxu0
        %v3781 = vadd.f32 %v2312, %v3780
        %v3782 = vpop.f32.mrf.mxu0
        %v3783 = vadd.f32 %v2317, %v3782
        %3784 = vmatmul.bf16.gmra.mxu0 %v2810
        %v3785 = vpop.f32.mrf.mxu0
        %v3786 = vadd.f32 %v2322, %v3785
        %v3787 = vpop.f32.mrf.mxu0
        %v3788 = vadd.f32 %v2327, %v3787
        %3789 = vmatmul.bf16.gmra.mxu0 %v2811
        %v3790 = vpop.f32.mrf.mxu0
        %v3791 = vadd.f32 %v2332, %v3790
        %v3792 = vpop.f32.mrf.mxu0
        %v3793 = vadd.f32 %v2337, %v3792
        %3794 = vmatmul.bf16.gmra.mxu0 %v2812
        %v3795 = vpop.f32.mrf.mxu0
        %v3796 = vadd.f32 %v2342, %v3795
        %v3797 = vpop.f32.mrf.mxu0
        %v3798 = vadd.f32 %v2347, %v3797
        %3799 = vmatmul.bf16.gmra.mxu0 %v2813
        %v3800 = vpop.f32.mrf.mxu0
        %v3801 = vadd.f32 %v2352, %v3800
        %v3802 = vpop.f32.mrf.mxu0
        %v3803 = vadd.f32 %v2357, %v3802
        %3804 = vmatmul.bf16.gmra.mxu0 %v2814
        %v3805 = vpop.f32.mrf.mxu0
        %v3806 = vadd.f32 %v2362, %v3805
        %v3807 = vpop.f32.mrf.mxu0
        %v3808 = vadd.f32 %v2367, %v3807
        %3809 = vmatmul.bf16.gmra.mxu0 %v2815
        %v3810 = vpop.f32.mrf.mxu0
        %v3811 = vadd.f32 %v2372, %v3810
        %v3812 = vpop.f32.mrf.mxu0
        %v3813 = vadd.f32 %v2377, %v3812
        %3814 = vmatmul.bf16.gmra.mxu0 %v2816
        %v3815 = vpop.f32.mrf.mxu0
        %v3816 = vadd.f32 %v2382, %v3815
        %v3817 = vpop.f32.mrf.mxu0
        %v3818 = vadd.f32 %v2387, %v3817
        %3819 = vmatmul.bf16.gmra.mxu0 %v2817
        %v3820 = vpop.f32.mrf.mxu0
        %v3821 = vadd.f32 %v2392, %v3820
        %v3822 = vpop.f32.mrf.mxu0
        %v3823 = vadd.f32 %v2397, %v3822
        %3824 = vmatmul.bf16.gmra.mxu0 %v2818
        %v3825 = vpop.f32.mrf.mxu0
        %v3826 = vadd.f32 %v2402, %v3825
        %v3827 = vpop.f32.mrf.mxu0
        %v3828 = vadd.f32 %v2407, %v3827
        %3829 = vmatmul.bf16.gmra.mxu0 %v2819
        %v3830 = vpop.f32.mrf.mxu0
        %v3831 = vadd.f32 %v2412, %v3830
        %v3832 = vpop.f32.mrf.mxu0
        %v3833 = vadd.f32 %v2417, %v3832
        %3834 = vmatmul.bf16.gmra.mxu0 %v2820
        %v3835 = vpop.f32.mrf.mxu0
        %v3836 = vadd.f32 %v2422, %v3835
        %v3837 = vpop.f32.mrf.mxu0
        %v3838 = vadd.f32 %v2427, %v3837
        %3839 = vmatmul.bf16.gmra.mxu0 %v2821
        %v3840 = vpop.f32.mrf.mxu0
        %v3841 = vadd.f32 %v2432, %v3840
        %v3842 = vpop.f32.mrf.mxu0
        %v3843 = vadd.f32 %v2437, %v3842
        %3844 = vmatmul.bf16.gmra.mxu0 %v2822
        %v3845 = vpop.f32.mrf.mxu0
        %v3846 = vadd.f32 %v2442, %v3845
        %v3847 = vpop.f32.mrf.mxu0
        %v3848 = vadd.f32 %v2447, %v3847
        %3849 = vmatmul.bf16.gmra.mxu0 %v2823
        %v3850 = vpop.f32.mrf.mxu0
        %v3851 = vadd.f32 %v2452, %v3850
        %v3852 = vpop.f32.mrf.mxu0
        %v3853 = vadd.f32 %v2457, %v3852
        %3854 = vmatmul.bf16.gmra.mxu0 %v2824
        %v3855 = vpop.f32.mrf.mxu0
        %v3856 = vadd.f32 %v2462, %v3855
        %v3857 = vpop.f32.mrf.mxu0
        %v3858 = vadd.f32 %v2467, %v3857
        %3859 = vmatmul.bf16.gmra.mxu0 %v2825
        %v3860 = vpop.f32.mrf.mxu0
        %v3861 = vadd.f32 %v2472, %v3860
        %v3862 = vpop.f32.mrf.mxu0
        %v3863 = vadd.f32 %v2477, %v3862
        %3864 = vmatmul.bf16.gmra.mxu0 %v2826
        %v3865 = vpop.f32.mrf.mxu0
        %v3866 = vadd.f32 %v2482, %v3865
        %v3867 = vpop.f32.mrf.mxu0
        %v3868 = vadd.f32 %v2487, %v3867
        %3869 = vmatmul.bf16.gmra.mxu0 %v2827
        %v3870 = vpop.f32.mrf.mxu0
        %v3871 = vadd.f32 %v2492, %v3870
        %v3872 = vpop.f32.mrf.mxu0
        %v3873 = vadd.f32 %v2497, %v3872
        %3874 = vmatmul.bf16.gmra.mxu0 %v2828
        %v3875 = vpop.f32.mrf.mxu0
        %v3876 = vadd.f32 %v2502, %v3875
        %v3877 = vpop.f32.mrf.mxu0
        %v3878 = vadd.f32 %v2507, %v3877
        %3879 = vdwg.mxu0
        %3880 = vmatpush.bf16.msra.mxu0 %v1740
        %3881 = vmatpush.bf16.msra.mxu0 %v1736
        %3882 = vmatpush.bf16.msra.mxu0 %v1732
        %3883 = vmatpush.bf16.msra.mxu0 %v1728
        %3884 = vmatpush.bf16.msra.mxu0 %v1724
        %3885 = vmatpush.bf16.msra.mxu0 %v1720
        %3886 = vmatpush.bf16.msra.mxu0 %v1716
        %3887 = vmatpush.bf16.msra.mxu0 %v1712
        %3888 = vmatmul.bf16.gmra.mxu0 %v2765
        %v3889 = vpop.f32.mrf.mxu0
        %v3890 = vadd.f32 %v1872, %v3889
        %v3891 = vpop.f32.mrf.mxu0
        %v3892 = vadd.f32 %v1877, %v3891
        %3893 = vmatmul.bf16.gmra.mxu0 %v2766
        %v3894 = vpop.f32.mrf.mxu0
        %v3895 = vadd.f32 %v1882, %v3894
        %v3896 = vpop.f32.mrf.mxu0
        %v3897 = vadd.f32 %v1887, %v3896
        %3898 = vmatmul.bf16.gmra.mxu0 %v2767
        %v3899 = vpop.f32.mrf.mxu0
        %v3900 = vadd.f32 %v1892, %v3899
        %v3901 = vpop.f32.mrf.mxu0
        %v3902 = vadd.f32 %v1897, %v3901
        %3903 = vmatmul.bf16.gmra.mxu0 %v2768
        %v3904 = vpop.f32.mrf.mxu0
        %v3905 = vadd.f32 %v1902, %v3904
        %v3906 = vpop.f32.mrf.mxu0
        %v3907 = vadd.f32 %v1907, %v3906
        %3908 = vmatmul.bf16.gmra.mxu0 %v2769
        %v3909 = vpop.f32.mrf.mxu0
        %v3910 = vadd.f32 %v1912, %v3909
        %v3911 = vpop.f32.mrf.mxu0
        %v3912 = vadd.f32 %v1917, %v3911
        %3913 = vmatmul.bf16.gmra.mxu0 %v2770
        %v3914 = vpop.f32.mrf.mxu0
        %v3915 = vadd.f32 %v1922, %v3914
        %v3916 = vpop.f32.mrf.mxu0
        %v3917 = vadd.f32 %v1927, %v3916
        %3918 = vmatmul.bf16.gmra.mxu0 %v2771
        %v3919 = vpop.f32.mrf.mxu0
        %v3920 = vadd.f32 %v1932, %v3919
        %v3921 = vpop.f32.mrf.mxu0
        %v3922 = vadd.f32 %v1937, %v3921
        %3923 = vmatmul.bf16.gmra.mxu0 %v2772
        %v3924 = vpop.f32.mrf.mxu0
        %v3925 = vadd.f32 %v1942, %v3924
        %v3926 = vpop.f32.mrf.mxu0
        %v3927 = vadd.f32 %v1947, %v3926
        %3928 = vmatmul.bf16.gmra.mxu0 %v2773
        %v3929 = vpop.f32.mrf.mxu0
        %v3930 = vadd.f32 %v1952, %v3929
        %v3931 = vpop.f32.mrf.mxu0
        %v3932 = vadd.f32 %v1957, %v3931
        %3933 = vmatmul.bf16.gmra.mxu0 %v2774
        %v3934 = vpop.f32.mrf.mxu0
        %v3935 = vadd.f32 %v1962, %v3934
        %v3936 = vpop.f32.mrf.mxu0
        %v3937 = vadd.f32 %v1967, %v3936
        %3938 = vmatmul.bf16.gmra.mxu0 %v2775
        %v3939 = vpop.f32.mrf.mxu0
        %v3940 = vadd.f32 %v1972, %v3939
        %v3941 = vpop.f32.mrf.mxu0
        %v3942 = vadd.f32 %v1977, %v3941
        %3943 = vmatmul.bf16.gmra.mxu0 %v2776
        %v3944 = vpop.f32.mrf.mxu0
        %v3945 = vadd.f32 %v1982, %v3944
        %v3946 = vpop.f32.mrf.mxu0
        %v3947 = vadd.f32 %v1987, %v3946
        %3948 = vmatmul.bf16.gmra.mxu0 %v2777
        %v3949 = vpop.f32.mrf.mxu0
        %v3950 = vadd.f32 %v1992, %v3949
        %v3951 = vpop.f32.mrf.mxu0
        %v3952 = vadd.f32 %v1997, %v3951
        %3953 = vmatmul.bf16.gmra.mxu0 %v2778
        %v3954 = vpop.f32.mrf.mxu0
        %v3955 = vadd.f32 %v2002, %v3954
        %v3956 = vpop.f32.mrf.mxu0
        %v3957 = vadd.f32 %v2007, %v3956
        %3958 = vmatmul.bf16.gmra.mxu0 %v2779
        %v3959 = vpop.f32.mrf.mxu0
        %v3960 = vadd.f32 %v2012, %v3959
        %v3961 = vpop.f32.mrf.mxu0
        %v3962 = vadd.f32 %v2017, %v3961
        %3963 = vmatmul.bf16.gmra.mxu0 %v2780
        %v3964 = vpop.f32.mrf.mxu0
        %v3965 = vadd.f32 %v2022, %v3964
        %v3966 = vpop.f32.mrf.mxu0
        %v3967 = vadd.f32 %v2027, %v3966
        %3968 = vmatmul.bf16.gmra.mxu0 %v2781
        %v3969 = vpop.f32.mrf.mxu0
        %v3970 = vadd.f32 %v2032, %v3969
        %v3971 = vpop.f32.mrf.mxu0
        %v3972 = vadd.f32 %v2037, %v3971
        %3973 = vmatmul.bf16.gmra.mxu0 %v2782
        %v3974 = vpop.f32.mrf.mxu0
        %v3975 = vadd.f32 %v2042, %v3974
        %v3976 = vpop.f32.mrf.mxu0
        %v3977 = vadd.f32 %v2047, %v3976
        %3978 = vmatmul.bf16.gmra.mxu0 %v2783
        %v3979 = vpop.f32.mrf.mxu0
        %v3980 = vadd.f32 %v2052, %v3979
        %v3981 = vpop.f32.mrf.mxu0
        %v3982 = vadd.f32 %v2057, %v3981
        %3983 = vmatmul.bf16.gmra.mxu0 %v2784
        %v3984 = vpop.f32.mrf.mxu0
        %v3985 = vadd.f32 %v2062, %v3984
        %v3986 = vpop.f32.mrf.mxu0
        %v3987 = vadd.f32 %v2067, %v3986
        %3988 = vmatmul.bf16.gmra.mxu0 %v2785
        %v3989 = vpop.f32.mrf.mxu0
        %v3990 = vadd.f32 %v2072, %v3989
        %v3991 = vpop.f32.mrf.mxu0
        %v3992 = vadd.f32 %v2077, %v3991
        %3993 = vmatmul.bf16.gmra.mxu0 %v2786
        %v3994 = vpop.f32.mrf.mxu0
        %v3995 = vadd.f32 %v2082, %v3994
        %v3996 = vpop.f32.mrf.mxu0
        %v3997 = vadd.f32 %v2087, %v3996
        %3998 = vmatmul.bf16.gmra.mxu0 %v2787
        %v3999 = vpop.f32.mrf.mxu0
        %v4000 = vadd.f32 %v2092, %v3999
        %v4001 = vpop.f32.mrf.mxu0
        %v4002 = vadd.f32 %v2097, %v4001
        %4003 = vmatmul.bf16.gmra.mxu0 %v2788
        %v4004 = vpop.f32.mrf.mxu0
        %v4005 = vadd.f32 %v2102, %v4004
        %v4006 = vpop.f32.mrf.mxu0
        %v4007 = vadd.f32 %v2107, %v4006
        %4008 = vmatmul.bf16.gmra.mxu0 %v2789
        %v4009 = vpop.f32.mrf.mxu0
        %v4010 = vadd.f32 %v2112, %v4009
        %v4011 = vpop.f32.mrf.mxu0
        %v4012 = vadd.f32 %v2117, %v4011
        %4013 = vmatmul.bf16.gmra.mxu0 %v2790
        %v4014 = vpop.f32.mrf.mxu0
        %v4015 = vadd.f32 %v2122, %v4014
        %v4016 = vpop.f32.mrf.mxu0
        %v4017 = vadd.f32 %v2127, %v4016
        %4018 = vmatmul.bf16.gmra.mxu0 %v2791
        %v4019 = vpop.f32.mrf.mxu0
        %v4020 = vadd.f32 %v2132, %v4019
        %v4021 = vpop.f32.mrf.mxu0
        %v4022 = vadd.f32 %v2137, %v4021
        %4023 = vmatmul.bf16.gmra.mxu0 %v2792
        %v4024 = vpop.f32.mrf.mxu0
        %v4025 = vadd.f32 %v2142, %v4024
        %v4026 = vpop.f32.mrf.mxu0
        %v4027 = vadd.f32 %v2147, %v4026
        %4028 = vmatmul.bf16.gmra.mxu0 %v2793
        %v4029 = vpop.f32.mrf.mxu0
        %v4030 = vadd.f32 %v2152, %v4029
        %v4031 = vpop.f32.mrf.mxu0
        %v4032 = vadd.f32 %v2157, %v4031
        %4033 = vmatmul.bf16.gmra.mxu0 %v2794
        %v4034 = vpop.f32.mrf.mxu0
        %v4035 = vadd.f32 %v2162, %v4034
        %v4036 = vpop.f32.mrf.mxu0
        %v4037 = vadd.f32 %v2167, %v4036
        %4038 = vmatmul.bf16.gmra.mxu0 %v2795
        %v4039 = vpop.f32.mrf.mxu0
        %v4040 = vadd.f32 %v2172, %v4039
        %v4041 = vpop.f32.mrf.mxu0
        %v4042 = vadd.f32 %v2177, %v4041
        %4043 = vmatmul.bf16.gmra.mxu0 %v2796
        %v4044 = vpop.f32.mrf.mxu0
        %v4045 = vadd.f32 %v2182, %v4044
        %v4046 = vpop.f32.mrf.mxu0
        %v4047 = vadd.f32 %v2187, %v4046
        %4048 = vmatmul.bf16.gmra.mxu0 %v2797
        %v4049 = vpop.f32.mrf.mxu0
        %v4050 = vadd.f32 %v2192, %v4049
        %v4051 = vpop.f32.mrf.mxu0
        %v4052 = vadd.f32 %v2197, %v4051
        %4053 = vmatmul.bf16.gmra.mxu0 %v2798
        %v4054 = vpop.f32.mrf.mxu0
        %v4055 = vadd.f32 %v2202, %v4054
        %v4056 = vpop.f32.mrf.mxu0
        %v4057 = vadd.f32 %v2207, %v4056
        %4058 = vmatmul.bf16.gmra.mxu0 %v2799
        %v4059 = vpop.f32.mrf.mxu0
        %v4060 = vadd.f32 %v2212, %v4059
        %v4061 = vpop.f32.mrf.mxu0
        %v4062 = vadd.f32 %v2217, %v4061
        %4063 = vmatmul.bf16.gmra.mxu0 %v2800
        %v4064 = vpop.f32.mrf.mxu0
        %v4065 = vadd.f32 %v2222, %v4064
        %v4066 = vpop.f32.mrf.mxu0
        %v4067 = vadd.f32 %v2227, %v4066
        %4068 = vmatmul.bf16.gmra.mxu0 %v2801
        %v4069 = vpop.f32.mrf.mxu0
        %v4070 = vadd.f32 %v2232, %v4069
        %v4071 = vpop.f32.mrf.mxu0
        %v4072 = vadd.f32 %v2237, %v4071
        %4073 = vmatmul.bf16.gmra.mxu0 %v2802
        %v4074 = vpop.f32.mrf.mxu0
        %v4075 = vadd.f32 %v2242, %v4074
        %v4076 = vpop.f32.mrf.mxu0
        %v4077 = vadd.f32 %v2247, %v4076
        %4078 = vmatmul.bf16.gmra.mxu0 %v2803
        %v4079 = vpop.f32.mrf.mxu0
        %v4080 = vadd.f32 %v2252, %v4079
        %v4081 = vpop.f32.mrf.mxu0
        %v4082 = vadd.f32 %v2257, %v4081
        %4083 = vmatmul.bf16.gmra.mxu0 %v2804
        %v4084 = vpop.f32.mrf.mxu0
        %v4085 = vadd.f32 %v2262, %v4084
        %v4086 = vpop.f32.mrf.mxu0
        %v4087 = vadd.f32 %v2267, %v4086
        %4088 = vmatmul.bf16.gmra.mxu0 %v2805
        %v4089 = vpop.f32.mrf.mxu0
        %v4090 = vadd.f32 %v2272, %v4089
        %v4091 = vpop.f32.mrf.mxu0
        %v4092 = vadd.f32 %v2277, %v4091
        %4093 = vmatmul.bf16.gmra.mxu0 %v2806
        %v4094 = vpop.f32.mrf.mxu0
        %v4095 = vadd.f32 %v2282, %v4094
        %v4096 = vpop.f32.mrf.mxu0
        %v4097 = vadd.f32 %v2287, %v4096
        %4098 = vmatmul.bf16.gmra.mxu0 %v2807
        %v4099 = vpop.f32.mrf.mxu0
        %v4100 = vadd.f32 %v2292, %v4099
        %v4101 = vpop.f32.mrf.mxu0
        %v4102 = vadd.f32 %v2297, %v4101
        %4103 = vmatmul.bf16.gmra.mxu0 %v2808
        %v4104 = vpop.f32.mrf.mxu0
        %v4105 = vadd.f32 %v2302, %v4104
        %v4106 = vpop.f32.mrf.mxu0
        %v4107 = vadd.f32 %v2307, %v4106
        %4108 = vmatmul.bf16.gmra.mxu0 %v2809
        %v4109 = vpop.f32.mrf.mxu0
        %v4110 = vadd.f32 %v2312, %v4109
        %v4111 = vpop.f32.mrf.mxu0
        %v4112 = vadd.f32 %v2317, %v4111
        %4113 = vmatmul.bf16.gmra.mxu0 %v2810
        %v4114 = vpop.f32.mrf.mxu0
        %v4115 = vadd.f32 %v2322, %v4114
        %v4116 = vpop.f32.mrf.mxu0
        %v4117 = vadd.f32 %v2327, %v4116
        %4118 = vmatmul.bf16.gmra.mxu0 %v2811
        %v4119 = vpop.f32.mrf.mxu0
        %v4120 = vadd.f32 %v2332, %v4119
        %v4121 = vpop.f32.mrf.mxu0
        %v4122 = vadd.f32 %v2337, %v4121
        %4123 = vmatmul.bf16.gmra.mxu0 %v2812
        %v4124 = vpop.f32.mrf.mxu0
        %v4125 = vadd.f32 %v2342, %v4124
        %v4126 = vpop.f32.mrf.mxu0
        %v4127 = vadd.f32 %v2347, %v4126
        %4128 = vmatmul.bf16.gmra.mxu0 %v2813
        %v4129 = vpop.f32.mrf.mxu0
        %v4130 = vadd.f32 %v2352, %v4129
        %v4131 = vpop.f32.mrf.mxu0
        %v4132 = vadd.f32 %v2357, %v4131
        %4133 = vmatmul.bf16.gmra.mxu0 %v2814
        %v4134 = vpop.f32.mrf.mxu0
        %v4135 = vadd.f32 %v2362, %v4134
        %v4136 = vpop.f32.mrf.mxu0
        %v4137 = vadd.f32 %v2367, %v4136
        %4138 = vmatmul.bf16.gmra.mxu0 %v2815
        %v4139 = vpop.f32.mrf.mxu0
        %v4140 = vadd.f32 %v2372, %v4139
        %v4141 = vpop.f32.mrf.mxu0
        %v4142 = vadd.f32 %v2377, %v4141
        %4143 = vmatmul.bf16.gmra.mxu0 %v2816
        %v4144 = vpop.f32.mrf.mxu0
        %v4145 = vadd.f32 %v2382, %v4144
        %v4146 = vpop.f32.mrf.mxu0
        %v4147 = vadd.f32 %v2387, %v4146
        %4148 = vmatmul.bf16.gmra.mxu0 %v2817
        %v4149 = vpop.f32.mrf.mxu0
        %v4150 = vadd.f32 %v2392, %v4149
        %v4151 = vpop.f32.mrf.mxu0
        %v4152 = vadd.f32 %v2397, %v4151
        %4153 = vmatmul.bf16.gmra.mxu0 %v2818
        %v4154 = vpop.f32.mrf.mxu0
        %v4155 = vadd.f32 %v2402, %v4154
        %v4156 = vpop.f32.mrf.mxu0
        %v4157 = vadd.f32 %v2407, %v4156
        %4158 = vmatmul.bf16.gmra.mxu0 %v2819
        %v4159 = vpop.f32.mrf.mxu0
        %v4160 = vadd.f32 %v2412, %v4159
        %v4161 = vpop.f32.mrf.mxu0
        %v4162 = vadd.f32 %v2417, %v4161
        %4163 = vmatmul.bf16.gmra.mxu0 %v2820
        %v4164 = vpop.f32.mrf.mxu0
        %v4165 = vadd.f32 %v2422, %v4164
        %v4166 = vpop.f32.mrf.mxu0
        %v4167 = vadd.f32 %v2427, %v4166
        %4168 = vmatmul.bf16.gmra.mxu0 %v2821
        %v4169 = vpop.f32.mrf.mxu0
        %v4170 = vadd.f32 %v2432, %v4169
        %v4171 = vpop.f32.mrf.mxu0
        %v4172 = vadd.f32 %v2437, %v4171
        %4173 = vmatmul.bf16.gmra.mxu0 %v2822
        %v4174 = vpop.f32.mrf.mxu0
        %v4175 = vadd.f32 %v2442, %v4174
        %v4176 = vpop.f32.mrf.mxu0
        %v4177 = vadd.f32 %v2447, %v4176
        %4178 = vmatmul.bf16.gmra.mxu0 %v2823
        %v4179 = vpop.f32.mrf.mxu0
        %v4180 = vadd.f32 %v2452, %v4179
        %v4181 = vpop.f32.mrf.mxu0
        %v4182 = vadd.f32 %v2457, %v4181
        %4183 = vmatmul.bf16.gmra.mxu0 %v2824
        %v4184 = vpop.f32.mrf.mxu0
        %v4185 = vadd.f32 %v2462, %v4184
        %v4186 = vpop.f32.mrf.mxu0
        %v4187 = vadd.f32 %v2467, %v4186
        %4188 = vmatmul.bf16.gmra.mxu0 %v2825
        %v4189 = vpop.f32.mrf.mxu0
        %v4190 = vadd.f32 %v2472, %v4189
        %v4191 = vpop.f32.mrf.mxu0
        %v4192 = vadd.f32 %v2477, %v4191
        %4193 = vmatmul.bf16.gmra.mxu0 %v2826
        %v4194 = vpop.f32.mrf.mxu0
        %v4195 = vadd.f32 %v2482, %v4194
        %v4196 = vpop.f32.mrf.mxu0
        %v4197 = vadd.f32 %v2487, %v4196
        %4198 = vmatmul.bf16.gmra.mxu0 %v2827
        %v4199 = vpop.f32.mrf.mxu0
        %v4200 = vadd.f32 %v2492, %v4199
        %v4201 = vpop.f32.mrf.mxu0
        %v4202 = vadd.f32 %v2497, %v4201
        %4203 = vmatmul.bf16.gmra.mxu0 %v2828
        %v4204 = vpop.f32.mrf.mxu0
        %v4205 = vadd.f32 %v2502, %v4204
        %v4206 = vpop.f32.mrf.mxu0
        %v4207 = vadd.f32 %v2507, %v4206
        %4208 = vdwg.mxu0
        %v4209 = vpack.c.bf16 %v3232, %v2903
        %v4210 = vpack.c.bf16 %v3890, %v3561
        %v4211 = vpack.c.bf16 %v3234, %v2905
        %v4212 = vpack.c.bf16 %v3892, %v3563
        %v4213 = vpack.c.bf16 %v3237, %v2908
        %v4214 = vpack.c.bf16 %v3895, %v3566
        %v4215 = vpack.c.bf16 %v3239, %v2910
        %v4216 = vpack.c.bf16 %v3897, %v3568
        %v4217 = vpack.c.bf16 %v3242, %v2913
        %v4218 = vpack.c.bf16 %v3900, %v3571
        %v4219 = vpack.c.bf16 %v3244, %v2915
        %v4220 = vpack.c.bf16 %v3902, %v3573
        %v4221 = vpack.c.bf16 %v3247, %v2918
        %v4222 = vpack.c.bf16 %v3905, %v3576
        %v4223 = vpack.c.bf16 %v3249, %v2920
        %v4224 = vpack.c.bf16 %v3907, %v3578
        %v4225 = vpack.c.bf16 %v3252, %v2923
        %v4226 = vpack.c.bf16 %v3910, %v3581
        %v4227 = vpack.c.bf16 %v3254, %v2925
        %v4228 = vpack.c.bf16 %v3912, %v3583
        %v4229 = vpack.c.bf16 %v3257, %v2928
        %v4230 = vpack.c.bf16 %v3915, %v3586
        %v4231 = vpack.c.bf16 %v3259, %v2930
        %v4232 = vpack.c.bf16 %v3917, %v3588
        %v4233 = vpack.c.bf16 %v3262, %v2933
        %v4234 = vpack.c.bf16 %v3920, %v3591
        %v4235 = vpack.c.bf16 %v3264, %v2935
        %v4236 = vpack.c.bf16 %v3922, %v3593
        %v4237 = vpack.c.bf16 %v3267, %v2938
        %v4238 = vpack.c.bf16 %v3925, %v3596
        %v4239 = vpack.c.bf16 %v3269, %v2940
        %v4240 = vpack.c.bf16 %v3927, %v3598
        %v4241 = vpack.c.bf16 %v3272, %v2943
        %v4242 = vpack.c.bf16 %v3930, %v3601
        %v4243 = vpack.c.bf16 %v3274, %v2945
        %v4244 = vpack.c.bf16 %v3932, %v3603
        %v4245 = vpack.c.bf16 %v3277, %v2948
        %v4246 = vpack.c.bf16 %v3935, %v3606
        %v4247 = vpack.c.bf16 %v3279, %v2950
        %v4248 = vpack.c.bf16 %v3937, %v3608
        %v4249 = vpack.c.bf16 %v3282, %v2953
        %v4250 = vpack.c.bf16 %v3940, %v3611
        %v4251 = vpack.c.bf16 %v3284, %v2955
        %v4252 = vpack.c.bf16 %v3942, %v3613
        %v4253 = vpack.c.bf16 %v3287, %v2958
        %v4254 = vpack.c.bf16 %v3945, %v3616
        %v4255 = vpack.c.bf16 %v3289, %v2960
        %v4256 = vpack.c.bf16 %v3947, %v3618
        %v4257 = vpack.c.bf16 %v3292, %v2963
        %v4258 = vpack.c.bf16 %v3950, %v3621
        %v4259 = vpack.c.bf16 %v3294, %v2965
        %v4260 = vpack.c.bf16 %v3952, %v3623
        %v4261 = vpack.c.bf16 %v3297, %v2968
        %v4262 = vpack.c.bf16 %v3955, %v3626
        %v4263 = vpack.c.bf16 %v3299, %v2970
        %v4264 = vpack.c.bf16 %v3957, %v3628
        %v4265 = vpack.c.bf16 %v3302, %v2973
        %v4266 = vpack.c.bf16 %v3960, %v3631
        %v4267 = vpack.c.bf16 %v3304, %v2975
        %v4268 = vpack.c.bf16 %v3962, %v3633
        %v4269 = vpack.c.bf16 %v3307, %v2978
        %v4270 = vpack.c.bf16 %v3965, %v3636
        %v4271 = vpack.c.bf16 %v3309, %v2980
        %v4272 = vpack.c.bf16 %v3967, %v3638
        %v4273 = vpack.c.bf16 %v3312, %v2983
        %v4274 = vpack.c.bf16 %v3970, %v3641
        %v4275 = vpack.c.bf16 %v3314, %v2985
        %v4276 = vpack.c.bf16 %v3972, %v3643
        %v4277 = vpack.c.bf16 %v3317, %v2988
        %v4278 = vpack.c.bf16 %v3975, %v3646
        %v4279 = vpack.c.bf16 %v3319, %v2990
        %v4280 = vpack.c.bf16 %v3977, %v3648
        %v4281 = vpack.c.bf16 %v3322, %v2993
        %v4282 = vpack.c.bf16 %v3980, %v3651
        %v4283 = vpack.c.bf16 %v3324, %v2995
        %v4284 = vpack.c.bf16 %v3982, %v3653
        %v4285 = vpack.c.bf16 %v3327, %v2998
        %v4286 = vpack.c.bf16 %v3985, %v3656
        %v4287 = vpack.c.bf16 %v3329, %v3000
        %v4288 = vpack.c.bf16 %v3987, %v3658
        %v4289 = vpack.c.bf16 %v3332, %v3003
        %v4290 = vpack.c.bf16 %v3990, %v3661
        %v4291 = vpack.c.bf16 %v3334, %v3005
        %v4292 = vpack.c.bf16 %v3992, %v3663
        %v4293 = vpack.c.bf16 %v3337, %v3008
        %v4294 = vpack.c.bf16 %v3995, %v3666
        %v4295 = vpack.c.bf16 %v3339, %v3010
        %v4296 = vpack.c.bf16 %v3997, %v3668
        %v4297 = vpack.c.bf16 %v3342, %v3013
        %v4298 = vpack.c.bf16 %v4000, %v3671
        %v4299 = vpack.c.bf16 %v3344, %v3015
        %v4300 = vpack.c.bf16 %v4002, %v3673
        %v4301 = vpack.c.bf16 %v3347, %v3018
        %v4302 = vpack.c.bf16 %v4005, %v3676
        %v4303 = vpack.c.bf16 %v3349, %v3020
        %v4304 = vpack.c.bf16 %v4007, %v3678
        %v4305 = vpack.c.bf16 %v3352, %v3023
        %v4306 = vpack.c.bf16 %v4010, %v3681
        %v4307 = vpack.c.bf16 %v3354, %v3025
        %v4308 = vpack.c.bf16 %v4012, %v3683
        %v4309 = vpack.c.bf16 %v3357, %v3028
        %v4310 = vpack.c.bf16 %v4015, %v3686
        %v4311 = vpack.c.bf16 %v3359, %v3030
        %v4312 = vpack.c.bf16 %v4017, %v3688
        %v4313 = vpack.c.bf16 %v3362, %v3033
        %v4314 = vpack.c.bf16 %v4020, %v3691
        %v4315 = vpack.c.bf16 %v3364, %v3035
        %v4316 = vpack.c.bf16 %v4022, %v3693
        %v4317 = vpack.c.bf16 %v3367, %v3038
        %v4318 = vpack.c.bf16 %v4025, %v3696
        %v4319 = vpack.c.bf16 %v3369, %v3040
        %v4320 = vpack.c.bf16 %v4027, %v3698
        %v4321 = vpack.c.bf16 %v3372, %v3043
        %v4322 = vpack.c.bf16 %v4030, %v3701
        %v4323 = vpack.c.bf16 %v3374, %v3045
        %v4324 = vpack.c.bf16 %v4032, %v3703
        %v4325 = vpack.c.bf16 %v3377, %v3048
        %v4326 = vpack.c.bf16 %v4035, %v3706
        %v4327 = vpack.c.bf16 %v3379, %v3050
        %v4328 = vpack.c.bf16 %v4037, %v3708
        %v4329 = vpack.c.bf16 %v3382, %v3053
        %v4330 = vpack.c.bf16 %v4040, %v3711
        %v4331 = vpack.c.bf16 %v3384, %v3055
        %v4332 = vpack.c.bf16 %v4042, %v3713
        %v4333 = vpack.c.bf16 %v3387, %v3058
        %v4334 = vpack.c.bf16 %v4045, %v3716
        %v4335 = vpack.c.bf16 %v3389, %v3060
        %v4336 = vpack.c.bf16 %v4047, %v3718
        %v4337 = vpack.c.bf16 %v3392, %v3063
        %v4338 = vpack.c.bf16 %v4050, %v3721
        %v4339 = vpack.c.bf16 %v3394, %v3065
        %v4340 = vpack.c.bf16 %v4052, %v3723
        %v4341 = vpack.c.bf16 %v3397, %v3068
        %v4342 = vpack.c.bf16 %v4055, %v3726
        %v4343 = vpack.c.bf16 %v3399, %v3070
        %v4344 = vpack.c.bf16 %v4057, %v3728
        %v4345 = vpack.c.bf16 %v3402, %v3073
        %v4346 = vpack.c.bf16 %v4060, %v3731
        %v4347 = vpack.c.bf16 %v3404, %v3075
        %v4348 = vpack.c.bf16 %v4062, %v3733
        %v4349 = vpack.c.bf16 %v3407, %v3078
        %v4350 = vpack.c.bf16 %v4065, %v3736
        %v4351 = vpack.c.bf16 %v3409, %v3080
        %v4352 = vpack.c.bf16 %v4067, %v3738
        %v4353 = vpack.c.bf16 %v3412, %v3083
        %v4354 = vpack.c.bf16 %v4070, %v3741
        %v4355 = vpack.c.bf16 %v3414, %v3085
        %v4356 = vpack.c.bf16 %v4072, %v3743
        %v4357 = vpack.c.bf16 %v3417, %v3088
        %v4358 = vpack.c.bf16 %v4075, %v3746
        %v4359 = vpack.c.bf16 %v3419, %v3090
        %v4360 = vpack.c.bf16 %v4077, %v3748
        %v4361 = vpack.c.bf16 %v3422, %v3093
        %v4362 = vpack.c.bf16 %v4080, %v3751
        %v4363 = vpack.c.bf16 %v3424, %v3095
        %v4364 = vpack.c.bf16 %v4082, %v3753
        %v4365 = vpack.c.bf16 %v3427, %v3098
        %v4366 = vpack.c.bf16 %v4085, %v3756
        %v4367 = vpack.c.bf16 %v3429, %v3100
        %v4368 = vpack.c.bf16 %v4087, %v3758
        %v4369 = vpack.c.bf16 %v3432, %v3103
        %v4370 = vpack.c.bf16 %v4090, %v3761
        %v4371 = vpack.c.bf16 %v3434, %v3105
        %v4372 = vpack.c.bf16 %v4092, %v3763
        %v4373 = vpack.c.bf16 %v3437, %v3108
        %v4374 = vpack.c.bf16 %v4095, %v3766
        %v4375 = vpack.c.bf16 %v3439, %v3110
        %v4376 = vpack.c.bf16 %v4097, %v3768
        %v4377 = vpack.c.bf16 %v3442, %v3113
        %v4378 = vpack.c.bf16 %v4100, %v3771
        %v4379 = vpack.c.bf16 %v3444, %v3115
        %v4380 = vpack.c.bf16 %v4102, %v3773
        %v4381 = vpack.c.bf16 %v3447, %v3118
        %v4382 = vpack.c.bf16 %v4105, %v3776
        %v4383 = vpack.c.bf16 %v3449, %v3120
        %v4384 = vpack.c.bf16 %v4107, %v3778
        %v4385 = vpack.c.bf16 %v3452, %v3123
        %v4386 = vpack.c.bf16 %v4110, %v3781
        %v4387 = vpack.c.bf16 %v3454, %v3125
        %v4388 = vpack.c.bf16 %v4112, %v3783
        %v4389 = vpack.c.bf16 %v3457, %v3128
        %v4390 = vpack.c.bf16 %v4115, %v3786
        %v4391 = vpack.c.bf16 %v3459, %v3130
        %v4392 = vpack.c.bf16 %v4117, %v3788
        %v4393 = vpack.c.bf16 %v3462, %v3133
        %v4394 = vpack.c.bf16 %v4120, %v3791
        %v4395 = vpack.c.bf16 %v3464, %v3135
        %v4396 = vpack.c.bf16 %v4122, %v3793
        %v4397 = vpack.c.bf16 %v3467, %v3138
        %v4398 = vpack.c.bf16 %v4125, %v3796
        %v4399 = vpack.c.bf16 %v3469, %v3140
        %v4400 = vpack.c.bf16 %v4127, %v3798
        %v4401 = vpack.c.bf16 %v3472, %v3143
        %v4402 = vpack.c.bf16 %v4130, %v3801
        %v4403 = vpack.c.bf16 %v3474, %v3145
        %v4404 = vpack.c.bf16 %v4132, %v3803
        %v4405 = vpack.c.bf16 %v3477, %v3148
        %v4406 = vpack.c.bf16 %v4135, %v3806
        %v4407 = vpack.c.bf16 %v3479, %v3150
        %v4408 = vpack.c.bf16 %v4137, %v3808
        %v4409 = vpack.c.bf16 %v3482, %v3153
        %v4410 = vpack.c.bf16 %v4140, %v3811
        %v4411 = vpack.c.bf16 %v3484, %v3155
        %v4412 = vpack.c.bf16 %v4142, %v3813
        %v4413 = vpack.c.bf16 %v3487, %v3158
        %v4414 = vpack.c.bf16 %v4145, %v3816
        %v4415 = vpack.c.bf16 %v3489, %v3160
        %v4416 = vpack.c.bf16 %v4147, %v3818
        %v4417 = vpack.c.bf16 %v3492, %v3163
        %v4418 = vpack.c.bf16 %v4150, %v3821
        %v4419 = vpack.c.bf16 %v3494, %v3165
        %v4420 = vpack.c.bf16 %v4152, %v3823
        %v4421 = vpack.c.bf16 %v3497, %v3168
        %v4422 = vpack.c.bf16 %v4155, %v3826
        %v4423 = vpack.c.bf16 %v3499, %v3170
        %v4424 = vpack.c.bf16 %v4157, %v3828
        %v4425 = vpack.c.bf16 %v3502, %v3173
        %v4426 = vpack.c.bf16 %v4160, %v3831
        %v4427 = vpack.c.bf16 %v3504, %v3175
        %v4428 = vpack.c.bf16 %v4162, %v3833
        %v4429 = vpack.c.bf16 %v3507, %v3178
        %v4430 = vpack.c.bf16 %v4165, %v3836
        %v4431 = vpack.c.bf16 %v3509, %v3180
        %v4432 = vpack.c.bf16 %v4167, %v3838
        %v4433 = vpack.c.bf16 %v3512, %v3183
        %v4434 = vpack.c.bf16 %v4170, %v3841
        %v4435 = vpack.c.bf16 %v3514, %v3185
        %v4436 = vpack.c.bf16 %v4172, %v3843
        %v4437 = vpack.c.bf16 %v3517, %v3188
        %v4438 = vpack.c.bf16 %v4175, %v3846
        %v4439 = vpack.c.bf16 %v3519, %v3190
        %v4440 = vpack.c.bf16 %v4177, %v3848
        %v4441 = vpack.c.bf16 %v3522, %v3193
        %v4442 = vpack.c.bf16 %v4180, %v3851
        %v4443 = vpack.c.bf16 %v3524, %v3195
        %v4444 = vpack.c.bf16 %v4182, %v3853
        %v4445 = vpack.c.bf16 %v3527, %v3198
        %v4446 = vpack.c.bf16 %v4185, %v3856
        %v4447 = vpack.c.bf16 %v3529, %v3200
        %v4448 = vpack.c.bf16 %v4187, %v3858
        %v4449 = vpack.c.bf16 %v3532, %v3203
        %v4450 = vpack.c.bf16 %v4190, %v3861
        %v4451 = vpack.c.bf16 %v3534, %v3205
        %v4452 = vpack.c.bf16 %v4192, %v3863
        %v4453 = vpack.c.bf16 %v3537, %v3208
        %v4454 = vpack.c.bf16 %v4195, %v3866
        %v4455 = vpack.c.bf16 %v3539, %v3210
        %v4456 = vpack.c.bf16 %v4197, %v3868
        %v4457 = vpack.c.bf16 %v3542, %v3213
        %v4458 = vpack.c.bf16 %v4200, %v3871
        %v4459 = vpack.c.bf16 %v3544, %v3215
        %v4460 = vpack.c.bf16 %v4202, %v3873
        %v4461 = vpack.c.bf16 %v3547, %v3218
        %v4462 = vpack.c.bf16 %v4205, %v3876
        %v4463 = vpack.c.bf16 %v3549, %v3220
        %v4464 = vpack.c.bf16 %v4207, %v3878
        %4465 = vst [vmem:[%s436] sm:$0xff] %v4209
        %4466 = vst [vmem:[%s436 + $0x8] sm:$0xff] %v4210
        %4467 = vst [vmem:[%s436 + $0x10] sm:$0xff] %v4211
        %4468 = vst [vmem:[%s436 + $0x18] sm:$0xff] %v4212
        %4469 = vst [vmem:[%s436 + $0x20] sm:$0xff] %v4213
        %4470 = vst [vmem:[%s436 + $0x28] sm:$0xff] %v4214
        %4471 = vst [vmem:[%s436 + $0x30] sm:$0xff] %v4215
        %4472 = vst [vmem:[%s436 + $0x38] sm:$0xff] %v4216
        %4473 = vst [vmem:[%s436 + $0x40] sm:$0xff] %v4217
        %4474 = vst [vmem:[%s436 + $0x48] sm:$0xff] %v4218
        %4475 = vst [vmem:[%s436 + $0x50] sm:$0xff] %v4219
        %4476 = vst [vmem:[%s436 + $0x58] sm:$0xff] %v4220
        %4477 = vst [vmem:[%s436 + $0x60] sm:$0xff] %v4221
        %4478 = vst [vmem:[%s436 + $0x68] sm:$0xff] %v4222
        %4479 = vst [vmem:[%s436 + $0x70] sm:$0xff] %v4223
        %4480 = vst [vmem:[%s436 + $0x78] sm:$0xff] %v4224
        %4481 = vst [vmem:[%s436 + $0x80] sm:$0xff] %v4225
        %4482 = vst [vmem:[%s436 + $0x88] sm:$0xff] %v4226
        %4483 = vst [vmem:[%s436 + $0x90] sm:$0xff] %v4227
        %4484 = vst [vmem:[%s436 + $0x98] sm:$0xff] %v4228
        %4485 = vst [vmem:[%s436 + $0xa0] sm:$0xff] %v4229
        %4486 = vst [vmem:[%s436 + $0xa8] sm:$0xff] %v4230
        %4487 = vst [vmem:[%s436 + $0xb0] sm:$0xff] %v4231
        %4488 = vst [vmem:[%s436 + $0xb8] sm:$0xff] %v4232
        %4489 = vst [vmem:[%s436 + $0xc0] sm:$0xff] %v4233
        %4490 = vst [vmem:[%s436 + $0xc8] sm:$0xff] %v4234
        %4491 = vst [vmem:[%s436 + $0xd0] sm:$0xff] %v4235
        %4492 = vst [vmem:[%s436 + $0xd8] sm:$0xff] %v4236
        %4493 = vst [vmem:[%s436 + $0xe0] sm:$0xff] %v4237
        %4494 = vst [vmem:[%s436 + $0xe8] sm:$0xff] %v4238
        %4495 = vst [vmem:[%s436 + $0xf0] sm:$0xff] %v4239
        %4496 = vst [vmem:[%s436 + $0xf8] sm:$0xff] %v4240
        %4497 = vst [vmem:[%s436 + $0x100] sm:$0xff] %v4241
        %4498 = vst [vmem:[%s436 + $0x108] sm:$0xff] %v4242
        %4499 = vst [vmem:[%s436 + $0x110] sm:$0xff] %v4243
        %4500 = vst [vmem:[%s436 + $0x118] sm:$0xff] %v4244
        %4501 = vst [vmem:[%s436 + $0x120] sm:$0xff] %v4245
        %4502 = vst [vmem:[%s436 + $0x128] sm:$0xff] %v4246
        %4503 = vst [vmem:[%s436 + $0x130] sm:$0xff] %v4247
        %4504 = vst [vmem:[%s436 + $0x138] sm:$0xff] %v4248
        %4505 = vst [vmem:[%s436 + $0x140] sm:$0xff] %v4249
        %4506 = vst [vmem:[%s436 + $0x148] sm:$0xff] %v4250
        %4507 = vst [vmem:[%s436 + $0x150] sm:$0xff] %v4251
        %4508 = vst [vmem:[%s436 + $0x158] sm:$0xff] %v4252
        %4509 = vst [vmem:[%s436 + $0x160] sm:$0xff] %v4253
        %4510 = vst [vmem:[%s436 + $0x168] sm:$0xff] %v4254
        %4511 = vst [vmem:[%s436 + $0x170] sm:$0xff] %v4255
        %4512 = vst [vmem:[%s436 + $0x178] sm:$0xff] %v4256
        %4513 = vst [vmem:[%s436 + $0x180] sm:$0xff] %v4257
        %4514 = vst [vmem:[%s436 + $0x188] sm:$0xff] %v4258
        %4515 = vst [vmem:[%s436 + $0x190] sm:$0xff] %v4259
        %4516 = vst [vmem:[%s436 + $0x198] sm:$0xff] %v4260
        %4517 = vst [vmem:[%s436 + $0x1a0] sm:$0xff] %v4261
        %4518 = vst [vmem:[%s436 + $0x1a8] sm:$0xff] %v4262
        %4519 = vst [vmem:[%s436 + $0x1b0] sm:$0xff] %v4263
        %4520 = vst [vmem:[%s436 + $0x1b8] sm:$0xff] %v4264
        %4521 = vst [vmem:[%s436 + $0x1c0] sm:$0xff] %v4265
        %4522 = vst [vmem:[%s436 + $0x1c8] sm:$0xff] %v4266
        %4523 = vst [vmem:[%s436 + $0x1d0] sm:$0xff] %v4267
        %4524 = vst [vmem:[%s436 + $0x1d8] sm:$0xff] %v4268
        %4525 = vst [vmem:[%s436 + $0x1e0] sm:$0xff] %v4269
        %4526 = vst [vmem:[%s436 + $0x1e8] sm:$0xff] %v4270
        %4527 = vst [vmem:[%s436 + $0x1f0] sm:$0xff] %v4271
        %4528 = vst [vmem:[%s436 + $0x1f8] sm:$0xff] %v4272
        %4529 = vst [vmem:[%s436 + $0x200] sm:$0xff] %v4273
        %4530 = vst [vmem:[%s436 + $0x208] sm:$0xff] %v4274
        %4531 = vst [vmem:[%s436 + $0x210] sm:$0xff] %v4275
        %4532 = vst [vmem:[%s436 + $0x218] sm:$0xff] %v4276
        %4533 = vst [vmem:[%s436 + $0x220] sm:$0xff] %v4277
        %4534 = vst [vmem:[%s436 + $0x228] sm:$0xff] %v4278
        %4535 = vst [vmem:[%s436 + $0x230] sm:$0xff] %v4279
        %4536 = vst [vmem:[%s436 + $0x238] sm:$0xff] %v4280
        %4537 = vst [vmem:[%s436 + $0x240] sm:$0xff] %v4281
        %4538 = vst [vmem:[%s436 + $0x248] sm:$0xff] %v4282
        %4539 = vst [vmem:[%s436 + $0x250] sm:$0xff] %v4283
        %4540 = vst [vmem:[%s436 + $0x258] sm:$0xff] %v4284
        %4541 = vst [vmem:[%s436 + $0x260] sm:$0xff] %v4285
        %4542 = vst [vmem:[%s436 + $0x268] sm:$0xff] %v4286
        %4543 = vst [vmem:[%s436 + $0x270] sm:$0xff] %v4287
        %4544 = vst [vmem:[%s436 + $0x278] sm:$0xff] %v4288
        %4545 = vst [vmem:[%s436 + $0x280] sm:$0xff] %v4289
        %4546 = vst [vmem:[%s436 + $0x288] sm:$0xff] %v4290
        %4547 = vst [vmem:[%s436 + $0x290] sm:$0xff] %v4291
        %4548 = vst [vmem:[%s436 + $0x298] sm:$0xff] %v4292
        %4549 = vst [vmem:[%s436 + $0x2a0] sm:$0xff] %v4293
        %4550 = vst [vmem:[%s436 + $0x2a8] sm:$0xff] %v4294
        %4551 = vst [vmem:[%s436 + $0x2b0] sm:$0xff] %v4295
        %4552 = vst [vmem:[%s436 + $0x2b8] sm:$0xff] %v4296
        %4553 = vst [vmem:[%s436 + $0x2c0] sm:$0xff] %v4297
        %4554 = vst [vmem:[%s436 + $0x2c8] sm:$0xff] %v4298
        %4555 = vst [vmem:[%s436 + $0x2d0] sm:$0xff] %v4299
        %4556 = vst [vmem:[%s436 + $0x2d8] sm:$0xff] %v4300
        %4557 = vst [vmem:[%s436 + $0x2e0] sm:$0xff] %v4301
        %4558 = vst [vmem:[%s436 + $0x2e8] sm:$0xff] %v4302
        %4559 = vst [vmem:[%s436 + $0x2f0] sm:$0xff] %v4303
        %4560 = vst [vmem:[%s436 + $0x2f8] sm:$0xff] %v4304
        %4561 = vst [vmem:[%s436 + $0x300] sm:$0xff] %v4305
        %4562 = vst [vmem:[%s436 + $0x308] sm:$0xff] %v4306
        %4563 = vst [vmem:[%s436 + $0x310] sm:$0xff] %v4307
        %4564 = vst [vmem:[%s436 + $0x318] sm:$0xff] %v4308
        %4565 = vst [vmem:[%s436 + $0x320] sm:$0xff] %v4309
        %4566 = vst [vmem:[%s436 + $0x328] sm:$0xff] %v4310
        %4567 = vst [vmem:[%s436 + $0x330] sm:$0xff] %v4311
        %4568 = vst [vmem:[%s436 + $0x338] sm:$0xff] %v4312
        %4569 = vst [vmem:[%s436 + $0x340] sm:$0xff] %v4313
        %4570 = vst [vmem:[%s436 + $0x348] sm:$0xff] %v4314
        %4571 = vst [vmem:[%s436 + $0x350] sm:$0xff] %v4315
        %4572 = vst [vmem:[%s436 + $0x358] sm:$0xff] %v4316
        %4573 = vst [vmem:[%s436 + $0x360] sm:$0xff] %v4317
        %4574 = vst [vmem:[%s436 + $0x368] sm:$0xff] %v4318
        %4575 = vst [vmem:[%s436 + $0x370] sm:$0xff] %v4319
        %4576 = vst [vmem:[%s436 + $0x378] sm:$0xff] %v4320
        %4577 = vst [vmem:[%s436 + $0x380] sm:$0xff] %v4321
        %4578 = vst [vmem:[%s436 + $0x388] sm:$0xff] %v4322
        %4579 = vst [vmem:[%s436 + $0x390] sm:$0xff] %v4323
        %4580 = vst [vmem:[%s436 + $0x398] sm:$0xff] %v4324
        %4581 = vst [vmem:[%s436 + $0x3a0] sm:$0xff] %v4325
        %4582 = vst [vmem:[%s436 + $0x3a8] sm:$0xff] %v4326
        %4583 = vst [vmem:[%s436 + $0x3b0] sm:$0xff] %v4327
        %4584 = vst [vmem:[%s436 + $0x3b8] sm:$0xff] %v4328
        %4585 = vst [vmem:[%s436 + $0x3c0] sm:$0xff] %v4329
        %4586 = vst [vmem:[%s436 + $0x3c8] sm:$0xff] %v4330
        %4587 = vst [vmem:[%s436 + $0x3d0] sm:$0xff] %v4331
        %4588 = vst [vmem:[%s436 + $0x3d8] sm:$0xff] %v4332
        %4589 = vst [vmem:[%s436 + $0x3e0] sm:$0xff] %v4333
        %4590 = vst [vmem:[%s436 + $0x3e8] sm:$0xff] %v4334
        %4591 = vst [vmem:[%s436 + $0x3f0] sm:$0xff] %v4335
        %4592 = vst [vmem:[%s436 + $0x3f8] sm:$0xff] %v4336
        %4593 = vst [vmem:[%s436 + $0x400] sm:$0xff] %v4337
        %4594 = vst [vmem:[%s436 + $0x408] sm:$0xff] %v4338
        %4595 = vst [vmem:[%s436 + $0x410] sm:$0xff] %v4339
        %4596 = vst [vmem:[%s436 + $0x418] sm:$0xff] %v4340
        %4597 = vst [vmem:[%s436 + $0x420] sm:$0xff] %v4341
        %4598 = vst [vmem:[%s436 + $0x428] sm:$0xff] %v4342
        %4599 = vst [vmem:[%s436 + $0x430] sm:$0xff] %v4343
        %4600 = vst [vmem:[%s436 + $0x438] sm:$0xff] %v4344
        %4601 = vst [vmem:[%s436 + $0x440] sm:$0xff] %v4345
        %4602 = vst [vmem:[%s436 + $0x448] sm:$0xff] %v4346
        %4603 = vst [vmem:[%s436 + $0x450] sm:$0xff] %v4347
        %4604 = vst [vmem:[%s436 + $0x458] sm:$0xff] %v4348
        %4605 = vst [vmem:[%s436 + $0x460] sm:$0xff] %v4349
        %4606 = vst [vmem:[%s436 + $0x468] sm:$0xff] %v4350
        %4607 = vst [vmem:[%s436 + $0x470] sm:$0xff] %v4351
        %4608 = vst [vmem:[%s436 + $0x478] sm:$0xff] %v4352
        %4609 = vst [vmem:[%s436 + $0x480] sm:$0xff] %v4353
        %4610 = vst [vmem:[%s436 + $0x488] sm:$0xff] %v4354
        %4611 = vst [vmem:[%s436 + $0x490] sm:$0xff] %v4355
        %4612 = vst [vmem:[%s436 + $0x498] sm:$0xff] %v4356
        %4613 = vst [vmem:[%s436 + $0x4a0] sm:$0xff] %v4357
        %4614 = vst [vmem:[%s436 + $0x4a8] sm:$0xff] %v4358
        %4615 = vst [vmem:[%s436 + $0x4b0] sm:$0xff] %v4359
        %4616 = vst [vmem:[%s436 + $0x4b8] sm:$0xff] %v4360
        %4617 = vst [vmem:[%s436 + $0x4c0] sm:$0xff] %v4361
        %4618 = vst [vmem:[%s436 + $0x4c8] sm:$0xff] %v4362
        %4619 = vst [vmem:[%s436 + $0x4d0] sm:$0xff] %v4363
        %4620 = vst [vmem:[%s436 + $0x4d8] sm:$0xff] %v4364
        %4621 = vst [vmem:[%s436 + $0x4e0] sm:$0xff] %v4365
        %4622 = vst [vmem:[%s436 + $0x4e8] sm:$0xff] %v4366
        %4623 = vst [vmem:[%s436 + $0x4f0] sm:$0xff] %v4367
        %4624 = vst [vmem:[%s436 + $0x4f8] sm:$0xff] %v4368
        %4625 = vst [vmem:[%s436 + $0x500] sm:$0xff] %v4369
        %4626 = vst [vmem:[%s436 + $0x508] sm:$0xff] %v4370
        %4627 = vst [vmem:[%s436 + $0x510] sm:$0xff] %v4371
        %4628 = vst [vmem:[%s436 + $0x518] sm:$0xff] %v4372
        %4629 = vst [vmem:[%s436 + $0x520] sm:$0xff] %v4373
        %4630 = vst [vmem:[%s436 + $0x528] sm:$0xff] %v4374
        %4631 = vst [vmem:[%s436 + $0x530] sm:$0xff] %v4375
        %4632 = vst [vmem:[%s436 + $0x538] sm:$0xff] %v4376
        %4633 = vst [vmem:[%s436 + $0x540] sm:$0xff] %v4377
        %4634 = vst [vmem:[%s436 + $0x548] sm:$0xff] %v4378
        %4635 = vst [vmem:[%s436 + $0x550] sm:$0xff] %v4379
        %4636 = vst [vmem:[%s436 + $0x558] sm:$0xff] %v4380
        %4637 = vst [vmem:[%s436 + $0x560] sm:$0xff] %v4381
        %4638 = vst [vmem:[%s436 + $0x568] sm:$0xff] %v4382
        %4639 = vst [vmem:[%s436 + $0x570] sm:$0xff] %v4383
        %4640 = vst [vmem:[%s436 + $0x578] sm:$0xff] %v4384
        %4641 = vst [vmem:[%s436 + $0x580] sm:$0xff] %v4385
        %4642 = vst [vmem:[%s436 + $0x588] sm:$0xff] %v4386
        %4643 = vst [vmem:[%s436 + $0x590] sm:$0xff] %v4387
        %4644 = vst [vmem:[%s436 + $0x598] sm:$0xff] %v4388
        %4645 = vst [vmem:[%s436 + $0x5a0] sm:$0xff] %v4389
        %4646 = vst [vmem:[%s436 + $0x5a8] sm:$0xff] %v4390
        %4647 = vst [vmem:[%s436 + $0x5b0] sm:$0xff] %v4391
        %4648 = vst [vmem:[%s436 + $0x5b8] sm:$0xff] %v4392
        %4649 = vst [vmem:[%s436 + $0x5c0] sm:$0xff] %v4393
        %4650 = vst [vmem:[%s436 + $0x5c8] sm:$0xff] %v4394
        %4651 = vst [vmem:[%s436 + $0x5d0] sm:$0xff] %v4395
        %4652 = vst [vmem:[%s436 + $0x5d8] sm:$0xff] %v4396
        %4653 = vst [vmem:[%s436 + $0x5e0] sm:$0xff] %v4397
        %4654 = vst [vmem:[%s436 + $0x5e8] sm:$0xff] %v4398
        %4655 = vst [vmem:[%s436 + $0x5f0] sm:$0xff] %v4399
        %4656 = vst [vmem:[%s436 + $0x5f8] sm:$0xff] %v4400
        %4657 = vst [vmem:[%s436 + $0x600] sm:$0xff] %v4401
        %4658 = vst [vmem:[%s436 + $0x608] sm:$0xff] %v4402
        %4659 = vst [vmem:[%s436 + $0x610] sm:$0xff] %v4403
        %4660 = vst [vmem:[%s436 + $0x618] sm:$0xff] %v4404
        %4661 = vst [vmem:[%s436 + $0x620] sm:$0xff] %v4405
        %4662 = vst [vmem:[%s436 + $0x628] sm:$0xff] %v4406
        %4663 = vst [vmem:[%s436 + $0x630] sm:$0xff] %v4407
        %4664 = vst [vmem:[%s436 + $0x638] sm:$0xff] %v4408
        %4665 = vst [vmem:[%s436 + $0x640] sm:$0xff] %v4409
        %4666 = vst [vmem:[%s436 + $0x648] sm:$0xff] %v4410
        %4667 = vst [vmem:[%s436 + $0x650] sm:$0xff] %v4411
        %4668 = vst [vmem:[%s436 + $0x658] sm:$0xff] %v4412
        %4669 = vst [vmem:[%s436 + $0x660] sm:$0xff] %v4413
        %4670 = vst [vmem:[%s436 + $0x668] sm:$0xff] %v4414
        %4671 = vst [vmem:[%s436 + $0x670] sm:$0xff] %v4415
        %4672 = vst [vmem:[%s436 + $0x678] sm:$0xff] %v4416
        %4673 = vst [vmem:[%s436 + $0x680] sm:$0xff] %v4417
        %4674 = vst [vmem:[%s436 + $0x688] sm:$0xff] %v4418
        %4675 = vst [vmem:[%s436 + $0x690] sm:$0xff] %v4419
        %4676 = vst [vmem:[%s436 + $0x698] sm:$0xff] %v4420
        %4677 = vst [vmem:[%s436 + $0x6a0] sm:$0xff] %v4421
        %4678 = vst [vmem:[%s436 + $0x6a8] sm:$0xff] %v4422
        %4679 = vst [vmem:[%s436 + $0x6b0] sm:$0xff] %v4423
        %4680 = vst [vmem:[%s436 + $0x6b8] sm:$0xff] %v4424
        %4681 = vst [vmem:[%s436 + $0x6c0] sm:$0xff] %v4425
        %4682 = vst [vmem:[%s436 + $0x6c8] sm:$0xff] %v4426
        %4683 = vst [vmem:[%s436 + $0x6d0] sm:$0xff] %v4427
        %4684 = vst [vmem:[%s436 + $0x6d8] sm:$0xff] %v4428
        %4685 = vst [vmem:[%s436 + $0x6e0] sm:$0xff] %v4429
        %4686 = vst [vmem:[%s436 + $0x6e8] sm:$0xff] %v4430
        %4687 = vst [vmem:[%s436 + $0x6f0] sm:$0xff] %v4431
        %4688 = vst [vmem:[%s436 + $0x6f8] sm:$0xff] %v4432
        %4689 = vst [vmem:[%s436 + $0x700] sm:$0xff] %v4433
        %4690 = vst [vmem:[%s436 + $0x708] sm:$0xff] %v4434
        %4691 = vst [vmem:[%s436 + $0x710] sm:$0xff] %v4435
        %4692 = vst [vmem:[%s436 + $0x718] sm:$0xff] %v4436
        %4693 = vst [vmem:[%s436 + $0x720] sm:$0xff] %v4437
        %4694 = vst [vmem:[%s436 + $0x728] sm:$0xff] %v4438
        %4695 = vst [vmem:[%s436 + $0x730] sm:$0xff] %v4439
        %4696 = vst [vmem:[%s436 + $0x738] sm:$0xff] %v4440
        %4697 = vst [vmem:[%s436 + $0x740] sm:$0xff] %v4441
        %4698 = vst [vmem:[%s436 + $0x748] sm:$0xff] %v4442
        %4699 = vst [vmem:[%s436 + $0x750] sm:$0xff] %v4443
        %4700 = vst [vmem:[%s436 + $0x758] sm:$0xff] %v4444
        %4701 = vst [vmem:[%s436 + $0x760] sm:$0xff] %v4445
        %4702 = vst [vmem:[%s436 + $0x768] sm:$0xff] %v4446
        %4703 = vst [vmem:[%s436 + $0x770] sm:$0xff] %v4447
        %4704 = vst [vmem:[%s436 + $0x778] sm:$0xff] %v4448
        %4705 = vst [vmem:[%s436 + $0x780] sm:$0xff] %v4449
        %4706 = vst [vmem:[%s436 + $0x788] sm:$0xff] %v4450
        %4707 = vst [vmem:[%s436 + $0x790] sm:$0xff] %v4451
        %4708 = vst [vmem:[%s436 + $0x798] sm:$0xff] %v4452
        %4709 = vst [vmem:[%s436 + $0x7a0] sm:$0xff] %v4453
        %4710 = vst [vmem:[%s436 + $0x7a8] sm:$0xff] %v4454
        %4711 = vst [vmem:[%s436 + $0x7b0] sm:$0xff] %v4455
        %4712 = vst [vmem:[%s436 + $0x7b8] sm:$0xff] %v4456
        %4713 = vst [vmem:[%s436 + $0x7c0] sm:$0xff] %v4457
        %4714 = vst [vmem:[%s436 + $0x7c8] sm:$0xff] %v4458
        %4715 = vst [vmem:[%s436 + $0x7d0] sm:$0xff] %v4459
        %4716 = vst [vmem:[%s436 + $0x7d8] sm:$0xff] %v4460
        %4717 = vst [vmem:[%s436 + $0x7e0] sm:$0xff] %v4461
        %4718 = vst [vmem:[%s436 + $0x7e8] sm:$0xff] %v4462
        %4719 = vst [vmem:[%s436 + $0x7f0] sm:$0xff] %v4463
        %4720 = vst [vmem:[%s436 + $0x7f8] sm:$0xff] %v4464
        %v4721 = vmax.f32 %v2903, %v3232
        %v4722 = vmax.f32 %v2905, %v3234
        %v4723 = vmax.f32 %v2908, %v3237
        %v4724 = vmax.f32 %v2910, %v3239
        %v4725 = vmax.f32 %v2913, %v3242
        %v4726 = vmax.f32 %v2915, %v3244
        %v4727 = vmax.f32 %v2918, %v3247
        %v4728 = vmax.f32 %v2920, %v3249
        %v4729 = vmax.f32 %v2923, %v3252
        %v4730 = vmax.f32 %v2925, %v3254
        %v4731 = vmax.f32 %v2928, %v3257
        %v4732 = vmax.f32 %v2930, %v3259
        %v4733 = vmax.f32 %v2933, %v3262
        %v4734 = vmax.f32 %v2935, %v3264
        %v4735 = vmax.f32 %v2938, %v3267
        %v4736 = vmax.f32 %v2940, %v3269
        %v4737 = vmax.f32 %v2943, %v3272
        %v4738 = vmax.f32 %v2945, %v3274
        %v4739 = vmax.f32 %v2948, %v3277
        %v4740 = vmax.f32 %v2950, %v3279
        %v4741 = vmax.f32 %v2953, %v3282
        %v4742 = vmax.f32 %v2955, %v3284
        %v4743 = vmax.f32 %v2958, %v3287
        %v4744 = vmax.f32 %v2960, %v3289
        %v4745 = vmax.f32 %v2963, %v3292
        %v4746 = vmax.f32 %v2965, %v3294
        %v4747 = vmax.f32 %v2968, %v3297
        %v4748 = vmax.f32 %v2970, %v3299
        %v4749 = vmax.f32 %v2973, %v3302
        %v4750 = vmax.f32 %v2975, %v3304
        %v4751 = vmax.f32 %v2978, %v3307
        %v4752 = vmax.f32 %v2980, %v3309
        %v4753 = vmax.f32 %v2983, %v3312
        %v4754 = vmax.f32 %v2985, %v3314
        %v4755 = vmax.f32 %v2988, %v3317
        %v4756 = vmax.f32 %v2990, %v3319
        %v4757 = vmax.f32 %v2993, %v3322
        %v4758 = vmax.f32 %v2995, %v3324
        %v4759 = vmax.f32 %v2998, %v3327
        %v4760 = vmax.f32 %v3000, %v3329
        %v4761 = vmax.f32 %v3003, %v3332
        %v4762 = vmax.f32 %v3005, %v3334
        %v4763 = vmax.f32 %v3008, %v3337
        %v4764 = vmax.f32 %v3010, %v3339
        %v4765 = vmax.f32 %v3013, %v3342
        %v4766 = vmax.f32 %v3015, %v3344
        %v4767 = vmax.f32 %v3018, %v3347
        %v4768 = vmax.f32 %v3020, %v3349
        %v4769 = vmax.f32 %v3023, %v3352
        %v4770 = vmax.f32 %v3025, %v3354
        %v4771 = vmax.f32 %v3028, %v3357
        %v4772 = vmax.f32 %v3030, %v3359
        %v4773 = vmax.f32 %v3033, %v3362
        %v4774 = vmax.f32 %v3035, %v3364
        %v4775 = vmax.f32 %v3038, %v3367
        %v4776 = vmax.f32 %v3040, %v3369
        %v4777 = vmax.f32 %v3043, %v3372
        %v4778 = vmax.f32 %v3045, %v3374
        %v4779 = vmax.f32 %v3048, %v3377
        %v4780 = vmax.f32 %v3050, %v3379
        %v4781 = vmax.f32 %v3053, %v3382
        %v4782 = vmax.f32 %v3055, %v3384
        %v4783 = vmax.f32 %v3058, %v3387
        %v4784 = vmax.f32 %v3060, %v3389
        %v4785 = vmax.f32 %v3063, %v3392
        %v4786 = vmax.f32 %v3065, %v3394
        %v4787 = vmax.f32 %v3068, %v3397
        %v4788 = vmax.f32 %v3070, %v3399
        %v4789 = vmax.f32 %v3073, %v3402
        %v4790 = vmax.f32 %v3075, %v3404
        %v4791 = vmax.f32 %v3078, %v3407
        %v4792 = vmax.f32 %v3080, %v3409
        %v4793 = vmax.f32 %v3083, %v3412
        %v4794 = vmax.f32 %v3085, %v3414
        %v4795 = vmax.f32 %v3088, %v3417
        %v4796 = vmax.f32 %v3090, %v3419
        %v4797 = vmax.f32 %v3093, %v3422
        %v4798 = vmax.f32 %v3095, %v3424
        %v4799 = vmax.f32 %v3098, %v3427
        %v4800 = vmax.f32 %v3100, %v3429
        %v4801 = vmax.f32 %v3103, %v3432
        %v4802 = vmax.f32 %v3105, %v3434
        %v4803 = vmax.f32 %v3108, %v3437
        %v4804 = vmax.f32 %v3110, %v3439
        %v4805 = vmax.f32 %v3113, %v3442
        %v4806 = vmax.f32 %v3115, %v3444
        %v4807 = vmax.f32 %v3118, %v3447
        %v4808 = vmax.f32 %v3120, %v3449
        %v4809 = vmax.f32 %v3123, %v3452
        %v4810 = vmax.f32 %v3125, %v3454
        %v4811 = vmax.f32 %v3128, %v3457
        %v4812 = vmax.f32 %v3130, %v3459
        %v4813 = vmax.f32 %v3133, %v3462
        %v4814 = vmax.f32 %v3135, %v3464
        %v4815 = vmax.f32 %v3138, %v3467
        %v4816 = vmax.f32 %v3140, %v3469
        %v4817 = vmax.f32 %v3143, %v3472
        %v4818 = vmax.f32 %v3145, %v3474
        %v4819 = vmax.f32 %v3148, %v3477
        %v4820 = vmax.f32 %v3150, %v3479
        %v4821 = vmax.f32 %v3153, %v3482
        %v4822 = vmax.f32 %v3155, %v3484
        %v4823 = vmax.f32 %v3158, %v3487
        %v4824 = vmax.f32 %v3160, %v3489
        %v4825 = vmax.f32 %v3163, %v3492
        %v4826 = vmax.f32 %v3165, %v3494
        %v4827 = vmax.f32 %v3168, %v3497
        %v4828 = vmax.f32 %v3170, %v3499
        %v4829 = vmax.f32 %v3173, %v3502
        %v4830 = vmax.f32 %v3175, %v3504
        %v4831 = vmax.f32 %v3178, %v3507
        %v4832 = vmax.f32 %v3180, %v3509
        %v4833 = vmax.f32 %v3183, %v3512
        %v4834 = vmax.f32 %v3185, %v3514
        %v4835 = vmax.f32 %v3188, %v3517
        %v4836 = vmax.f32 %v3190, %v3519
        %v4837 = vmax.f32 %v3193, %v3522
        %v4838 = vmax.f32 %v3195, %v3524
        %v4839 = vmax.f32 %v3198, %v3527
        %v4840 = vmax.f32 %v3200, %v3529
        %v4841 = vmax.f32 %v3203, %v3532
        %v4842 = vmax.f32 %v3205, %v3534
        %v4843 = vmax.f32 %v3208, %v3537
        %v4844 = vmax.f32 %v3210, %v3539
        %v4845 = vmax.f32 %v3213, %v3542
        %v4846 = vmax.f32 %v3215, %v3544
        %v4847 = vmax.f32 %v3218, %v3547
        %v4848 = vmax.f32 %v3220, %v3549
        %v4849 = vmax.f32 %v4721, %v3561
        %v4850 = vmax.f32 %v4722, %v3563
        %v4851 = vmax.f32 %v4723, %v3566
        %v4852 = vmax.f32 %v4724, %v3568
        %v4853 = vmax.f32 %v4725, %v3571
        %v4854 = vmax.f32 %v4726, %v3573
        %v4855 = vmax.f32 %v4727, %v3576
        %v4856 = vmax.f32 %v4728, %v3578
        %v4857 = vmax.f32 %v4729, %v3581
        %v4858 = vmax.f32 %v4730, %v3583
        %v4859 = vmax.f32 %v4731, %v3586
        %v4860 = vmax.f32 %v4732, %v3588
        %v4861 = vmax.f32 %v4733, %v3591
        %v4862 = vmax.f32 %v4734, %v3593
        %v4863 = vmax.f32 %v4735, %v3596
        %v4864 = vmax.f32 %v4736, %v3598
        %v4865 = vmax.f32 %v4737, %v3601
        %v4866 = vmax.f32 %v4738, %v3603
        %v4867 = vmax.f32 %v4739, %v3606
        %v4868 = vmax.f32 %v4740, %v3608
        %v4869 = vmax.f32 %v4741, %v3611
        %v4870 = vmax.f32 %v4742, %v3613
        %v4871 = vmax.f32 %v4743, %v3616
        %v4872 = vmax.f32 %v4744, %v3618
        %v4873 = vmax.f32 %v4745, %v3621
        %v4874 = vmax.f32 %v4746, %v3623
        %v4875 = vmax.f32 %v4747, %v3626
        %v4876 = vmax.f32 %v4748, %v3628
        %v4877 = vmax.f32 %v4749, %v3631
        %v4878 = vmax.f32 %v4750, %v3633
        %v4879 = vmax.f32 %v4751, %v3636
        %v4880 = vmax.f32 %v4752, %v3638
        %v4881 = vmax.f32 %v4753, %v3641
        %v4882 = vmax.f32 %v4754, %v3643
        %v4883 = vmax.f32 %v4755, %v3646
        %v4884 = vmax.f32 %v4756, %v3648
        %v4885 = vmax.f32 %v4757, %v3651
        %v4886 = vmax.f32 %v4758, %v3653
        %v4887 = vmax.f32 %v4759, %v3656
        %v4888 = vmax.f32 %v4760, %v3658
        %v4889 = vmax.f32 %v4761, %v3661
        %v4890 = vmax.f32 %v4762, %v3663
        %v4891 = vmax.f32 %v4763, %v3666
        %v4892 = vmax.f32 %v4764, %v3668
        %v4893 = vmax.f32 %v4765, %v3671
        %v4894 = vmax.f32 %v4766, %v3673
        %v4895 = vmax.f32 %v4767, %v3676
        %v4896 = vmax.f32 %v4768, %v3678
        %v4897 = vmax.f32 %v4769, %v3681
        %v4898 = vmax.f32 %v4770, %v3683
        %v4899 = vmax.f32 %v4771, %v3686
        %v4900 = vmax.f32 %v4772, %v3688
        %v4901 = vmax.f32 %v4773, %v3691
        %v4902 = vmax.f32 %v4774, %v3693
        %v4903 = vmax.f32 %v4775, %v3696
        %v4904 = vmax.f32 %v4776, %v3698
        %v4905 = vmax.f32 %v4777, %v3701
        %v4906 = vmax.f32 %v4778, %v3703
        %v4907 = vmax.f32 %v4779, %v3706
        %v4908 = vmax.f32 %v4780, %v3708
        %v4909 = vmax.f32 %v4781, %v3711
        %v4910 = vmax.f32 %v4782, %v3713
        %v4911 = vmax.f32 %v4783, %v3716
        %v4912 = vmax.f32 %v4784, %v3718
        %v4913 = vmax.f32 %v4785, %v3721
        %v4914 = vmax.f32 %v4786, %v3723
        %v4915 = vmax.f32 %v4787, %v3726
        %v4916 = vmax.f32 %v4788, %v3728
        %v4917 = vmax.f32 %v4789, %v3731
        %v4918 = vmax.f32 %v4790, %v3733
        %v4919 = vmax.f32 %v4791, %v3736
        %v4920 = vmax.f32 %v4792, %v3738
        %v4921 = vmax.f32 %v4793, %v3741
        %v4922 = vmax.f32 %v4794, %v3743
        %v4923 = vmax.f32 %v4795, %v3746
        %v4924 = vmax.f32 %v4796, %v3748
        %v4925 = vmax.f32 %v4797, %v3751
        %v4926 = vmax.f32 %v4798, %v3753
        %v4927 = vmax.f32 %v4799, %v3756
        %v4928 = vmax.f32 %v4800, %v3758
        %v4929 = vmax.f32 %v4801, %v3761
        %v4930 = vmax.f32 %v4802, %v3763
        %v4931 = vmax.f32 %v4803, %v3766
        %v4932 = vmax.f32 %v4804, %v3768
        %v4933 = vmax.f32 %v4805, %v3771
        %v4934 = vmax.f32 %v4806, %v3773
        %v4935 = vmax.f32 %v4807, %v3776
        %v4936 = vmax.f32 %v4808, %v3778
        %v4937 = vmax.f32 %v4809, %v3781
        %v4938 = vmax.f32 %v4810, %v3783
        %v4939 = vmax.f32 %v4811, %v3786
        %v4940 = vmax.f32 %v4812, %v3788
        %v4941 = vmax.f32 %v4813, %v3791
        %v4942 = vmax.f32 %v4814, %v3793
        %v4943 = vmax.f32 %v4815, %v3796
        %v4944 = vmax.f32 %v4816, %v3798
        %v4945 = vmax.f32 %v4817, %v3801
        %v4946 = vmax.f32 %v4818, %v3803
        %v4947 = vmax.f32 %v4819, %v3806
        %v4948 = vmax.f32 %v4820, %v3808
        %v4949 = vmax.f32 %v4821, %v3811
        %v4950 = vmax.f32 %v4822, %v3813
        %v4951 = vmax.f32 %v4823, %v3816
        %v4952 = vmax.f32 %v4824, %v3818
        %v4953 = vmax.f32 %v4825, %v3821
        %v4954 = vmax.f32 %v4826, %v3823
        %v4955 = vmax.f32 %v4827, %v3826
        %v4956 = vmax.f32 %v4828, %v3828
        %v4957 = vmax.f32 %v4829, %v3831
        %v4958 = vmax.f32 %v4830, %v3833
        %v4959 = vmax.f32 %v4831, %v3836
        %v4960 = vmax.f32 %v4832, %v3838
        %v4961 = vmax.f32 %v4833, %v3841
        %v4962 = vmax.f32 %v4834, %v3843
        %v4963 = vmax.f32 %v4835, %v3846
        %v4964 = vmax.f32 %v4836, %v3848
        %v4965 = vmax.f32 %v4837, %v3851
        %v4966 = vmax.f32 %v4838, %v3853
        %v4967 = vmax.f32 %v4839, %v3856
        %v4968 = vmax.f32 %v4840, %v3858
        %v4969 = vmax.f32 %v4841, %v3861
        %v4970 = vmax.f32 %v4842, %v3863
        %v4971 = vmax.f32 %v4843, %v3866
        %v4972 = vmax.f32 %v4844, %v3868
        %v4973 = vmax.f32 %v4845, %v3871
        %v4974 = vmax.f32 %v4846, %v3873
        %v4975 = vmax.f32 %v4847, %v3876
        %v4976 = vmax.f32 %v4848, %v3878
        %v4977 = vmax.f32 %v4849, %v3890
        %v4978 = vmax.f32 %v4850, %v3892
        %v4979 = vmax.f32 %v4851, %v3895
        %v4980 = vmax.f32 %v4852, %v3897
        %v4981 = vmax.f32 %v4853, %v3900
        %v4982 = vmax.f32 %v4854, %v3902
        %v4983 = vmax.f32 %v4855, %v3905
        %v4984 = vmax.f32 %v4856, %v3907
        %v4985 = vmax.f32 %v4857, %v3910
        %v4986 = vmax.f32 %v4858, %v3912
        %v4987 = vmax.f32 %v4859, %v3915
        %v4988 = vmax.f32 %v4860, %v3917
        %v4989 = vmax.f32 %v4861, %v3920
        %v4990 = vmax.f32 %v4862, %v3922
        %v4991 = vmax.f32 %v4863, %v3925
        %v4992 = vmax.f32 %v4864, %v3927
        %v4993 = vmax.f32 %v4865, %v3930
        %v4994 = vmax.f32 %v4866, %v3932
        %v4995 = vmax.f32 %v4867, %v3935
        %v4996 = vmax.f32 %v4868, %v3937
        %v4997 = vmax.f32 %v4869, %v3940
        %v4998 = vmax.f32 %v4870, %v3942
        %v4999 = vmax.f32 %v4871, %v3945
        %v5000 = vmax.f32 %v4872, %v3947
        %v5001 = vmax.f32 %v4873, %v3950
        %v5002 = vmax.f32 %v4874, %v3952
        %v5003 = vmax.f32 %v4875, %v3955
        %v5004 = vmax.f32 %v4876, %v3957
        %v5005 = vmax.f32 %v4877, %v3960
        %v5006 = vmax.f32 %v4878, %v3962
        %v5007 = vmax.f32 %v4879, %v3965
        %v5008 = vmax.f32 %v4880, %v3967
        %v5009 = vmax.f32 %v4881, %v3970
        %v5010 = vmax.f32 %v4882, %v3972
        %v5011 = vmax.f32 %v4883, %v3975
        %v5012 = vmax.f32 %v4884, %v3977
        %v5013 = vmax.f32 %v4885, %v3980
        %v5014 = vmax.f32 %v4886, %v3982
        %v5015 = vmax.f32 %v4887, %v3985
        %v5016 = vmax.f32 %v4888, %v3987
        %v5017 = vmax.f32 %v4889, %v3990
        %v5018 = vmax.f32 %v4890, %v3992
        %v5019 = vmax.f32 %v4891, %v3995
        %v5020 = vmax.f32 %v4892, %v3997
        %v5021 = vmax.f32 %v4893, %v4000
        %v5022 = vmax.f32 %v4894, %v4002
        %v5023 = vmax.f32 %v4895, %v4005
        %v5024 = vmax.f32 %v4896, %v4007
        %v5025 = vmax.f32 %v4897, %v4010
        %v5026 = vmax.f32 %v4898, %v4012
        %v5027 = vmax.f32 %v4899, %v4015
        %v5028 = vmax.f32 %v4900, %v4017
        %v5029 = vmax.f32 %v4901, %v4020
        %v5030 = vmax.f32 %v4902, %v4022
        %v5031 = vmax.f32 %v4903, %v4025
        %v5032 = vmax.f32 %v4904, %v4027
        %v5033 = vmax.f32 %v4905, %v4030
        %v5034 = vmax.f32 %v4906, %v4032
        %v5035 = vmax.f32 %v4907, %v4035
        %v5036 = vmax.f32 %v4908, %v4037
        %v5037 = vmax.f32 %v4909, %v4040
        %v5038 = vmax.f32 %v4910, %v4042
        %v5039 = vmax.f32 %v4911, %v4045
        %v5040 = vmax.f32 %v4912, %v4047
        %v5041 = vmax.f32 %v4913, %v4050
        %v5042 = vmax.f32 %v4914, %v4052
        %v5043 = vmax.f32 %v4915, %v4055
        %v5044 = vmax.f32 %v4916, %v4057
        %v5045 = vmax.f32 %v4917, %v4060
        %v5046 = vmax.f32 %v4918, %v4062
        %v5047 = vmax.f32 %v4919, %v4065
        %v5048 = vmax.f32 %v4920, %v4067
        %v5049 = vmax.f32 %v4921, %v4070
        %v5050 = vmax.f32 %v4922, %v4072
        %v5051 = vmax.f32 %v4923, %v4075
        %v5052 = vmax.f32 %v4924, %v4077
        %v5053 = vmax.f32 %v4925, %v4080
        %v5054 = vmax.f32 %v4926, %v4082
        %v5055 = vmax.f32 %v4927, %v4085
        %v5056 = vmax.f32 %v4928, %v4087
        %v5057 = vmax.f32 %v4929, %v4090
        %v5058 = vmax.f32 %v4930, %v4092
        %v5059 = vmax.f32 %v4931, %v4095
        %v5060 = vmax.f32 %v4932, %v4097
        %v5061 = vmax.f32 %v4933, %v4100
        %v5062 = vmax.f32 %v4934, %v4102
        %v5063 = vmax.f32 %v4935, %v4105
        %v5064 = vmax.f32 %v4936, %v4107
        %v5065 = vmax.f32 %v4937, %v4110
        %v5066 = vmax.f32 %v4938, %v4112
        %v5067 = vmax.f32 %v4939, %v4115
        %v5068 = vmax.f32 %v4940, %v4117
        %v5069 = vmax.f32 %v4941, %v4120
        %v5070 = vmax.f32 %v4942, %v4122
        %v5071 = vmax.f32 %v4943, %v4125
        %v5072 = vmax.f32 %v4944, %v4127
        %v5073 = vmax.f32 %v4945, %v4130
        %v5074 = vmax.f32 %v4946, %v4132
        %v5075 = vmax.f32 %v4947, %v4135
        %v5076 = vmax.f32 %v4948, %v4137
        %v5077 = vmax.f32 %v4949, %v4140
        %v5078 = vmax.f32 %v4950, %v4142
        %v5079 = vmax.f32 %v4951, %v4145
        %v5080 = vmax.f32 %v4952, %v4147
        %v5081 = vmax.f32 %v4953, %v4150
        %v5082 = vmax.f32 %v4954, %v4152
        %v5083 = vmax.f32 %v4955, %v4155
        %v5084 = vmax.f32 %v4956, %v4157
        %v5085 = vmax.f32 %v4957, %v4160
        %v5086 = vmax.f32 %v4958, %v4162
        %v5087 = vmax.f32 %v4959, %v4165
        %v5088 = vmax.f32 %v4960, %v4167
        %v5089 = vmax.f32 %v4961, %v4170
        %v5090 = vmax.f32 %v4962, %v4172
        %v5091 = vmax.f32 %v4963, %v4175
        %v5092 = vmax.f32 %v4964, %v4177
        %v5093 = vmax.f32 %v4965, %v4180
        %v5094 = vmax.f32 %v4966, %v4182
        %v5095 = vmax.f32 %v4967, %v4185
        %v5096 = vmax.f32 %v4968, %v4187
        %v5097 = vmax.f32 %v4969, %v4190
        %v5098 = vmax.f32 %v4970, %v4192
        %v5099 = vmax.f32 %v4971, %v4195
        %v5100 = vmax.f32 %v4972, %v4197
        %v5101 = vmax.f32 %v4973, %v4200
        %v5102 = vmax.f32 %v4974, %v4202
        %v5103 = vmax.f32 %v4975, %v4205
        %v5104 = vmax.f32 %v4976, %v4207
        %v5105 = vld [vmem:[#allocation2] sm:$0xff]
        %v5106 = vld [vmem:[#allocation2 + $0x8] sm:$0xff]
        %v5107 = vld [vmem:[#allocation2 + $0x10] sm:$0xff]
        %v5108 = vld [vmem:[#allocation2 + $0x18] sm:$0xff]
        %v5109 = vld [vmem:[#allocation2 + $0x20] sm:$0xff]
        %v5110 = vld [vmem:[#allocation2 + $0x28] sm:$0xff]
        %v5111 = vld [vmem:[#allocation2 + $0x30] sm:$0xff]
        %v5112 = vld [vmem:[#allocation2 + $0x38] sm:$0xff]
        %v5113 = vld [vmem:[#allocation2 + $0x40] sm:$0xff]
        %v5114 = vld [vmem:[#allocation2 + $0x48] sm:$0xff]
        %v5115 = vld [vmem:[#allocation2 + $0x50] sm:$0xff]
        %v5116 = vld [vmem:[#allocation2 + $0x58] sm:$0xff]
        %v5117 = vld [vmem:[#allocation2 + $0x60] sm:$0xff]
        %v5118 = vld [vmem:[#allocation2 + $0x68] sm:$0xff]
        %v5119 = vld [vmem:[#allocation2 + $0x70] sm:$0xff]
        %v5120 = vld [vmem:[#allocation2 + $0x78] sm:$0xff]
        %v5121 = vld [vmem:[#allocation2 + $0x80] sm:$0xff]
        %v5122 = vld [vmem:[#allocation2 + $0x88] sm:$0xff]
        %v5123 = vld [vmem:[#allocation2 + $0x90] sm:$0xff]
        %v5124 = vld [vmem:[#allocation2 + $0x98] sm:$0xff]
        %v5125 = vld [vmem:[#allocation2 + $0xa0] sm:$0xff]
        %v5126 = vld [vmem:[#allocation2 + $0xa8] sm:$0xff]
        %v5127 = vld [vmem:[#allocation2 + $0xb0] sm:$0xff]
        %v5128 = vld [vmem:[#allocation2 + $0xb8] sm:$0xff]
        %v5129 = vld [vmem:[#allocation2 + $0xc0] sm:$0xff]
        %v5130 = vld [vmem:[#allocation2 + $0xc8] sm:$0xff]
        %v5131 = vld [vmem:[#allocation2 + $0xd0] sm:$0xff]
        %v5132 = vld [vmem:[#allocation2 + $0xd8] sm:$0xff]
        %v5133 = vld [vmem:[#allocation2 + $0xe0] sm:$0xff]
        %v5134 = vld [vmem:[#allocation2 + $0xe8] sm:$0xff]
        %v5135 = vld [vmem:[#allocation2 + $0xf0] sm:$0xff]
        %v5136 = vld [vmem:[#allocation2 + $0xf8] sm:$0xff]
        %v5137 = vld [vmem:[#allocation2 + $0x100] sm:$0xff]
        %v5138 = vld [vmem:[#allocation2 + $0x108] sm:$0xff]
        %v5139 = vld [vmem:[#allocation2 + $0x110] sm:$0xff]
        %v5140 = vld [vmem:[#allocation2 + $0x118] sm:$0xff]
        %v5141 = vld [vmem:[#allocation2 + $0x120] sm:$0xff]
        %v5142 = vld [vmem:[#allocation2 + $0x128] sm:$0xff]
        %v5143 = vld [vmem:[#allocation2 + $0x130] sm:$0xff]
        %v5144 = vld [vmem:[#allocation2 + $0x138] sm:$0xff]
        %v5145 = vld [vmem:[#allocation2 + $0x140] sm:$0xff]
        %v5146 = vld [vmem:[#allocation2 + $0x148] sm:$0xff]
        %v5147 = vld [vmem:[#allocation2 + $0x150] sm:$0xff]
        %v5148 = vld [vmem:[#allocation2 + $0x158] sm:$0xff]
        %v5149 = vld [vmem:[#allocation2 + $0x160] sm:$0xff]
        %v5150 = vld [vmem:[#allocation2 + $0x168] sm:$0xff]
        %v5151 = vld [vmem:[#allocation2 + $0x170] sm:$0xff]
        %v5152 = vld [vmem:[#allocation2 + $0x178] sm:$0xff]
        %v5153 = vld [vmem:[#allocation2 + $0x180] sm:$0xff]
        %v5154 = vld [vmem:[#allocation2 + $0x188] sm:$0xff]
        %v5155 = vld [vmem:[#allocation2 + $0x190] sm:$0xff]
        %v5156 = vld [vmem:[#allocation2 + $0x198] sm:$0xff]
        %v5157 = vld [vmem:[#allocation2 + $0x1a0] sm:$0xff]
        %v5158 = vld [vmem:[#allocation2 + $0x1a8] sm:$0xff]
        %v5159 = vld [vmem:[#allocation2 + $0x1b0] sm:$0xff]
        %v5160 = vld [vmem:[#allocation2 + $0x1b8] sm:$0xff]
        %v5161 = vld [vmem:[#allocation2 + $0x1c0] sm:$0xff]
        %v5162 = vld [vmem:[#allocation2 + $0x1c8] sm:$0xff]
        %v5163 = vld [vmem:[#allocation2 + $0x1d0] sm:$0xff]
        %v5164 = vld [vmem:[#allocation2 + $0x1d8] sm:$0xff]
        %v5165 = vld [vmem:[#allocation2 + $0x1e0] sm:$0xff]
        %v5166 = vld [vmem:[#allocation2 + $0x1e8] sm:$0xff]
        %v5167 = vld [vmem:[#allocation2 + $0x1f0] sm:$0xff]
        %v5168 = vld [vmem:[#allocation2 + $0x1f8] sm:$0xff]
        %v5169 = vld [vmem:[#allocation2 + $0x200] sm:$0xff]
        %v5170 = vld [vmem:[#allocation2 + $0x208] sm:$0xff]
        %v5171 = vld [vmem:[#allocation2 + $0x210] sm:$0xff]
        %v5172 = vld [vmem:[#allocation2 + $0x218] sm:$0xff]
        %v5173 = vld [vmem:[#allocation2 + $0x220] sm:$0xff]
        %v5174 = vld [vmem:[#allocation2 + $0x228] sm:$0xff]
        %v5175 = vld [vmem:[#allocation2 + $0x230] sm:$0xff]
        %v5176 = vld [vmem:[#allocation2 + $0x238] sm:$0xff]
        %v5177 = vld [vmem:[#allocation2 + $0x240] sm:$0xff]
        %v5178 = vld [vmem:[#allocation2 + $0x248] sm:$0xff]
        %v5179 = vld [vmem:[#allocation2 + $0x250] sm:$0xff]
        %v5180 = vld [vmem:[#allocation2 + $0x258] sm:$0xff]
        %v5181 = vld [vmem:[#allocation2 + $0x260] sm:$0xff]
        %v5182 = vld [vmem:[#allocation2 + $0x268] sm:$0xff]
        %v5183 = vld [vmem:[#allocation2 + $0x270] sm:$0xff]
        %v5184 = vld [vmem:[#allocation2 + $0x278] sm:$0xff]
        %v5185 = vld [vmem:[#allocation2 + $0x280] sm:$0xff]
        %v5186 = vld [vmem:[#allocation2 + $0x288] sm:$0xff]
        %v5187 = vld [vmem:[#allocation2 + $0x290] sm:$0xff]
        %v5188 = vld [vmem:[#allocation2 + $0x298] sm:$0xff]
        %v5189 = vld [vmem:[#allocation2 + $0x2a0] sm:$0xff]
        %v5190 = vld [vmem:[#allocation2 + $0x2a8] sm:$0xff]
        %v5191 = vld [vmem:[#allocation2 + $0x2b0] sm:$0xff]
        %v5192 = vld [vmem:[#allocation2 + $0x2b8] sm:$0xff]
        %v5193 = vld [vmem:[#allocation2 + $0x2c0] sm:$0xff]
        %v5194 = vld [vmem:[#allocation2 + $0x2c8] sm:$0xff]
        %v5195 = vld [vmem:[#allocation2 + $0x2d0] sm:$0xff]
        %v5196 = vld [vmem:[#allocation2 + $0x2d8] sm:$0xff]
        %v5197 = vld [vmem:[#allocation2 + $0x2e0] sm:$0xff]
        %v5198 = vld [vmem:[#allocation2 + $0x2e8] sm:$0xff]
        %v5199 = vld [vmem:[#allocation2 + $0x2f0] sm:$0xff]
        %v5200 = vld [vmem:[#allocation2 + $0x2f8] sm:$0xff]
        %v5201 = vld [vmem:[#allocation2 + $0x300] sm:$0xff]
        %v5202 = vld [vmem:[#allocation2 + $0x308] sm:$0xff]
        %v5203 = vld [vmem:[#allocation2 + $0x310] sm:$0xff]
        %v5204 = vld [vmem:[#allocation2 + $0x318] sm:$0xff]
        %v5205 = vld [vmem:[#allocation2 + $0x320] sm:$0xff]
        %v5206 = vld [vmem:[#allocation2 + $0x328] sm:$0xff]
        %v5207 = vld [vmem:[#allocation2 + $0x330] sm:$0xff]
        %v5208 = vld [vmem:[#allocation2 + $0x338] sm:$0xff]
        %v5209 = vld [vmem:[#allocation2 + $0x340] sm:$0xff]
        %v5210 = vld [vmem:[#allocation2 + $0x348] sm:$0xff]
        %v5211 = vld [vmem:[#allocation2 + $0x350] sm:$0xff]
        %v5212 = vld [vmem:[#allocation2 + $0x358] sm:$0xff]
        %v5213 = vld [vmem:[#allocation2 + $0x360] sm:$0xff]
        %v5214 = vld [vmem:[#allocation2 + $0x368] sm:$0xff]
        %v5215 = vld [vmem:[#allocation2 + $0x370] sm:$0xff]
        %v5216 = vld [vmem:[#allocation2 + $0x378] sm:$0xff]
        %v5217 = vld [vmem:[#allocation2 + $0x380] sm:$0xff]
        %v5218 = vld [vmem:[#allocation2 + $0x388] sm:$0xff]
        %v5219 = vld [vmem:[#allocation2 + $0x390] sm:$0xff]
        %v5220 = vld [vmem:[#allocation2 + $0x398] sm:$0xff]
        %v5221 = vld [vmem:[#allocation2 + $0x3a0] sm:$0xff]
        %v5222 = vld [vmem:[#allocation2 + $0x3a8] sm:$0xff]
        %v5223 = vld [vmem:[#allocation2 + $0x3b0] sm:$0xff]
        %v5224 = vld [vmem:[#allocation2 + $0x3b8] sm:$0xff]
        %v5225 = vld [vmem:[#allocation2 + $0x3c0] sm:$0xff]
        %v5226 = vld [vmem:[#allocation2 + $0x3c8] sm:$0xff]
        %v5227 = vld [vmem:[#allocation2 + $0x3d0] sm:$0xff]
        %v5228 = vld [vmem:[#allocation2 + $0x3d8] sm:$0xff]
        %v5229 = vld [vmem:[#allocation2 + $0x3e0] sm:$0xff]
        %v5230 = vld [vmem:[#allocation2 + $0x3e8] sm:$0xff]
        %v5231 = vld [vmem:[#allocation2 + $0x3f0] sm:$0xff]
        %v5232 = vld [vmem:[#allocation2 + $0x3f8] sm:$0xff]
        %v5233 = vmax.f32 %v5105, %v4977
        %v5234 = vmax.f32 %v5106, %v4978
        %v5235 = vmax.f32 %v5107, %v4979
        %v5236 = vmax.f32 %v5108, %v4980
        %v5237 = vmax.f32 %v5109, %v4981
        %v5238 = vmax.f32 %v5110, %v4982
        %v5239 = vmax.f32 %v5111, %v4983
        %v5240 = vmax.f32 %v5112, %v4984
        %v5241 = vmax.f32 %v5113, %v4985
        %v5242 = vmax.f32 %v5114, %v4986
        %v5243 = vmax.f32 %v5115, %v4987
        %v5244 = vmax.f32 %v5116, %v4988
        %v5245 = vmax.f32 %v5117, %v4989
        %v5246 = vmax.f32 %v5118, %v4990
        %v5247 = vmax.f32 %v5119, %v4991
        %v5248 = vmax.f32 %v5120, %v4992
        %v5249 = vmax.f32 %v5121, %v4993
        %v5250 = vmax.f32 %v5122, %v4994
        %v5251 = vmax.f32 %v5123, %v4995
        %v5252 = vmax.f32 %v5124, %v4996
        %v5253 = vmax.f32 %v5125, %v4997
        %v5254 = vmax.f32 %v5126, %v4998
        %v5255 = vmax.f32 %v5127, %v4999
        %v5256 = vmax.f32 %v5128, %v5000
        %v5257 = vmax.f32 %v5129, %v5001
        %v5258 = vmax.f32 %v5130, %v5002
        %v5259 = vmax.f32 %v5131, %v5003
        %v5260 = vmax.f32 %v5132, %v5004
        %v5261 = vmax.f32 %v5133, %v5005
        %v5262 = vmax.f32 %v5134, %v5006
        %v5263 = vmax.f32 %v5135, %v5007
        %v5264 = vmax.f32 %v5136, %v5008
        %v5265 = vmax.f32 %v5137, %v5009
        %v5266 = vmax.f32 %v5138, %v5010
        %v5267 = vmax.f32 %v5139, %v5011
        %v5268 = vmax.f32 %v5140, %v5012
        %v5269 = vmax.f32 %v5141, %v5013
        %v5270 = vmax.f32 %v5142, %v5014
        %v5271 = vmax.f32 %v5143, %v5015
        %v5272 = vmax.f32 %v5144, %v5016
        %v5273 = vmax.f32 %v5145, %v5017
        %v5274 = vmax.f32 %v5146, %v5018
        %v5275 = vmax.f32 %v5147, %v5019
        %v5276 = vmax.f32 %v5148, %v5020
        %v5277 = vmax.f32 %v5149, %v5021
        %v5278 = vmax.f32 %v5150, %v5022
        %v5279 = vmax.f32 %v5151, %v5023
        %v5280 = vmax.f32 %v5152, %v5024
        %v5281 = vmax.f32 %v5153, %v5025
        %v5282 = vmax.f32 %v5154, %v5026
        %v5283 = vmax.f32 %v5155, %v5027
        %v5284 = vmax.f32 %v5156, %v5028
        %v5285 = vmax.f32 %v5157, %v5029
        %v5286 = vmax.f32 %v5158, %v5030
        %v5287 = vmax.f32 %v5159, %v5031
        %v5288 = vmax.f32 %v5160, %v5032
        %v5289 = vmax.f32 %v5161, %v5033
        %v5290 = vmax.f32 %v5162, %v5034
        %v5291 = vmax.f32 %v5163, %v5035
        %v5292 = vmax.f32 %v5164, %v5036
        %v5293 = vmax.f32 %v5165, %v5037
        %v5294 = vmax.f32 %v5166, %v5038
        %v5295 = vmax.f32 %v5167, %v5039
        %v5296 = vmax.f32 %v5168, %v5040
        %v5297 = vmax.f32 %v5169, %v5041
        %v5298 = vmax.f32 %v5170, %v5042
        %v5299 = vmax.f32 %v5171, %v5043
        %v5300 = vmax.f32 %v5172, %v5044
        %v5301 = vmax.f32 %v5173, %v5045
        %v5302 = vmax.f32 %v5174, %v5046
        %v5303 = vmax.f32 %v5175, %v5047
        %v5304 = vmax.f32 %v5176, %v5048
        %v5305 = vmax.f32 %v5177, %v5049
        %v5306 = vmax.f32 %v5178, %v5050
        %v5307 = vmax.f32 %v5179, %v5051
        %v5308 = vmax.f32 %v5180, %v5052
        %v5309 = vmax.f32 %v5181, %v5053
        %v5310 = vmax.f32 %v5182, %v5054
        %v5311 = vmax.f32 %v5183, %v5055
        %v5312 = vmax.f32 %v5184, %v5056
        %v5313 = vmax.f32 %v5185, %v5057
        %v5314 = vmax.f32 %v5186, %v5058
        %v5315 = vmax.f32 %v5187, %v5059
        %v5316 = vmax.f32 %v5188, %v5060
        %v5317 = vmax.f32 %v5189, %v5061
        %v5318 = vmax.f32 %v5190, %v5062
        %v5319 = vmax.f32 %v5191, %v5063
        %v5320 = vmax.f32 %v5192, %v5064
        %v5321 = vmax.f32 %v5193, %v5065
        %v5322 = vmax.f32 %v5194, %v5066
        %v5323 = vmax.f32 %v5195, %v5067
        %v5324 = vmax.f32 %v5196, %v5068
        %v5325 = vmax.f32 %v5197, %v5069
        %v5326 = vmax.f32 %v5198, %v5070
        %v5327 = vmax.f32 %v5199, %v5071
        %v5328 = vmax.f32 %v5200, %v5072
        %v5329 = vmax.f32 %v5201, %v5073
        %v5330 = vmax.f32 %v5202, %v5074
        %v5331 = vmax.f32 %v5203, %v5075
        %v5332 = vmax.f32 %v5204, %v5076
        %v5333 = vmax.f32 %v5205, %v5077
        %v5334 = vmax.f32 %v5206, %v5078
        %v5335 = vmax.f32 %v5207, %v5079
        %v5336 = vmax.f32 %v5208, %v5080
        %v5337 = vmax.f32 %v5209, %v5081
        %v5338 = vmax.f32 %v5210, %v5082
        %v5339 = vmax.f32 %v5211, %v5083
        %v5340 = vmax.f32 %v5212, %v5084
        %v5341 = vmax.f32 %v5213, %v5085
        %v5342 = vmax.f32 %v5214, %v5086
        %v5343 = vmax.f32 %v5215, %v5087
        %v5344 = vmax.f32 %v5216, %v5088
        %v5345 = vmax.f32 %v5217, %v5089
        %v5346 = vmax.f32 %v5218, %v5090
        %v5347 = vmax.f32 %v5219, %v5091
        %v5348 = vmax.f32 %v5220, %v5092
        %v5349 = vmax.f32 %v5221, %v5093
        %v5350 = vmax.f32 %v5222, %v5094
        %v5351 = vmax.f32 %v5223, %v5095
        %v5352 = vmax.f32 %v5224, %v5096
        %v5353 = vmax.f32 %v5225, %v5097
        %v5354 = vmax.f32 %v5226, %v5098
        %v5355 = vmax.f32 %v5227, %v5099
        %v5356 = vmax.f32 %v5228, %v5100
        %v5357 = vmax.f32 %v5229, %v5101
        %v5358 = vmax.f32 %v5230, %v5102
        %v5359 = vmax.f32 %v5231, %v5103
        %v5360 = vmax.f32 %v5232, %v5104
        %5361 = vst [vmem:[#allocation2] sm:$0xff] %v5233
        %5362 = vst [vmem:[#allocation2 + $0x8] sm:$0xff] %v5234
        %5363 = vst [vmem:[#allocation2 + $0x10] sm:$0xff] %v5235
        %5364 = vst [vmem:[#allocation2 + $0x18] sm:$0xff] %v5236
        %5365 = vst [vmem:[#allocation2 + $0x20] sm:$0xff] %v5237
        %5366 = vst [vmem:[#allocation2 + $0x28] sm:$0xff] %v5238
        %5367 = vst [vmem:[#allocation2 + $0x30] sm:$0xff] %v5239
        %5368 = vst [vmem:[#allocation2 + $0x38] sm:$0xff] %v5240
        %5369 = vst [vmem:[#allocation2 + $0x40] sm:$0xff] %v5241
        %5370 = vst [vmem:[#allocation2 + $0x48] sm:$0xff] %v5242
        %5371 = vst [vmem:[#allocation2 + $0x50] sm:$0xff] %v5243
        %5372 = vst [vmem:[#allocation2 + $0x58] sm:$0xff] %v5244
        %5373 = vst [vmem:[#allocation2 + $0x60] sm:$0xff] %v5245
        %5374 = vst [vmem:[#allocation2 + $0x68] sm:$0xff] %v5246
        %5375 = vst [vmem:[#allocation2 + $0x70] sm:$0xff] %v5247
        %5376 = vst [vmem:[#allocation2 + $0x78] sm:$0xff] %v5248
        %5377 = vst [vmem:[#allocation2 + $0x80] sm:$0xff] %v5249
        %5378 = vst [vmem:[#allocation2 + $0x88] sm:$0xff] %v5250
        %5379 = vst [vmem:[#allocation2 + $0x90] sm:$0xff] %v5251
        %5380 = vst [vmem:[#allocation2 + $0x98] sm:$0xff] %v5252
        %5381 = vst [vmem:[#allocation2 + $0xa0] sm:$0xff] %v5253
        %5382 = vst [vmem:[#allocation2 + $0xa8] sm:$0xff] %v5254
        %5383 = vst [vmem:[#allocation2 + $0xb0] sm:$0xff] %v5255
        %5384 = vst [vmem:[#allocation2 + $0xb8] sm:$0xff] %v5256
        %5385 = vst [vmem:[#allocation2 + $0xc0] sm:$0xff] %v5257
        %5386 = vst [vmem:[#allocation2 + $0xc8] sm:$0xff] %v5258
        %5387 = vst [vmem:[#allocation2 + $0xd0] sm:$0xff] %v5259
        %5388 = vst [vmem:[#allocation2 + $0xd8] sm:$0xff] %v5260
        %5389 = vst [vmem:[#allocation2 + $0xe0] sm:$0xff] %v5261
        %5390 = vst [vmem:[#allocation2 + $0xe8] sm:$0xff] %v5262
        %5391 = vst [vmem:[#allocation2 + $0xf0] sm:$0xff] %v5263
        %5392 = vst [vmem:[#allocation2 + $0xf8] sm:$0xff] %v5264
        %5393 = vst [vmem:[#allocation2 + $0x100] sm:$0xff] %v5265
        %5394 = vst [vmem:[#allocation2 + $0x108] sm:$0xff] %v5266
        %5395 = vst [vmem:[#allocation2 + $0x110] sm:$0xff] %v5267
        %5396 = vst [vmem:[#allocation2 + $0x118] sm:$0xff] %v5268
        %5397 = vst [vmem:[#allocation2 + $0x120] sm:$0xff] %v5269
        %5398 = vst [vmem:[#allocation2 + $0x128] sm:$0xff] %v5270
        %5399 = vst [vmem:[#allocation2 + $0x130] sm:$0xff] %v5271
        %5400 = vst [vmem:[#allocation2 + $0x138] sm:$0xff] %v5272
        %5401 = vst [vmem:[#allocation2 + $0x140] sm:$0xff] %v5273
        %5402 = vst [vmem:[#allocation2 + $0x148] sm:$0xff] %v5274
        %5403 = vst [vmem:[#allocation2 + $0x150] sm:$0xff] %v5275
        %5404 = vst [vmem:[#allocation2 + $0x158] sm:$0xff] %v5276
        %5405 = vst [vmem:[#allocation2 + $0x160] sm:$0xff] %v5277
        %5406 = vst [vmem:[#allocation2 + $0x168] sm:$0xff] %v5278
        %5407 = vst [vmem:[#allocation2 + $0x170] sm:$0xff] %v5279
        %5408 = vst [vmem:[#allocation2 + $0x178] sm:$0xff] %v5280
        %5409 = vst [vmem:[#allocation2 + $0x180] sm:$0xff] %v5281
        %5410 = vst [vmem:[#allocation2 + $0x188] sm:$0xff] %v5282
        %5411 = vst [vmem:[#allocation2 + $0x190] sm:$0xff] %v5283
        %5412 = vst [vmem:[#allocation2 + $0x198] sm:$0xff] %v5284
        %5413 = vst [vmem:[#allocation2 + $0x1a0] sm:$0xff] %v5285
        %5414 = vst [vmem:[#allocation2 + $0x1a8] sm:$0xff] %v5286
        %5415 = vst [vmem:[#allocation2 + $0x1b0] sm:$0xff] %v5287
        %5416 = vst [vmem:[#allocation2 + $0x1b8] sm:$0xff] %v5288
        %5417 = vst [vmem:[#allocation2 + $0x1c0] sm:$0xff] %v5289
        %5418 = vst [vmem:[#allocation2 + $0x1c8] sm:$0xff] %v5290
        %5419 = vst [vmem:[#allocation2 + $0x1d0] sm:$0xff] %v5291
        %5420 = vst [vmem:[#allocation2 + $0x1d8] sm:$0xff] %v5292
        %5421 = vst [vmem:[#allocation2 + $0x1e0] sm:$0xff] %v5293
        %5422 = vst [vmem:[#allocation2 + $0x1e8] sm:$0xff] %v5294
        %5423 = vst [vmem:[#allocation2 + $0x1f0] sm:$0xff] %v5295
        %5424 = vst [vmem:[#allocation2 + $0x1f8] sm:$0xff] %v5296
        %5425 = vst [vmem:[#allocation2 + $0x200] sm:$0xff] %v5297
        %5426 = vst [vmem:[#allocation2 + $0x208] sm:$0xff] %v5298
        %5427 = vst [vmem:[#allocation2 + $0x210] sm:$0xff] %v5299
        %5428 = vst [vmem:[#allocation2 + $0x218] sm:$0xff] %v5300
        %5429 = vst [vmem:[#allocation2 + $0x220] sm:$0xff] %v5301
        %5430 = vst [vmem:[#allocation2 + $0x228] sm:$0xff] %v5302
        %5431 = vst [vmem:[#allocation2 + $0x230] sm:$0xff] %v5303
        %5432 = vst [vmem:[#allocation2 + $0x238] sm:$0xff] %v5304
        %5433 = vst [vmem:[#allocation2 + $0x240] sm:$0xff] %v5305
        %5434 = vst [vmem:[#allocation2 + $0x248] sm:$0xff] %v5306
        %5435 = vst [vmem:[#allocation2 + $0x250] sm:$0xff] %v5307
        %5436 = vst [vmem:[#allocation2 + $0x258] sm:$0xff] %v5308
        %5437 = vst [vmem:[#allocation2 + $0x260] sm:$0xff] %v5309
        %5438 = vst [vmem:[#allocation2 + $0x268] sm:$0xff] %v5310
        %5439 = vst [vmem:[#allocation2 + $0x270] sm:$0xff] %v5311
        %5440 = vst [vmem:[#allocation2 + $0x278] sm:$0xff] %v5312
        %5441 = vst [vmem:[#allocation2 + $0x280] sm:$0xff] %v5313
        %5442 = vst [vmem:[#allocation2 + $0x288] sm:$0xff] %v5314
        %5443 = vst [vmem:[#allocation2 + $0x290] sm:$0xff] %v5315
        %5444 = vst [vmem:[#allocation2 + $0x298] sm:$0xff] %v5316
        %5445 = vst [vmem:[#allocation2 + $0x2a0] sm:$0xff] %v5317
        %5446 = vst [vmem:[#allocation2 + $0x2a8] sm:$0xff] %v5318
        %5447 = vst [vmem:[#allocation2 + $0x2b0] sm:$0xff] %v5319
        %5448 = vst [vmem:[#allocation2 + $0x2b8] sm:$0xff] %v5320
        %5449 = vst [vmem:[#allocation2 + $0x2c0] sm:$0xff] %v5321
        %5450 = vst [vmem:[#allocation2 + $0x2c8] sm:$0xff] %v5322
        %5451 = vst [vmem:[#allocation2 + $0x2d0] sm:$0xff] %v5323
        %5452 = vst [vmem:[#allocation2 + $0x2d8] sm:$0xff] %v5324
        %5453 = vst [vmem:[#allocation2 + $0x2e0] sm:$0xff] %v5325
        %5454 = vst [vmem:[#allocation2 + $0x2e8] sm:$0xff] %v5326
        %5455 = vst [vmem:[#allocation2 + $0x2f0] sm:$0xff] %v5327
        %5456 = vst [vmem:[#allocation2 + $0x2f8] sm:$0xff] %v5328
        %5457 = vst [vmem:[#allocation2 + $0x300] sm:$0xff] %v5329
        %5458 = vst [vmem:[#allocation2 + $0x308] sm:$0xff] %v5330
        %5459 = vst [vmem:[#allocation2 + $0x310] sm:$0xff] %v5331
        %5460 = vst [vmem:[#allocation2 + $0x318] sm:$0xff] %v5332
        %5461 = vst [vmem:[#allocation2 + $0x320] sm:$0xff] %v5333
        %5462 = vst [vmem:[#allocation2 + $0x328] sm:$0xff] %v5334
        %5463 = vst [vmem:[#allocation2 + $0x330] sm:$0xff] %v5335
        %5464 = vst [vmem:[#allocation2 + $0x338] sm:$0xff] %v5336
        %5465 = vst [vmem:[#allocation2 + $0x340] sm:$0xff] %v5337
        %5466 = vst [vmem:[#allocation2 + $0x348] sm:$0xff] %v5338
        %5467 = vst [vmem:[#allocation2 + $0x350] sm:$0xff] %v5339
        %5468 = vst [vmem:[#allocation2 + $0x358] sm:$0xff] %v5340
        %5469 = vst [vmem:[#allocation2 + $0x360] sm:$0xff] %v5341
        %5470 = vst [vmem:[#allocation2 + $0x368] sm:$0xff] %v5342
        %5471 = vst [vmem:[#allocation2 + $0x370] sm:$0xff] %v5343
        %5472 = vst [vmem:[#allocation2 + $0x378] sm:$0xff] %v5344
        %5473 = vst [vmem:[#allocation2 + $0x380] sm:$0xff] %v5345
        %5474 = vst [vmem:[#allocation2 + $0x388] sm:$0xff] %v5346
        %5475 = vst [vmem:[#allocation2 + $0x390] sm:$0xff] %v5347
        %5476 = vst [vmem:[#allocation2 + $0x398] sm:$0xff] %v5348
        %5477 = vst [vmem:[#allocation2 + $0x3a0] sm:$0xff] %v5349
        %5478 = vst [vmem:[#allocation2 + $0x3a8] sm:$0xff] %v5350
        %5479 = vst [vmem:[#allocation2 + $0x3b0] sm:$0xff] %v5351
        %5480 = vst [vmem:[#allocation2 + $0x3b8] sm:$0xff] %v5352
        %5481 = vst [vmem:[#allocation2 + $0x3c0] sm:$0xff] %v5353
        %5482 = vst [vmem:[#allocation2 + $0x3c8] sm:$0xff] %v5354
        %5483 = vst [vmem:[#allocation2 + $0x3d0] sm:$0xff] %v5355
        %5484 = vst [vmem:[#allocation2 + $0x3d8] sm:$0xff] %v5356
        %5485 = vst [vmem:[#allocation2 + $0x3e0] sm:$0xff] %v5357
        %5486 = vst [vmem:[#allocation2 + $0x3e8] sm:$0xff] %v5358
        %5487 = vst [vmem:[#allocation2 + $0x3f0] sm:$0xff] %v5359
        %5488 = vst [vmem:[#allocation2 + $0x3f8] sm:$0xff] %v5360
        // Predicated region
        $region57: #{tpu_custom_call.1} parent=47 // pred_check
          %p5489 = pneg %p476
        $region58: #{tpu_custom_call.1} parent=47 // pred_check_branch
          %5491 = sbr.rel (%p5489) target = $region60
        $region59: #{tpu_custom_call.1} parent=47 // pred_region
          %v5492 = vld [vmem:[#allocation2] sm:$0xff]
          %v5493 = vld [vmem:[#allocation2 + $0x8] sm:$0xff]
          %v5494 = vld [vmem:[#allocation2 + $0x10] sm:$0xff]
          %v5495 = vld [vmem:[#allocation2 + $0x18] sm:$0xff]
          %v5496 = vld [vmem:[#allocation2 + $0x20] sm:$0xff]
          %v5497 = vld [vmem:[#allocation2 + $0x28] sm:$0xff]
          %v5498 = vld [vmem:[#allocation2 + $0x30] sm:$0xff]
          %v5499 = vld [vmem:[#allocation2 + $0x38] sm:$0xff]
          %v5500 = vld [vmem:[#allocation2 + $0x40] sm:$0xff]
          %v5501 = vld [vmem:[#allocation2 + $0x48] sm:$0xff]
          %v5502 = vld [vmem:[#allocation2 + $0x50] sm:$0xff]
          %v5503 = vld [vmem:[#allocation2 + $0x58] sm:$0xff]
          %v5504 = vld [vmem:[#allocation2 + $0x60] sm:$0xff]
          %v5505 = vld [vmem:[#allocation2 + $0x68] sm:$0xff]
          %v5506 = vld [vmem:[#allocation2 + $0x70] sm:$0xff]
          %v5507 = vld [vmem:[#allocation2 + $0x78] sm:$0xff]
          %v5508 = vld [vmem:[#allocation2 + $0x80] sm:$0xff]
          %v5509 = vld [vmem:[#allocation2 + $0x88] sm:$0xff]
          %v5510 = vld [vmem:[#allocation2 + $0x90] sm:$0xff]
          %v5511 = vld [vmem:[#allocation2 + $0x98] sm:$0xff]
          %v5512 = vld [vmem:[#allocation2 + $0xa0] sm:$0xff]
          %v5513 = vld [vmem:[#allocation2 + $0xa8] sm:$0xff]
          %v5514 = vld [vmem:[#allocation2 + $0xb0] sm:$0xff]
          %v5515 = vld [vmem:[#allocation2 + $0xb8] sm:$0xff]
          %v5516 = vld [vmem:[#allocation2 + $0xc0] sm:$0xff]
          %v5517 = vld [vmem:[#allocation2 + $0xc8] sm:$0xff]
          %v5518 = vld [vmem:[#allocation2 + $0xd0] sm:$0xff]
          %v5519 = vld [vmem:[#allocation2 + $0xd8] sm:$0xff]
          %v5520 = vld [vmem:[#allocation2 + $0xe0] sm:$0xff]
          %v5521 = vld [vmem:[#allocation2 + $0xe8] sm:$0xff]
          %v5522 = vld [vmem:[#allocation2 + $0xf0] sm:$0xff]
          %v5523 = vld [vmem:[#allocation2 + $0xf8] sm:$0xff]
          %v5524 = vld [vmem:[#allocation2 + $0x100] sm:$0xff]
          %v5525 = vld [vmem:[#allocation2 + $0x108] sm:$0xff]
          %v5526 = vld [vmem:[#allocation2 + $0x110] sm:$0xff]
          %v5527 = vld [vmem:[#allocation2 + $0x118] sm:$0xff]
          %v5528 = vld [vmem:[#allocation2 + $0x120] sm:$0xff]
          %v5529 = vld [vmem:[#allocation2 + $0x128] sm:$0xff]
          %v5530 = vld [vmem:[#allocation2 + $0x130] sm:$0xff]
          %v5531 = vld [vmem:[#allocation2 + $0x138] sm:$0xff]
          %v5532 = vld [vmem:[#allocation2 + $0x140] sm:$0xff]
          %v5533 = vld [vmem:[#allocation2 + $0x148] sm:$0xff]
          %v5534 = vld [vmem:[#allocation2 + $0x150] sm:$0xff]
          %v5535 = vld [vmem:[#allocation2 + $0x158] sm:$0xff]
          %v5536 = vld [vmem:[#allocation2 + $0x160] sm:$0xff]
          %v5537 = vld [vmem:[#allocation2 + $0x168] sm:$0xff]
          %v5538 = vld [vmem:[#allocation2 + $0x170] sm:$0xff]
          %v5539 = vld [vmem:[#allocation2 + $0x178] sm:$0xff]
          %v5540 = vld [vmem:[#allocation2 + $0x180] sm:$0xff]
          %v5541 = vld [vmem:[#allocation2 + $0x188] sm:$0xff]
          %v5542 = vld [vmem:[#allocation2 + $0x190] sm:$0xff]
          %v5543 = vld [vmem:[#allocation2 + $0x198] sm:$0xff]
          %v5544 = vld [vmem:[#allocation2 + $0x1a0] sm:$0xff]
          %v5545 = vld [vmem:[#allocation2 + $0x1a8] sm:$0xff]
          %v5546 = vld [vmem:[#allocation2 + $0x1b0] sm:$0xff]
          %v5547 = vld [vmem:[#allocation2 + $0x1b8] sm:$0xff]
          %v5548 = vld [vmem:[#allocation2 + $0x1c0] sm:$0xff]
          %v5549 = vld [vmem:[#allocation2 + $0x1c8] sm:$0xff]
          %v5550 = vld [vmem:[#allocation2 + $0x1d0] sm:$0xff]
          %v5551 = vld [vmem:[#allocation2 + $0x1d8] sm:$0xff]
          %v5552 = vld [vmem:[#allocation2 + $0x1e0] sm:$0xff]
          %v5553 = vld [vmem:[#allocation2 + $0x1e8] sm:$0xff]
          %v5554 = vld [vmem:[#allocation2 + $0x1f0] sm:$0xff]
          %v5555 = vld [vmem:[#allocation2 + $0x1f8] sm:$0xff]
          %v5556 = vld [vmem:[#allocation2 + $0x200] sm:$0xff]
          %v5557 = vld [vmem:[#allocation2 + $0x208] sm:$0xff]
          %v5558 = vld [vmem:[#allocation2 + $0x210] sm:$0xff]
          %v5559 = vld [vmem:[#allocation2 + $0x218] sm:$0xff]
          %v5560 = vld [vmem:[#allocation2 + $0x220] sm:$0xff]
          %v5561 = vld [vmem:[#allocation2 + $0x228] sm:$0xff]
          %v5562 = vld [vmem:[#allocation2 + $0x230] sm:$0xff]
          %v5563 = vld [vmem:[#allocation2 + $0x238] sm:$0xff]
          %v5564 = vld [vmem:[#allocation2 + $0x240] sm:$0xff]
          %v5565 = vld [vmem:[#allocation2 + $0x248] sm:$0xff]
          %v5566 = vld [vmem:[#allocation2 + $0x250] sm:$0xff]
          %v5567 = vld [vmem:[#allocation2 + $0x258] sm:$0xff]
          %v5568 = vld [vmem:[#allocation2 + $0x260] sm:$0xff]
          %v5569 = vld [vmem:[#allocation2 + $0x268] sm:$0xff]
          %v5570 = vld [vmem:[#allocation2 + $0x270] sm:$0xff]
          %v5571 = vld [vmem:[#allocation2 + $0x278] sm:$0xff]
          %v5572 = vld [vmem:[#allocation2 + $0x280] sm:$0xff]
          %v5573 = vld [vmem:[#allocation2 + $0x288] sm:$0xff]
          %v5574 = vld [vmem:[#allocation2 + $0x290] sm:$0xff]
          %v5575 = vld [vmem:[#allocation2 + $0x298] sm:$0xff]
          %v5576 = vld [vmem:[#allocation2 + $0x2a0] sm:$0xff]
          %v5577 = vld [vmem:[#allocation2 + $0x2a8] sm:$0xff]
          %v5578 = vld [vmem:[#allocation2 + $0x2b0] sm:$0xff]
          %v5579 = vld [vmem:[#allocation2 + $0x2b8] sm:$0xff]
          %v5580 = vld [vmem:[#allocation2 + $0x2c0] sm:$0xff]
          %v5581 = vld [vmem:[#allocation2 + $0x2c8] sm:$0xff]
          %v5582 = vld [vmem:[#allocation2 + $0x2d0] sm:$0xff]
          %v5583 = vld [vmem:[#allocation2 + $0x2d8] sm:$0xff]
          %v5584 = vld [vmem:[#allocation2 + $0x2e0] sm:$0xff]
          %v5585 = vld [vmem:[#allocation2 + $0x2e8] sm:$0xff]
          %v5586 = vld [vmem:[#allocation2 + $0x2f0] sm:$0xff]
          %v5587 = vld [vmem:[#allocation2 + $0x2f8] sm:$0xff]
          %v5588 = vld [vmem:[#allocation2 + $0x300] sm:$0xff]
          %v5589 = vld [vmem:[#allocation2 + $0x308] sm:$0xff]
          %v5590 = vld [vmem:[#allocation2 + $0x310] sm:$0xff]
          %v5591 = vld [vmem:[#allocation2 + $0x318] sm:$0xff]
          %v5592 = vld [vmem:[#allocation2 + $0x320] sm:$0xff]
          %v5593 = vld [vmem:[#allocation2 + $0x328] sm:$0xff]
          %v5594 = vld [vmem:[#allocation2 + $0x330] sm:$0xff]
          %v5595 = vld [vmem:[#allocation2 + $0x338] sm:$0xff]
          %v5596 = vld [vmem:[#allocation2 + $0x340] sm:$0xff]
          %v5597 = vld [vmem:[#allocation2 + $0x348] sm:$0xff]
          %v5598 = vld [vmem:[#allocation2 + $0x350] sm:$0xff]
          %v5599 = vld [vmem:[#allocation2 + $0x358] sm:$0xff]
          %v5600 = vld [vmem:[#allocation2 + $0x360] sm:$0xff]
          %v5601 = vld [vmem:[#allocation2 + $0x368] sm:$0xff]
          %v5602 = vld [vmem:[#allocation2 + $0x370] sm:$0xff]
          %v5603 = vld [vmem:[#allocation2 + $0x378] sm:$0xff]
          %v5604 = vld [vmem:[#allocation2 + $0x380] sm:$0xff]
          %v5605 = vld [vmem:[#allocation2 + $0x388] sm:$0xff]
          %v5606 = vld [vmem:[#allocation2 + $0x390] sm:$0xff]
          %v5607 = vld [vmem:[#allocation2 + $0x398] sm:$0xff]
          %v5608 = vld [vmem:[#allocation2 + $0x3a0] sm:$0xff]
          %v5609 = vld [vmem:[#allocation2 + $0x3a8] sm:$0xff]
          %v5610 = vld [vmem:[#allocation2 + $0x3b0] sm:$0xff]
          %v5611 = vld [vmem:[#allocation2 + $0x3b8] sm:$0xff]
          %v5612 = vld [vmem:[#allocation2 + $0x3c0] sm:$0xff]
          %v5613 = vld [vmem:[#allocation2 + $0x3c8] sm:$0xff]
          %v5614 = vld [vmem:[#allocation2 + $0x3d0] sm:$0xff]
          %v5615 = vld [vmem:[#allocation2 + $0x3d8] sm:$0xff]
          %v5616 = vld [vmem:[#allocation2 + $0x3e0] sm:$0xff]
          %v5617 = vld [vmem:[#allocation2 + $0x3e8] sm:$0xff]
          %v5618 = vld [vmem:[#allocation2 + $0x3f0] sm:$0xff]
          %v5619 = vld [vmem:[#allocation2 + $0x3f8] sm:$0xff]
          %5620 = vmax.xlane.f32.xlu0 %v5492
          %v5621 = vpop.xlane.xlu0 %5620
          %5622 = vmax.xlane.f32.xlu0 %v5493
          %v5623 = vpop.xlane.xlu0 %5622
          %5624 = vmax.xlane.f32.xlu0 %v5494
          %v5625 = vpop.xlane.xlu0 %5624
          %5626 = vmax.xlane.f32.xlu0 %v5495
          %v5627 = vpop.xlane.xlu0 %5626
          %5628 = vmax.xlane.f32.xlu0 %v5496
          %v5629 = vpop.xlane.xlu0 %5628
          %5630 = vmax.xlane.f32.xlu0 %v5497
          %v5631 = vpop.xlane.xlu0 %5630
          %5632 = vmax.xlane.f32.xlu0 %v5498
          %v5633 = vpop.xlane.xlu0 %5632
          %5634 = vmax.xlane.f32.xlu0 %v5499
          %v5635 = vpop.xlane.xlu0 %5634
          %5636 = vmax.xlane.f32.xlu0 %v5500
          %v5637 = vpop.xlane.xlu0 %5636
          %5638 = vmax.xlane.f32.xlu0 %v5501
          %v5639 = vpop.xlane.xlu0 %5638
          %5640 = vmax.xlane.f32.xlu0 %v5502
          %v5641 = vpop.xlane.xlu0 %5640
          %5642 = vmax.xlane.f32.xlu0 %v5503
          %v5643 = vpop.xlane.xlu0 %5642
          %5644 = vmax.xlane.f32.xlu0 %v5504
          %v5645 = vpop.xlane.xlu0 %5644
          %5646 = vmax.xlane.f32.xlu0 %v5505
          %v5647 = vpop.xlane.xlu0 %5646
          %5648 = vmax.xlane.f32.xlu0 %v5506
          %v5649 = vpop.xlane.xlu0 %5648
          %5650 = vmax.xlane.f32.xlu0 %v5507
          %v5651 = vpop.xlane.xlu0 %5650
          %5652 = vmax.xlane.f32.xlu0 %v5508
          %v5653 = vpop.xlane.xlu0 %5652
          %5654 = vmax.xlane.f32.xlu0 %v5509
          %v5655 = vpop.xlane.xlu0 %5654
          %5656 = vmax.xlane.f32.xlu0 %v5510
          %v5657 = vpop.xlane.xlu0 %5656
          %5658 = vmax.xlane.f32.xlu0 %v5511
          %v5659 = vpop.xlane.xlu0 %5658
          %5660 = vmax.xlane.f32.xlu0 %v5512
          %v5661 = vpop.xlane.xlu0 %5660
          %5662 = vmax.xlane.f32.xlu0 %v5513
          %v5663 = vpop.xlane.xlu0 %5662
          %5664 = vmax.xlane.f32.xlu0 %v5514
          %v5665 = vpop.xlane.xlu0 %5664
          %5666 = vmax.xlane.f32.xlu0 %v5515
          %v5667 = vpop.xlane.xlu0 %5666
          %5668 = vmax.xlane.f32.xlu0 %v5516
          %v5669 = vpop.xlane.xlu0 %5668
          %5670 = vmax.xlane.f32.xlu0 %v5517
          %v5671 = vpop.xlane.xlu0 %5670
          %5672 = vmax.xlane.f32.xlu0 %v5518
          %v5673 = vpop.xlane.xlu0 %5672
          %5674 = vmax.xlane.f32.xlu0 %v5519
          %v5675 = vpop.xlane.xlu0 %5674
          %5676 = vmax.xlane.f32.xlu0 %v5520
          %v5677 = vpop.xlane.xlu0 %5676
          %5678 = vmax.xlane.f32.xlu0 %v5521
          %v5679 = vpop.xlane.xlu0 %5678
          %5680 = vmax.xlane.f32.xlu0 %v5522
          %v5681 = vpop.xlane.xlu0 %5680
          %5682 = vmax.xlane.f32.xlu0 %v5523
          %v5683 = vpop.xlane.xlu0 %5682
          %5684 = vmax.xlane.f32.xlu0 %v5524
          %v5685 = vpop.xlane.xlu0 %5684
          %5686 = vmax.xlane.f32.xlu0 %v5525
          %v5687 = vpop.xlane.xlu0 %5686
          %5688 = vmax.xlane.f32.xlu0 %v5526
          %v5689 = vpop.xlane.xlu0 %5688
          %5690 = vmax.xlane.f32.xlu0 %v5527
          %v5691 = vpop.xlane.xlu0 %5690
          %5692 = vmax.xlane.f32.xlu0 %v5528
          %v5693 = vpop.xlane.xlu0 %5692
          %5694 = vmax.xlane.f32.xlu0 %v5529
          %v5695 = vpop.xlane.xlu0 %5694
          %5696 = vmax.xlane.f32.xlu0 %v5530
          %v5697 = vpop.xlane.xlu0 %5696
          %5698 = vmax.xlane.f32.xlu0 %v5531
          %v5699 = vpop.xlane.xlu0 %5698
          %5700 = vmax.xlane.f32.xlu0 %v5532
          %v5701 = vpop.xlane.xlu0 %5700
          %5702 = vmax.xlane.f32.xlu0 %v5533
          %v5703 = vpop.xlane.xlu0 %5702
          %5704 = vmax.xlane.f32.xlu0 %v5534
          %v5705 = vpop.xlane.xlu0 %5704
          %5706 = vmax.xlane.f32.xlu0 %v5535
          %v5707 = vpop.xlane.xlu0 %5706
          %5708 = vmax.xlane.f32.xlu0 %v5536
          %v5709 = vpop.xlane.xlu0 %5708
          %5710 = vmax.xlane.f32.xlu0 %v5537
          %v5711 = vpop.xlane.xlu0 %5710
          %5712 = vmax.xlane.f32.xlu0 %v5538
          %v5713 = vpop.xlane.xlu0 %5712
          %5714 = vmax.xlane.f32.xlu0 %v5539
          %v5715 = vpop.xlane.xlu0 %5714
          %5716 = vmax.xlane.f32.xlu0 %v5540
          %v5717 = vpop.xlane.xlu0 %5716
          %5718 = vmax.xlane.f32.xlu0 %v5541
          %v5719 = vpop.xlane.xlu0 %5718
          %5720 = vmax.xlane.f32.xlu0 %v5542
          %v5721 = vpop.xlane.xlu0 %5720
          %5722 = vmax.xlane.f32.xlu0 %v5543
          %v5723 = vpop.xlane.xlu0 %5722
          %5724 = vmax.xlane.f32.xlu0 %v5544
          %v5725 = vpop.xlane.xlu0 %5724
          %5726 = vmax.xlane.f32.xlu0 %v5545
          %v5727 = vpop.xlane.xlu0 %5726
          %5728 = vmax.xlane.f32.xlu0 %v5546
          %v5729 = vpop.xlane.xlu0 %5728
          %5730 = vmax.xlane.f32.xlu0 %v5547
          %v5731 = vpop.xlane.xlu0 %5730
          %5732 = vmax.xlane.f32.xlu0 %v5548
          %v5733 = vpop.xlane.xlu0 %5732
          %5734 = vmax.xlane.f32.xlu0 %v5549
          %v5735 = vpop.xlane.xlu0 %5734
          %5736 = vmax.xlane.f32.xlu0 %v5550
          %v5737 = vpop.xlane.xlu0 %5736
          %5738 = vmax.xlane.f32.xlu0 %v5551
          %v5739 = vpop.xlane.xlu0 %5738
          %5740 = vmax.xlane.f32.xlu0 %v5552
          %v5741 = vpop.xlane.xlu0 %5740
          %5742 = vmax.xlane.f32.xlu0 %v5553
          %v5743 = vpop.xlane.xlu0 %5742
          %5744 = vmax.xlane.f32.xlu0 %v5554
          %v5745 = vpop.xlane.xlu0 %5744
          %5746 = vmax.xlane.f32.xlu0 %v5555
          %v5747 = vpop.xlane.xlu0 %5746
          %5748 = vmax.xlane.f32.xlu0 %v5556
          %v5749 = vpop.xlane.xlu0 %5748
          %5750 = vmax.xlane.f32.xlu0 %v5557
          %v5751 = vpop.xlane.xlu0 %5750
          %5752 = vmax.xlane.f32.xlu0 %v5558
          %v5753 = vpop.xlane.xlu0 %5752
          %5754 = vmax.xlane.f32.xlu0 %v5559
          %v5755 = vpop.xlane.xlu0 %5754
          %5756 = vmax.xlane.f32.xlu0 %v5560
          %v5757 = vpop.xlane.xlu0 %5756
          %5758 = vmax.xlane.f32.xlu0 %v5561
          %v5759 = vpop.xlane.xlu0 %5758
          %5760 = vmax.xlane.f32.xlu0 %v5562
          %v5761 = vpop.xlane.xlu0 %5760
          %5762 = vmax.xlane.f32.xlu0 %v5563
          %v5763 = vpop.xlane.xlu0 %5762
          %5764 = vmax.xlane.f32.xlu0 %v5564
          %v5765 = vpop.xlane.xlu0 %5764
          %5766 = vmax.xlane.f32.xlu0 %v5565
          %v5767 = vpop.xlane.xlu0 %5766
          %5768 = vmax.xlane.f32.xlu0 %v5566
          %v5769 = vpop.xlane.xlu0 %5768
          %5770 = vmax.xlane.f32.xlu0 %v5567
          %v5771 = vpop.xlane.xlu0 %5770
          %5772 = vmax.xlane.f32.xlu0 %v5568
          %v5773 = vpop.xlane.xlu0 %5772
          %5774 = vmax.xlane.f32.xlu0 %v5569
          %v5775 = vpop.xlane.xlu0 %5774
          %5776 = vmax.xlane.f32.xlu0 %v5570
          %v5777 = vpop.xlane.xlu0 %5776
          %5778 = vmax.xlane.f32.xlu0 %v5571
          %v5779 = vpop.xlane.xlu0 %5778
          %5780 = vmax.xlane.f32.xlu0 %v5572
          %v5781 = vpop.xlane.xlu0 %5780
          %5782 = vmax.xlane.f32.xlu0 %v5573
          %v5783 = vpop.xlane.xlu0 %5782
          %5784 = vmax.xlane.f32.xlu0 %v5574
          %v5785 = vpop.xlane.xlu0 %5784
          %5786 = vmax.xlane.f32.xlu0 %v5575
          %v5787 = vpop.xlane.xlu0 %5786
          %5788 = vmax.xlane.f32.xlu0 %v5576
          %v5789 = vpop.xlane.xlu0 %5788
          %5790 = vmax.xlane.f32.xlu0 %v5577
          %v5791 = vpop.xlane.xlu0 %5790
          %5792 = vmax.xlane.f32.xlu0 %v5578
          %v5793 = vpop.xlane.xlu0 %5792
          %5794 = vmax.xlane.f32.xlu0 %v5579
          %v5795 = vpop.xlane.xlu0 %5794
          %5796 = vmax.xlane.f32.xlu0 %v5580
          %v5797 = vpop.xlane.xlu0 %5796
          %5798 = vmax.xlane.f32.xlu0 %v5581
          %v5799 = vpop.xlane.xlu0 %5798
          %5800 = vmax.xlane.f32.xlu0 %v5582
          %v5801 = vpop.xlane.xlu0 %5800
          %5802 = vmax.xlane.f32.xlu0 %v5583
          %v5803 = vpop.xlane.xlu0 %5802
          %5804 = vmax.xlane.f32.xlu0 %v5584
          %v5805 = vpop.xlane.xlu0 %5804
          %5806 = vmax.xlane.f32.xlu0 %v5585
          %v5807 = vpop.xlane.xlu0 %5806
          %5808 = vmax.xlane.f32.xlu0 %v5586
          %v5809 = vpop.xlane.xlu0 %5808
          %5810 = vmax.xlane.f32.xlu0 %v5587
          %v5811 = vpop.xlane.xlu0 %5810
          %5812 = vmax.xlane.f32.xlu0 %v5588
          %v5813 = vpop.xlane.xlu0 %5812
          %5814 = vmax.xlane.f32.xlu0 %v5589
          %v5815 = vpop.xlane.xlu0 %5814
          %5816 = vmax.xlane.f32.xlu0 %v5590
          %v5817 = vpop.xlane.xlu0 %5816
          %5818 = vmax.xlane.f32.xlu0 %v5591
          %v5819 = vpop.xlane.xlu0 %5818
          %5820 = vmax.xlane.f32.xlu0 %v5592
          %v5821 = vpop.xlane.xlu0 %5820
          %5822 = vmax.xlane.f32.xlu0 %v5593
          %v5823 = vpop.xlane.xlu0 %5822
          %5824 = vmax.xlane.f32.xlu0 %v5594
          %v5825 = vpop.xlane.xlu0 %5824
          %5826 = vmax.xlane.f32.xlu0 %v5595
          %v5827 = vpop.xlane.xlu0 %5826
          %5828 = vmax.xlane.f32.xlu0 %v5596
          %v5829 = vpop.xlane.xlu0 %5828
          %5830 = vmax.xlane.f32.xlu0 %v5597
          %v5831 = vpop.xlane.xlu0 %5830
          %5832 = vmax.xlane.f32.xlu0 %v5598
          %v5833 = vpop.xlane.xlu0 %5832
          %5834 = vmax.xlane.f32.xlu0 %v5599
          %v5835 = vpop.xlane.xlu0 %5834
          %5836 = vmax.xlane.f32.xlu0 %v5600
          %v5837 = vpop.xlane.xlu0 %5836
          %5838 = vmax.xlane.f32.xlu0 %v5601
          %v5839 = vpop.xlane.xlu0 %5838
          %5840 = vmax.xlane.f32.xlu0 %v5602
          %v5841 = vpop.xlane.xlu0 %5840
          %5842 = vmax.xlane.f32.xlu0 %v5603
          %v5843 = vpop.xlane.xlu0 %5842
          %5844 = vmax.xlane.f32.xlu0 %v5604
          %v5845 = vpop.xlane.xlu0 %5844
          %5846 = vmax.xlane.f32.xlu0 %v5605
          %v5847 = vpop.xlane.xlu0 %5846
          %5848 = vmax.xlane.f32.xlu0 %v5606
          %v5849 = vpop.xlane.xlu0 %5848
          %5850 = vmax.xlane.f32.xlu0 %v5607
          %v5851 = vpop.xlane.xlu0 %5850
          %5852 = vmax.xlane.f32.xlu0 %v5608
          %v5853 = vpop.xlane.xlu0 %5852
          %5854 = vmax.xlane.f32.xlu0 %v5609
          %v5855 = vpop.xlane.xlu0 %5854
          %5856 = vmax.xlane.f32.xlu0 %v5610
          %v5857 = vpop.xlane.xlu0 %5856
          %5858 = vmax.xlane.f32.xlu0 %v5611
          %v5859 = vpop.xlane.xlu0 %5858
          %5860 = vmax.xlane.f32.xlu0 %v5612
          %v5861 = vpop.xlane.xlu0 %5860
          %5862 = vmax.xlane.f32.xlu0 %v5613
          %v5863 = vpop.xlane.xlu0 %5862
          %5864 = vmax.xlane.f32.xlu0 %v5614
          %v5865 = vpop.xlane.xlu0 %5864
          %5866 = vmax.xlane.f32.xlu0 %v5615
          %v5867 = vpop.xlane.xlu0 %5866
          %5868 = vmax.xlane.f32.xlu0 %v5616
          %v5869 = vpop.xlane.xlu0 %5868
          %5870 = vmax.xlane.f32.xlu0 %v5617
          %v5871 = vpop.xlane.xlu0 %5870
          %5872 = vmax.xlane.f32.xlu0 %v5618
          %v5873 = vpop.xlane.xlu0 %5872
          %5874 = vmax.xlane.f32.xlu0 %v5619
          %v5875 = vpop.xlane.xlu0 %5874
          %vm5876 = vcmask 7168
          %5877 = vst.msk [vmem:[%s474] sm:$0xff] %vm5876, %v5621
          %5878 = vst.msk [vmem:[%s474 + $0x8] sm:$0xff] %vm5876, %v5623
          %5879 = vst.msk [vmem:[%s474 + $0x10] sm:$0xff] %vm5876, %v5625
          %5880 = vst.msk [vmem:[%s474 + $0x18] sm:$0xff] %vm5876, %v5627
          %5881 = vst.msk [vmem:[%s474 + $0x20] sm:$0xff] %vm5876, %v5629
          %5882 = vst.msk [vmem:[%s474 + $0x28] sm:$0xff] %vm5876, %v5631
          %5883 = vst.msk [vmem:[%s474 + $0x30] sm:$0xff] %vm5876, %v5633
          %5884 = vst.msk [vmem:[%s474 + $0x38] sm:$0xff] %vm5876, %v5635
          %5885 = vst.msk [vmem:[%s474 + $0x40] sm:$0xff] %vm5876, %v5637
          %5886 = vst.msk [vmem:[%s474 + $0x48] sm:$0xff] %vm5876, %v5639
          %5887 = vst.msk [vmem:[%s474 + $0x50] sm:$0xff] %vm5876, %v5641
          %5888 = vst.msk [vmem:[%s474 + $0x58] sm:$0xff] %vm5876, %v5643
          %5889 = vst.msk [vmem:[%s474 + $0x60] sm:$0xff] %vm5876, %v5645
          %5890 = vst.msk [vmem:[%s474 + $0x68] sm:$0xff] %vm5876, %v5647
          %5891 = vst.msk [vmem:[%s474 + $0x70] sm:$0xff] %vm5876, %v5649
          %5892 = vst.msk [vmem:[%s474 + $0x78] sm:$0xff] %vm5876, %v5651
          %5893 = vst.msk [vmem:[%s474 + $0x80] sm:$0xff] %vm5876, %v5653
          %5894 = vst.msk [vmem:[%s474 + $0x88] sm:$0xff] %vm5876, %v5655
          %5895 = vst.msk [vmem:[%s474 + $0x90] sm:$0xff] %vm5876, %v5657
          %5896 = vst.msk [vmem:[%s474 + $0x98] sm:$0xff] %vm5876, %v5659
          %5897 = vst.msk [vmem:[%s474 + $0xa0] sm:$0xff] %vm5876, %v5661
          %5898 = vst.msk [vmem:[%s474 + $0xa8] sm:$0xff] %vm5876, %v5663
          %5899 = vst.msk [vmem:[%s474 + $0xb0] sm:$0xff] %vm5876, %v5665
          %5900 = vst.msk [vmem:[%s474 + $0xb8] sm:$0xff] %vm5876, %v5667
          %5901 = vst.msk [vmem:[%s474 + $0xc0] sm:$0xff] %vm5876, %v5669
          %5902 = vst.msk [vmem:[%s474 + $0xc8] sm:$0xff] %vm5876, %v5671
          %5903 = vst.msk [vmem:[%s474 + $0xd0] sm:$0xff] %vm5876, %v5673
          %5904 = vst.msk [vmem:[%s474 + $0xd8] sm:$0xff] %vm5876, %v5675
          %5905 = vst.msk [vmem:[%s474 + $0xe0] sm:$0xff] %vm5876, %v5677
          %5906 = vst.msk [vmem:[%s474 + $0xe8] sm:$0xff] %vm5876, %v5679
          %5907 = vst.msk [vmem:[%s474 + $0xf0] sm:$0xff] %vm5876, %v5681
          %5908 = vst.msk [vmem:[%s474 + $0xf8] sm:$0xff] %vm5876, %v5683
          %5909 = vst.msk [vmem:[%s474 + $0x100] sm:$0xff] %vm5876, %v5685
          %5910 = vst.msk [vmem:[%s474 + $0x108] sm:$0xff] %vm5876, %v5687
          %5911 = vst.msk [vmem:[%s474 + $0x110] sm:$0xff] %vm5876, %v5689
          %5912 = vst.msk [vmem:[%s474 + $0x118] sm:$0xff] %vm5876, %v5691
          %5913 = vst.msk [vmem:[%s474 + $0x120] sm:$0xff] %vm5876, %v5693
          %5914 = vst.msk [vmem:[%s474 + $0x128] sm:$0xff] %vm5876, %v5695
          %5915 = vst.msk [vmem:[%s474 + $0x130] sm:$0xff] %vm5876, %v5697
          %5916 = vst.msk [vmem:[%s474 + $0x138] sm:$0xff] %vm5876, %v5699
          %5917 = vst.msk [vmem:[%s474 + $0x140] sm:$0xff] %vm5876, %v5701
          %5918 = vst.msk [vmem:[%s474 + $0x148] sm:$0xff] %vm5876, %v5703
          %5919 = vst.msk [vmem:[%s474 + $0x150] sm:$0xff] %vm5876, %v5705
          %5920 = vst.msk [vmem:[%s474 + $0x158] sm:$0xff] %vm5876, %v5707
          %5921 = vst.msk [vmem:[%s474 + $0x160] sm:$0xff] %vm5876, %v5709
          %5922 = vst.msk [vmem:[%s474 + $0x168] sm:$0xff] %vm5876, %v5711
          %5923 = vst.msk [vmem:[%s474 + $0x170] sm:$0xff] %vm5876, %v5713
          %5924 = vst.msk [vmem:[%s474 + $0x178] sm:$0xff] %vm5876, %v5715
          %5925 = vst.msk [vmem:[%s474 + $0x180] sm:$0xff] %vm5876, %v5717
          %5926 = vst.msk [vmem:[%s474 + $0x188] sm:$0xff] %vm5876, %v5719
          %5927 = vst.msk [vmem:[%s474 + $0x190] sm:$0xff] %vm5876, %v5721
          %5928 = vst.msk [vmem:[%s474 + $0x198] sm:$0xff] %vm5876, %v5723
          %5929 = vst.msk [vmem:[%s474 + $0x1a0] sm:$0xff] %vm5876, %v5725
          %5930 = vst.msk [vmem:[%s474 + $0x1a8] sm:$0xff] %vm5876, %v5727
          %5931 = vst.msk [vmem:[%s474 + $0x1b0] sm:$0xff] %vm5876, %v5729
          %5932 = vst.msk [vmem:[%s474 + $0x1b8] sm:$0xff] %vm5876, %v5731
          %5933 = vst.msk [vmem:[%s474 + $0x1c0] sm:$0xff] %vm5876, %v5733
          %5934 = vst.msk [vmem:[%s474 + $0x1c8] sm:$0xff] %vm5876, %v5735
          %5935 = vst.msk [vmem:[%s474 + $0x1d0] sm:$0xff] %vm5876, %v5737
          %5936 = vst.msk [vmem:[%s474 + $0x1d8] sm:$0xff] %vm5876, %v5739
          %5937 = vst.msk [vmem:[%s474 + $0x1e0] sm:$0xff] %vm5876, %v5741
          %5938 = vst.msk [vmem:[%s474 + $0x1e8] sm:$0xff] %vm5876, %v5743
          %5939 = vst.msk [vmem:[%s474 + $0x1f0] sm:$0xff] %vm5876, %v5745
          %5940 = vst.msk [vmem:[%s474 + $0x1f8] sm:$0xff] %vm5876, %v5747
          %5941 = vst.msk [vmem:[%s474 + $0x200] sm:$0xff] %vm5876, %v5749
          %5942 = vst.msk [vmem:[%s474 + $0x208] sm:$0xff] %vm5876, %v5751
          %5943 = vst.msk [vmem:[%s474 + $0x210] sm:$0xff] %vm5876, %v5753
          %5944 = vst.msk [vmem:[%s474 + $0x218] sm:$0xff] %vm5876, %v5755
          %5945 = vst.msk [vmem:[%s474 + $0x220] sm:$0xff] %vm5876, %v5757
          %5946 = vst.msk [vmem:[%s474 + $0x228] sm:$0xff] %vm5876, %v5759
          %5947 = vst.msk [vmem:[%s474 + $0x230] sm:$0xff] %vm5876, %v5761
          %5948 = vst.msk [vmem:[%s474 + $0x238] sm:$0xff] %vm5876, %v5763
          %5949 = vst.msk [vmem:[%s474 + $0x240] sm:$0xff] %vm5876, %v5765
          %5950 = vst.msk [vmem:[%s474 + $0x248] sm:$0xff] %vm5876, %v5767
          %5951 = vst.msk [vmem:[%s474 + $0x250] sm:$0xff] %vm5876, %v5769
          %5952 = vst.msk [vmem:[%s474 + $0x258] sm:$0xff] %vm5876, %v5771
          %5953 = vst.msk [vmem:[%s474 + $0x260] sm:$0xff] %vm5876, %v5773
          %5954 = vst.msk [vmem:[%s474 + $0x268] sm:$0xff] %vm5876, %v5775
          %5955 = vst.msk [vmem:[%s474 + $0x270] sm:$0xff] %vm5876, %v5777
          %5956 = vst.msk [vmem:[%s474 + $0x278] sm:$0xff] %vm5876, %v5779
          %5957 = vst.msk [vmem:[%s474 + $0x280] sm:$0xff] %vm5876, %v5781
          %5958 = vst.msk [vmem:[%s474 + $0x288] sm:$0xff] %vm5876, %v5783
          %5959 = vst.msk [vmem:[%s474 + $0x290] sm:$0xff] %vm5876, %v5785
          %5960 = vst.msk [vmem:[%s474 + $0x298] sm:$0xff] %vm5876, %v5787
          %5961 = vst.msk [vmem:[%s474 + $0x2a0] sm:$0xff] %vm5876, %v5789
          %5962 = vst.msk [vmem:[%s474 + $0x2a8] sm:$0xff] %vm5876, %v5791
          %5963 = vst.msk [vmem:[%s474 + $0x2b0] sm:$0xff] %vm5876, %v5793
          %5964 = vst.msk [vmem:[%s474 + $0x2b8] sm:$0xff] %vm5876, %v5795
          %5965 = vst.msk [vmem:[%s474 + $0x2c0] sm:$0xff] %vm5876, %v5797
          %5966 = vst.msk [vmem:[%s474 + $0x2c8] sm:$0xff] %vm5876, %v5799
          %5967 = vst.msk [vmem:[%s474 + $0x2d0] sm:$0xff] %vm5876, %v5801
          %5968 = vst.msk [vmem:[%s474 + $0x2d8] sm:$0xff] %vm5876, %v5803
          %5969 = vst.msk [vmem:[%s474 + $0x2e0] sm:$0xff] %vm5876, %v5805
          %5970 = vst.msk [vmem:[%s474 + $0x2e8] sm:$0xff] %vm5876, %v5807
          %5971 = vst.msk [vmem:[%s474 + $0x2f0] sm:$0xff] %vm5876, %v5809
          %5972 = vst.msk [vmem:[%s474 + $0x2f8] sm:$0xff] %vm5876, %v5811
          %5973 = vst.msk [vmem:[%s474 + $0x300] sm:$0xff] %vm5876, %v5813
          %5974 = vst.msk [vmem:[%s474 + $0x308] sm:$0xff] %vm5876, %v5815
          %5975 = vst.msk [vmem:[%s474 + $0x310] sm:$0xff] %vm5876, %v5817
          %5976 = vst.msk [vmem:[%s474 + $0x318] sm:$0xff] %vm5876, %v5819
          %5977 = vst.msk [vmem:[%s474 + $0x320] sm:$0xff] %vm5876, %v5821
          %5978 = vst.msk [vmem:[%s474 + $0x328] sm:$0xff] %vm5876, %v5823
          %5979 = vst.msk [vmem:[%s474 + $0x330] sm:$0xff] %vm5876, %v5825
          %5980 = vst.msk [vmem:[%s474 + $0x338] sm:$0xff] %vm5876, %v5827
          %5981 = vst.msk [vmem:[%s474 + $0x340] sm:$0xff] %vm5876, %v5829
          %5982 = vst.msk [vmem:[%s474 + $0x348] sm:$0xff] %vm5876, %v5831
          %5983 = vst.msk [vmem:[%s474 + $0x350] sm:$0xff] %vm5876, %v5833
          %5984 = vst.msk [vmem:[%s474 + $0x358] sm:$0xff] %vm5876, %v5835
          %5985 = vst.msk [vmem:[%s474 + $0x360] sm:$0xff] %vm5876, %v5837
          %5986 = vst.msk [vmem:[%s474 + $0x368] sm:$0xff] %vm5876, %v5839
          %5987 = vst.msk [vmem:[%s474 + $0x370] sm:$0xff] %vm5876, %v5841
          %5988 = vst.msk [vmem:[%s474 + $0x378] sm:$0xff] %vm5876, %v5843
          %5989 = vst.msk [vmem:[%s474 + $0x380] sm:$0xff] %vm5876, %v5845
          %5990 = vst.msk [vmem:[%s474 + $0x388] sm:$0xff] %vm5876, %v5847
          %5991 = vst.msk [vmem:[%s474 + $0x390] sm:$0xff] %vm5876, %v5849
          %5992 = vst.msk [vmem:[%s474 + $0x398] sm:$0xff] %vm5876, %v5851
          %5993 = vst.msk [vmem:[%s474 + $0x3a0] sm:$0xff] %vm5876, %v5853
          %5994 = vst.msk [vmem:[%s474 + $0x3a8] sm:$0xff] %vm5876, %v5855
          %5995 = vst.msk [vmem:[%s474 + $0x3b0] sm:$0xff] %vm5876, %v5857
          %5996 = vst.msk [vmem:[%s474 + $0x3b8] sm:$0xff] %vm5876, %v5859
          %5997 = vst.msk [vmem:[%s474 + $0x3c0] sm:$0xff] %vm5876, %v5861
          %5998 = vst.msk [vmem:[%s474 + $0x3c8] sm:$0xff] %vm5876, %v5863
          %5999 = vst.msk [vmem:[%s474 + $0x3d0] sm:$0xff] %vm5876, %v5865
          %6000 = vst.msk [vmem:[%s474 + $0x3d8] sm:$0xff] %vm5876, %v5867
          %6001 = vst.msk [vmem:[%s474 + $0x3e0] sm:$0xff] %vm5876, %v5869
          %6002 = vst.msk [vmem:[%s474 + $0x3e8] sm:$0xff] %vm5876, %v5871
          %6003 = vst.msk [vmem:[%s474 + $0x3f0] sm:$0xff] %vm5876, %v5873
          %6004 = vst.msk [vmem:[%s474 + $0x3f8] sm:$0xff] %vm5876, %v5875
        $region60: #{tpu_custom_call.1} parent=47 // pred_fallthru
          _
        %s6005 = sand.u32 %s216, 1
        %s6006 = scalar_lea.sflag [#allocation5], %s6005
        %s6007 = sand.u32 %s216, 1
        %s6008 = smul.addr %s6007, 256
        %s6009 = scalar_lea.vmem [#allocation6], %s6008
        %s6010 = sand.u32 %s29, 1
        %s6011 = scalar_lea.sflag [#allocation8], %s6010
        %s6012 = sand.u32 %s246, 1
        %s6013 = smul.addr %s6012, 512
        %s6014 = scalar_lea.vmem [#allocation7], %s6013
        %s6015 = sand.u32 %s29, 1
        %s6016 = scalar_lea.sflag [#allocation8], %s6015
        %s6017 = sand.u32 %s276, 1
        %s6018 = smul.addr %s6017, 2048
        %s6019 = scalar_lea.vmem [#allocation9], %s6018
        %p6020 = scmp.lt.s32.totalorder %s34, 1
        %s6021 = scalar_select %p6020, %s34, 1
        %p6022 = scmp.lt.s32.totalorder %s35, 0
        %s6023 = scalar_select %p6022, %s35, 0
        %s6024 = smul.addr %s6023, 128
        %s6025 = smul.addr %s6021, 128
        %s6026 = sadd.s32 %s6024, %s6025
        %s6027 = smul.addr %s6026, 8
        %s6028 = scalar_lea.vmem %s10, %s6027
        // Predicated region
        $region61: #{tpu_custom_call.1} parent=47 // pred_check
          %p6029 = pneg %p226
        $region62: #{tpu_custom_call.1} parent=47 // pred_check_branch
          %6031 = sbr.rel (%p6029) target = $region64
        $region63: #{tpu_custom_call.1} parent=47 // pred_region
          %s6032 = sadd.s32 %s35, %s36
          %s6033 = smul.u32 4, %s6032
          %6035 = vsyncadd %s6006, 0
          %s6036 = smul.addr %s34, 32
          %s6037 = sadd.s32 %s6033, %s6036
          %s6038 = smul.addr %s6037, 8
          %s6039 = scalar_lea.hbm %s7, %s6038
          %s6040 = sshll.u32 %s6009, 4
          %s6041 = int_to_ptr.vmem [resolvable:$true] %s6040
          %s6042 = sshll.u32 %s6039, 4
          %s6043 = int_to_ptr.hbm [resolvable:$true] %s6042
          %6048 = dma.vmem_to_hbm [thread:$0]  %s6041, 4096, %s6043, %s6006, 512, 512, 32
        $region64: #{tpu_custom_call.1} parent=47 // pred_fallthru
          _
        // Predicated region
        $region65: #{tpu_custom_call.1} parent=47 // pred_check
          %p6049 = pneg %p256
        $region66: #{tpu_custom_call.1} parent=47 // pred_check_branch
          %6051 = sbr.rel (%p6049) target = $region68
        $region67: #{tpu_custom_call.1} parent=47 // pred_region
          %s6052 = sadd.s32 %s35, %s36
          %s6053 = smul.u32 4, %s6052
          %6055 = vsyncadd %s6011, 0
          %s6056 = smul.addr %s34, 64
          %s6057 = sadd.s32 %s6053, %s6056
          %s6058 = smul.addr %s6057, 8
          %s6059 = scalar_lea.hbm %s8, %s6058
          %s6060 = sshll.u32 %s6014, 4
          %s6061 = int_to_ptr.vmem [resolvable:$true] %s6060
          %s6062 = sshll.u32 %s6059, 4
          %s6063 = int_to_ptr.hbm [resolvable:$true] %s6062
          %6068 = dma.vmem_to_hbm [thread:$0]  %s6061, 8192, %s6063, %s6011, 512, 512, 32
        $region68: #{tpu_custom_call.1} parent=47 // pred_fallthru
          _
        // Predicated region
        $region69: #{tpu_custom_call.1} parent=47 // pred_check
          %p6069 = pneg %p286
        $region70: #{tpu_custom_call.1} parent=47 // pred_check_branch
          %6071 = sbr.rel (%p6069) target = $region72
        $region71: #{tpu_custom_call.1} parent=47 // pred_region
          %s6072 = sadd.s32 %s35, %s36
          %s6073 = smul.u32 4, %s6072
          %6075 = vsyncadd %s6016, 0
          %s6076 = smul.addr %s34, 512
          %s6077 = sadd.s32 %s6073, %s6076
          %s6078 = smul.addr %s6077, 4
          %s6079 = scalar_lea.hbm %s9, %s6078
          %s6080 = sshll.u32 %s6019, 4
          %s6081 = int_to_ptr.vmem [resolvable:$true] %s6080
          %s6082 = sshll.u32 %s6079, 4
          %s6083 = int_to_ptr.hbm [resolvable:$true] %s6082
          %6088 = dma.vmem_to_hbm [thread:$0]  %s6081, 32768, %s6083, %s6016, 256, 256, 16
        $region72: #{tpu_custom_call.1} parent=47 // pred_fallthru
          _
        // Predicated region
        $region73: #{tpu_custom_call.1} parent=47 // pred_check
          %p6089 = pneg %p314
        $region74: #{tpu_custom_call.1} parent=47 // pred_check_branch
          %6091 = sbr.rel (%p6089) target = $region76
        $region75: #{tpu_custom_call.1} parent=47 // pred_region
          _
        $region76: #{tpu_custom_call.1} parent=47 // pred_fallthru
          _
      $region48: #{tpu_custom_call.1} parent=5 // pred_fallthru
        _
      %p6092 = scmp.le.s32.totalorder 2, %s24
      // Predicated region
      $region77: #{tpu_custom_call.1} parent=5 // pred_check
        %p6093 = pneg %p6092
      $region78: #{tpu_custom_call.1} parent=5 // pred_check_branch
        %6095 = sbr.rel (%p6093) target = $region80
      $region79: #{tpu_custom_call.1} parent=5 // pred_region
        %s6096 = ssub.s32 %s24, 2
        // Predicated region
        $region81: #{tpu_custom_call.1} parent=79 // pred_check
          %p6097 = pneg %p232
        $region82: #{tpu_custom_call.1} parent=79 // pred_check_branch
          %6099 = sbr.rel (%p6097) target = $region84
        $region83: #{tpu_custom_call.1} parent=79 // pred_region
          %s6100 = sand.u32 %s217, 1
          %s6101 = scalar_lea.sflag [#allocation5], %s6100
          %s6102 = sand.u32 %s217, 1
          %s6103 = smul.addr %s6102, 256
          %s6104 = scalar_lea.vmem [#allocation6], %s6103
          %6106 = dma.done %s6101, 4096
        $region84: #{tpu_custom_call.1} parent=79 // pred_fallthru
          _
        // Predicated region
        $region85: #{tpu_custom_call.1} parent=79 // pred_check
          %p6107 = pneg %p262
        $region86: #{tpu_custom_call.1} parent=79 // pred_check_branch
          %6109 = sbr.rel (%p6107) target = $region88
        $region87: #{tpu_custom_call.1} parent=79 // pred_region
          %s6110 = sand.u32 %s30, 1
          %s6111 = scalar_lea.sflag [#allocation8], %s6110
          %s6112 = sand.u32 %s247, 1
          %s6113 = smul.addr %s6112, 512
          %s6114 = scalar_lea.vmem [#allocation7], %s6113
          %6116 = dma.done %s6111, 8192
        $region88: #{tpu_custom_call.1} parent=79 // pred_fallthru
          _
        // Predicated region
        $region89: #{tpu_custom_call.1} parent=79 // pred_check
          %p6117 = pneg %p292
        $region90: #{tpu_custom_call.1} parent=79 // pred_check_branch
          %6119 = sbr.rel (%p6117) target = $region92
        $region91: #{tpu_custom_call.1} parent=79 // pred_region
          %s6120 = sand.u32 %s30, 1
          %s6121 = scalar_lea.sflag [#allocation8], %s6120
          %s6122 = sand.u32 %s277, 1
          %s6123 = smul.addr %s6122, 2048
          %s6124 = scalar_lea.vmem [#allocation9], %s6123
          %6126 = dma.done %s6121, 32768
        $region92: #{tpu_custom_call.1} parent=79 // pred_fallthru
          _
        // Predicated region
        $region93: #{tpu_custom_call.1} parent=79 // pred_check
          %p6127 = pneg %p320
        $region94: #{tpu_custom_call.1} parent=79 // pred_check_branch
          %6129 = sbr.rel (%p6127) target = $region96
        $region95: #{tpu_custom_call.1} parent=79 // pred_region
          %p6130 = scmp.lt.s32.totalorder %s37, 1
          %s6131 = scalar_select %p6130, %s37, 1
          %p6132 = scmp.lt.s32.totalorder %s38, 0
          %s6133 = scalar_select %p6132, %s38, 0
          %s6134 = smul.addr %s6133, 128
          %s6135 = smul.addr %s6131, 128
          %s6136 = sadd.s32 %s6134, %s6135
          %s6137 = smul.addr %s6136, 8
          %s6138 = scalar_lea.vmem %s10, %s6137
        $region96: #{tpu_custom_call.1} parent=79 // pred_fallthru
          _
      $region80: #{tpu_custom_call.1} parent=5 // pred_fallthru
        _
    $region6: #{tpu_custom_call.1} parent=1 // loop_footer
      %s28 = sadd.s32 1, %s24
    $region7: #{tpu_custom_call.1} parent=1 // loop_footer_branch
      %23 = sbr.rel target = $region3
    $region8: #{tpu_custom_call.1} parent=1 // loop_exit
      _
    %6139 = vsyncpa [#allocation4], 1
    %s6140 = scalar_lea.sflag [#allocation4], 1
    %6141 = vsyncpa %s6140, 1
    %6142 = vsyncpa [#allocation5], 1
    %s6143 = scalar_lea.sflag [#allocation5], 1
    %6144 = vsyncpa %s6143, 1
    %6145 = vsyncpa [#allocation8], 1
    %s6146 = scalar_lea.sflag [#allocation8], 1
    %6147 = vsyncpa %s6146, 1

</llo_original>
